<compile_context>
chip_gen: v5e
topology: v5e:2x2
jax: 0.10.0
libtpu: 0.0.40
codegen_flags: <defaults>
</compile_context>

<pallas_src>
import math

import jax
import jax.numpy as jnp
from jax import lax
from jax.experimental import pallas as pl
from jax.experimental.pallas import tpu as pltpu

# ---- model hyper-parameters (small, consistent with the module defaults) ----
D_MODEL = 32                      # d_model
N_LAYER = 2                       # n_layer
VOCAB = 100                       # vocab_size (unused in forward)
D_STATE = 16                      # Mamba d_state
D_CONV = 4                        # Mamba d_conv
EXPAND = 2
D_INNER = EXPAND * D_MODEL        # 64
DT_RANK = math.ceil(D_MODEL / 16) # 2
EPS = 1e-5

B = 2                             # batch
L = 8                             # sequence length
BL = B * L                        # flattened rows

PARAM_ORDER = (
    "ln_w", "ln_b",
    "in_wT",                      # (D, 2E)  [:, :E]=x branch, [:, E:]=z branch
    "conv_w", "conv_b",           # (K, E), (1, E)
    "xw_T",                       # (E, R+2N) columns = [dt | B | C]
    "dt_wT", "dt_b",              # (R, E), (1, E)
    "A",                          # (N, E)  precomputed -exp(A_log)
    "D", "out_wT",                # (1, E), (E, D)
)
NP = len(PARAM_ORDER)


def _silu(x):
    return x * (1.0 / (1.0 + jnp.exp(-x)))


def _softplus(x):
    # numerically stable softplus (matches torch.nn.functional.softplus)
    return jnp.maximum(x, 0.0) + jnp.log1p(jnp.exp(-jnp.abs(x)))


# --------------------------------------------------------------------------
# Single fused kernel: all layers + final norm. No grid (one invocation);
# total footprint (activations + weights + scratch << 1 MiB) is tiny vs VMEM.
# --------------------------------------------------------------------------
def mixer_kernel(*refs):
    hid_ref = refs[0]
    layer_refs = refs[1:1 + N_LAYER * NP]
    nf_w_ref = refs[1 + N_LAYER * NP]
    nf_b_ref = refs[2 + N_LAYER * NP]
    out_ref = refs[3 + N_LAYER * NP]
    xpad_ref = refs[4 + N_LAYER * NP]     # (B, L+K-1, E) conv pad scratch
    y_ref = refs[5 + N_LAYER * NP]        # (BL, E) scan output scratch

    # Zero the conv pad scratch once; the data rows are overwritten each layer,
    # the first K-1 rows per batch stay zero (causal left padding).
    xpad_ref[...] = jnp.zeros_like(xpad_ref)

    hidden = hid_ref[...]                 # (BL, D)
    residual = jnp.zeros_like(hidden)

    for li in range(N_LAYER):
        (ln_w_ref, ln_b_ref, in_wT_ref, conv_w_ref, conv_b_ref, xw_T_ref,
         dt_wT_ref, dt_b_ref, A_ref, D_ref, out_wT_ref) = \
            layer_refs[li * NP:(li + 1) * NP]

        # ---- residual add + LayerNorm (pre-norm) ----
        residual = hidden if li == 0 else hidden + residual
        mu = jnp.mean(residual, axis=-1, keepdims=True)
        var = jnp.mean((residual - mu) ** 2, axis=-1, keepdims=True)
        hs = (residual - mu) * lax.rsqrt(var + EPS) * ln_w_ref[...] + ln_b_ref[...]

        # ---- in_proj: single lane-dense (D, 2E=128) matmul; slice x / z ----
        xz = jnp.dot(hs, in_wT_ref[...], preferred_element_type=jnp.float32)  # (BL, 2E)
        x = xz[:, :D_INNER]                 # (BL, E)
        z = xz[:, D_INNER:]                 # (BL, E)

        # ---- causal depthwise conv1d via padded VMEM scratch (no concat) ----
        xpad_ref[:, D_CONV - 1:, :] = x.reshape(B, L, D_INNER)
        cw = conv_w_ref[...]                # (K, E)
        acc = jnp.zeros((B, L, D_INNER), jnp.float32)
        for k in range(D_CONV):
            acc = acc + xpad_ref[:, k:k + L, :] * cw[k:k + 1, :]
        x_conv = _silu(acc.reshape(BL, D_INNER) + conv_b_ref[...])  # (BL, E)

        # ---- fused x_proj: one matmul -> dt_low | B | C ----
        proj = jnp.dot(x_conv, xw_T_ref[...], preferred_element_type=jnp.float32)
        dt_low = proj[:, :DT_RANK]                          # (BL, R)
        Bm = proj[:, DT_RANK:DT_RANK + D_STATE]             # (BL, N)
        Cm = proj[:, DT_RANK + D_STATE:]                    # (BL, N)

        # ---- dt_proj + softplus(dt + delta_bias) ----
        dt = _softplus(jnp.dot(dt_low, dt_wT_ref[...],
                               preferred_element_type=jnp.float32) + dt_b_ref[...])

        A = A_ref[...]                      # (N, E), already -exp(A_log)

        # ---- hoisted (vectorised over all timesteps, off the recurrence) ----
        # dA_all[r, n, e] = exp(dt[r, e] * A[n, e])  -- one big EUP pass.
        dA_all = jnp.exp(dt[:, None, :] * A[None, :, :])    # (BL, N, E)
        dtu = dt * x_conv                                    # (BL, E)
        BmT = jnp.transpose(Bm)             # (N, BL)  -- once per layer
        CmT = jnp.transpose(Cm)             # (N, BL)

        # ---- selective scan: sequential over time (unrolled), per batch.
        # Per-step body is now only: outer product, mul+add state update,
        # C-weighted sublane reduce, one row store.
        for b in range(B):
            h_state = jnp.zeros((D_STATE, D_INNER), jnp.float32)   # state[n, e]
            for t in range(L):
                r = b * L + t
                dBu = BmT[:, r:r + 1] * dtu[r:r + 1, :]      # (N, E) outer product
                h_state = dA_all[r] * h_state + dBu
                # y_t[e] = sum_n C[t,n] * h[n,e]  (VPU mult + sublane reduce)
                y_ref[r:r + 1, :] = jnp.sum(CmT[:, r:r + 1] * h_state,
                                            axis=0, keepdims=True)

        # ---- D skip + SiLU(z) gate + out_proj ----
        y = y_ref[...] + x_conv * D_ref[...]
        y = y * _silu(z)
        hidden = jnp.dot(y, out_wT_ref[...], preferred_element_type=jnp.float32)

    # ---- final residual add + norm_f ----
    residual = hidden + residual
    mu = jnp.mean(residual, axis=-1, keepdims=True)
    var = jnp.mean((residual - mu) ** 2, axis=-1, keepdims=True)
    out_ref[...] = (residual - mu) * lax.rsqrt(var + EPS) * nf_w_ref[...] + nf_b_ref[...]


def mixer_model_forward(hidden, layer_params, normf_w, normf_b):
    hid_flat = hidden.reshape(BL, D_MODEL)
    flat_inputs = [hid_flat]
    for p in layer_params:
        flat_inputs.extend(p[k] for k in PARAM_ORDER)
    flat_inputs.extend([normf_w, normf_b])

    vmem = pl.BlockSpec(memory_space=pltpu.MemorySpace.VMEM)
    out = pl.pallas_call(
        mixer_kernel,
        in_specs=[vmem] * len(flat_inputs),
        out_specs=vmem,
        out_shape=jax.ShapeDtypeStruct((BL, D_MODEL), jnp.float32),
        scratch_shapes=[
            pltpu.VMEM((B, L + D_CONV - 1, D_INNER), jnp.float32),  # conv pad
            pltpu.VMEM((BL, D_INNER), jnp.float32),                 # scan y
        ],
    )(*flat_inputs)
    return out.reshape(B, L, D_MODEL)


# --------------------------------------------------------------------------
# Deterministic parameter construction (shapes follow Mamba/Block __init__).
# All weights are pre-transposed / pre-fused so every in-kernel matmul is a
# plain row-major `x @ W`, and A = -exp(A_log) is precomputed.
# --------------------------------------------------------------------------
def init_params(key):
    params = []
    for _ in range(N_LAYER):
        key, k_in, k_cw, k_cb, k_x, k_dtw, k_dtb, k_out = jax.random.split(key, 8)

        lim_in = 1.0 / math.sqrt(D_MODEL)
        in_w = jax.random.uniform(k_in, (2 * D_INNER, D_MODEL), jnp.float32, -lim_in, lim_in)

        lim_c = 1.0 / math.sqrt(D_CONV)
        conv_w = jax.random.uniform(k_cw, (D_INNER, D_CONV), jnp.float32, -lim_c, lim_c)
        conv_b = jax.random.uniform(k_cb, (D_INNER,), jnp.float32, -lim_c, lim_c)

        lim_x = 1.0 / math.sqrt(D_INNER)
        x_w = jax.random.uniform(k_x, (DT_RANK + 2 * D_STATE, D_INNER), jnp.float32, -lim_x, lim_x)

        dt_std = DT_RANK ** -0.5
        dt_w = jax.random.uniform(k_dtw, (D_INNER, DT_RANK), jnp.float32, -dt_std, dt_std)
        dt_min, dt_max = 1e-3, 1e-1
        u = jax.random.uniform(k_dtb, (D_INNER,), jnp.float32)
        dtv = jnp.maximum(
            jnp.exp(u * (math.log(dt_max) - math.log(dt_min)) + math.log(dt_min)), 1e-4)
        dt_b = dtv + jnp.log(-jnp.expm1(-dtv))            # inverse softplus (_no_reinit)

        A_log = jnp.log(jnp.tile(jnp.arange(1, D_STATE + 1, dtype=jnp.float32), (D_INNER, 1)))
        Dp = jnp.ones((D_INNER,), jnp.float32)

        lim_o = 1.0 / math.sqrt(D_INNER)
        out_w = jax.random.uniform(k_out, (D_MODEL, D_INNER), jnp.float32,
                                   -lim_o, lim_o) / math.sqrt(N_LAYER)  # rescale_prenorm_residual

        params.append(dict(
            ln_w=jnp.ones((1, D_MODEL), jnp.float32),
            ln_b=jnp.zeros((1, D_MODEL), jnp.float32),
            in_wT=jnp.transpose(in_w),                       # (D, 2E): [:, :E]=x, [:, E:]=z
            conv_w=jnp.transpose(conv_w),                    # (K, E)
            conv_b=conv_b.reshape(1, D_INNER),
            xw_T=jnp.transpose(x_w),                         # (E, R+2N) = [dt | B | C]
            dt_wT=jnp.transpose(dt_w),                       # (R, E)
            dt_b=dt_b.reshape(1, D_INNER),
            A=-jnp.exp(jnp.transpose(A_log)),                # (N, E), precomputed
            D=Dp.reshape(1, D_INNER),
            out_wT=jnp.transpose(out_w),                     # (E, D)
        ))
    normf_w = jnp.ones((1, D_MODEL), jnp.float32)
    normf_b = jnp.zeros((1, D_MODEL), jnp.float32)
    return params, normf_w, normf_b


if __name__ == "__main__":
    key = jax.random.PRNGKey(0)
    k_x, k_p = jax.random.split(key)
    x = jax.random.normal(k_x, (B, L, D_MODEL), dtype=jnp.float32)

    layer_params, nf_w, nf_b = init_params(k_p)

    out = mixer_model_forward(x, layer_params, nf_w, nf_b)
    out = jax.block_until_ready(out)
    assert out.shape == (B, L, D_MODEL) and out.dtype == jnp.float32
    assert bool(jnp.all(jnp.isfinite(out)))
    print("KERNEL_OK")
</pallas_src>

<mosaic_0001>
module attributes {stable_mosaic.version = 11 : i64} {
  func.func @mixer_kernel(%arg0: memref<16x32xf32, #tpu.memory_space<vmem>>, %arg1: memref<1x32xf32, #tpu.memory_space<vmem>>, %arg2: memref<1x32xf32, #tpu.memory_space<vmem>>, %arg3: memref<32x128xf32, #tpu.memory_space<vmem>>, %arg4: memref<4x64xf32, #tpu.memory_space<vmem>>, %arg5: memref<1x64xf32, #tpu.memory_space<vmem>>, %arg6: memref<64x34xf32, #tpu.memory_space<vmem>>, %arg7: memref<2x64xf32, #tpu.memory_space<vmem>>, %arg8: memref<1x64xf32, #tpu.memory_space<vmem>>, %arg9: memref<16x64xf32, #tpu.memory_space<vmem>>, %arg10: memref<1x64xf32, #tpu.memory_space<vmem>>, %arg11: memref<64x32xf32, #tpu.memory_space<vmem>>, %arg12: memref<1x32xf32, #tpu.memory_space<vmem>>, %arg13: memref<1x32xf32, #tpu.memory_space<vmem>>, %arg14: memref<32x128xf32, #tpu.memory_space<vmem>>, %arg15: memref<4x64xf32, #tpu.memory_space<vmem>>, %arg16: memref<1x64xf32, #tpu.memory_space<vmem>>, %arg17: memref<64x34xf32, #tpu.memory_space<vmem>>, %arg18: memref<2x64xf32, #tpu.memory_space<vmem>>, %arg19: memref<1x64xf32, #tpu.memory_space<vmem>>, %arg20: memref<16x64xf32, #tpu.memory_space<vmem>>, %arg21: memref<1x64xf32, #tpu.memory_space<vmem>>, %arg22: memref<64x32xf32, #tpu.memory_space<vmem>>, %arg23: memref<1x32xf32, #tpu.memory_space<vmem>>, %arg24: memref<1x32xf32, #tpu.memory_space<vmem>>, %arg25: memref<16x32xf32, #tpu.memory_space<vmem>>, %arg26: memref<2x11x64xf32, #tpu.memory_space<vmem>>, %arg27: memref<16x64xf32, #tpu.memory_space<vmem>>) attributes {dimension_semantics = [], scalar_prefetch = 0 : i64, scratch_operands = 2 : i64, tpu.core_type = #tpu.core_type<tc>} {
    %cst = arith.constant 0.000000e+00 : f32
    %0 = vector.broadcast %cst : f32 to vector<2x11x64xf32>
    %c0 = arith.constant 0 : index
    %c0_0 = arith.constant 0 : index
    %c0_1 = arith.constant 0 : index
    %1 = vector.load %arg26[%c0, %c0_0, %c0_1] : memref<2x11x64xf32, #tpu.memory_space<vmem>>, vector<2x11x64xf32>
    tpu.vector_store %arg26[%c0, %c0_0, %c0_1], %0 {strides = array<i32>} : memref<2x11x64xf32, #tpu.memory_space<vmem>>, vector<2x11x64xf32>,
    %c0_2 = arith.constant 0 : index
    %c0_3 = arith.constant 0 : index
    %2 = vector.load %arg0[%c0_2, %c0_3] : memref<16x32xf32, #tpu.memory_space<vmem>>, vector<16x32xf32>
    %cst_4 = arith.constant dense<0.000000e+00> : vector<16xf32>
    %3 = vector.multi_reduction <add>, %2, %cst_4 [1] : vector<16x32xf32> to vector<16xf32>
    %4 = vector.shape_cast %3 : vector<16xf32> to vector<16x1xf32>
    %cst_5 = arith.constant 3.200000e+01 : f32
    %5 = vector.broadcast %cst_5 : f32 to vector<16x1xf32>
    %6 = arith.divf %4, %5 : vector<16x1xf32>
    %7 = vector.broadcast %6 : vector<16x1xf32> to vector<16x32xf32>
    %8 = arith.subf %2, %7 : vector<16x32xf32>
    %9 = arith.mulf %8, %8 : vector<16x32xf32>
    %cst_6 = arith.constant dense<0.000000e+00> : vector<16xf32>
    %10 = vector.multi_reduction <add>, %9, %cst_6 [1] : vector<16x32xf32> to vector<16xf32>
    %11 = vector.shape_cast %10 : vector<16xf32> to vector<16x1xf32>
    %cst_7 = arith.constant 3.200000e+01 : f32
    %12 = vector.broadcast %cst_7 : f32 to vector<16x1xf32>
    %13 = arith.divf %11, %12 : vector<16x1xf32>
    %14 = vector.broadcast %6 : vector<16x1xf32> to vector<16x32xf32>
    %15 = arith.subf %2, %14 : vector<16x32xf32>
    %cst_8 = arith.constant 9.99999974E-6 : f32
    %16 = vector.broadcast %cst_8 : f32 to vector<16x1xf32>
    %17 = arith.addf %13, %16 : vector<16x1xf32>
    %18 = math.rsqrt %17 : vector<16x1xf32>
    %19 = vector.broadcast %18 : vector<16x1xf32> to vector<16x32xf32>
    %20 = arith.mulf %15, %19 : vector<16x32xf32>
    %c0_9 = arith.constant 0 : index
    %c0_10 = arith.constant 0 : index
    %21 = vector.load %arg1[%c0_9, %c0_10] : memref<1x32xf32, #tpu.memory_space<vmem>>, vector<1x32xf32>
    %22 = vector.broadcast %21 : vector<1x32xf32> to vector<16x32xf32>
    %23 = arith.mulf %20, %22 : vector<16x32xf32>
    %c0_11 = arith.constant 0 : index
    %c0_12 = arith.constant 0 : index
    %24 = vector.load %arg2[%c0_11, %c0_12] : memref<1x32xf32, #tpu.memory_space<vmem>>, vector<1x32xf32>
    %25 = vector.broadcast %24 : vector<1x32xf32> to vector<16x32xf32>
    %26 = arith.addf %23, %25 : vector<16x32xf32>
    %c0_13 = arith.constant 0 : index
    %c0_14 = arith.constant 0 : index
    %27 = vector.load %arg3[%c0_13, %c0_14] : memref<32x128xf32, #tpu.memory_space<vmem>>, vector<32x128xf32>
    %cst_15 = arith.constant dense<0.000000e+00> : vector<16x128xf32>
    %28 = tpu.matmul %26, %27, %cst_15 {dimension_numbers = #tpu.dot_dimension_numbers<[1], [0], [0], [1], [0, 0, 1, 1], [], []>} : vector<16x32xf32>, vector<32x128xf32>, vector<16x128xf32> -> vector<16x128xf32>
    %29 = vector.extract_strided_slice %28 {offsets = [0, 0], sizes = [16, 64], strides = [1, 1]} : vector<16x128xf32> to vector<16x64xf32>
    %30 = vector.extract_strided_slice %28 {offsets = [0, 64], sizes = [16, 64], strides = [1, 1]} : vector<16x128xf32> to vector<16x64xf32>
    %31 = vector.shape_cast %29 : vector<16x64xf32> to vector<2x8x64xf32>
    %c0_16 = arith.constant 0 : index
    %c3 = arith.constant 3 : index
    %c0_17 = arith.constant 0 : index
    %32 = vector.load %arg26[%c0_16, %c3, %c0_17] : memref<2x11x64xf32, #tpu.memory_space<vmem>>, vector<2x8x64xf32>
    tpu.vector_store %arg26[%c0_16, %c3, %c0_17], %31 {strides = array<i32>} : memref<2x11x64xf32, #tpu.memory_space<vmem>>, vector<2x8x64xf32>,
    %c0_18 = arith.constant 0 : index
    %c0_19 = arith.constant 0 : index
    %33 = vector.load %arg4[%c0_18, %c0_19] : memref<4x64xf32, #tpu.memory_space<vmem>>, vector<4x64xf32>
    %cst_20 = arith.constant 0.000000e+00 : f32
    %34 = vector.broadcast %cst_20 : f32 to vector<2x8x64xf32>
    %c0_21 = arith.constant 0 : index
    %c0_22 = arith.constant 0 : index
    %c0_23 = arith.constant 0 : index
    %35 = vector.load %arg26[%c0_21, %c0_22, %c0_23] : memref<2x11x64xf32, #tpu.memory_space<vmem>>, vector<2x8x64xf32>
    %36 = vector.extract_strided_slice %33 {offsets = [0, 0], sizes = [1, 64], strides = [1, 1]} : vector<4x64xf32> to vector<1x64xf32>
    %37 = vector.shape_cast %36 : vector<1x64xf32> to vector<1x1x64xf32>
    %38 = vector.broadcast %37 : vector<1x1x64xf32> to vector<2x8x64xf32>
    %39 = arith.mulf %35, %38 : vector<2x8x64xf32>
    %40 = arith.addf %34, %39 : vector<2x8x64xf32>
    %c0_24 = arith.constant 0 : index
    %c1 = arith.constant 1 : index
    %c0_25 = arith.constant 0 : index
    %41 = vector.load %arg26[%c0_24, %c1, %c0_25] : memref<2x11x64xf32, #tpu.memory_space<vmem>>, vector<2x8x64xf32>
    %42 = vector.extract_strided_slice %33 {offsets = [1, 0], sizes = [1, 64], strides = [1, 1]} : vector<4x64xf32> to vector<1x64xf32>
    %43 = vector.shape_cast %42 : vector<1x64xf32> to vector<1x1x64xf32>
    %44 = vector.broadcast %43 : vector<1x1x64xf32> to vector<2x8x64xf32>
    %45 = arith.mulf %41, %44 : vector<2x8x64xf32>
    %46 = arith.addf %40, %45 : vector<2x8x64xf32>
    %c0_26 = arith.constant 0 : index
    %c2 = arith.constant 2 : index
    %c0_27 = arith.constant 0 : index
    %47 = vector.load %arg26[%c0_26, %c2, %c0_27] : memref<2x11x64xf32, #tpu.memory_space<vmem>>, vector<2x8x64xf32>
    %48 = vector.extract_strided_slice %33 {offsets = [2, 0], sizes = [1, 64], strides = [1, 1]} : vector<4x64xf32> to vector<1x64xf32>
    %49 = vector.shape_cast %48 : vector<1x64xf32> to vector<1x1x64xf32>
    %50 = vector.broadcast %49 : vector<1x1x64xf32> to vector<2x8x64xf32>
    %51 = arith.mulf %47, %50 : vector<2x8x64xf32>
    %52 = arith.addf %46, %51 : vector<2x8x64xf32>
    %c0_28 = arith.constant 0 : index
    %c3_29 = arith.constant 3 : index
    %c0_30 = arith.constant 0 : index
    %53 = vector.load %arg26[%c0_28, %c3_29, %c0_30] : memref<2x11x64xf32, #tpu.memory_space<vmem>>, vector<2x8x64xf32>
    %54 = vector.extract_strided_slice %33 {offsets = [3, 0], sizes = [1, 64], strides = [1, 1]} : vector<4x64xf32> to vector<1x64xf32>
    %55 = vector.shape_cast %54 : vector<1x64xf32> to vector<1x1x64xf32>
    %56 = vector.broadcast %55 : vector<1x1x64xf32> to vector<2x8x64xf32>
    %57 = arith.mulf %53, %56 : vector<2x8x64xf32>
    %58 = arith.addf %52, %57 : vector<2x8x64xf32>
    %59 = vector.shape_cast %58 : vector<2x8x64xf32> to vector<16x64xf32>
    %c0_31 = arith.constant 0 : index
    %c0_32 = arith.constant 0 : index
    %60 = vector.load %arg5[%c0_31, %c0_32] : memref<1x64xf32, #tpu.memory_space<vmem>>, vector<1x64xf32>
    %61 = vector.broadcast %60 : vector<1x64xf32> to vector<16x64xf32>
    %62 = arith.addf %59, %61 : vector<16x64xf32>
    %cst_33 = arith.constant 0.000000e+00 : f32
    %63 = vector.broadcast %cst_33 : f32 to vector<16x64xf32>
    %64 = arith.subf %63, %62 : vector<16x64xf32>
    %65 = math.exp %64 : vector<16x64xf32>
    %cst_34 = arith.constant 1.000000e+00 : f32
    %66 = vector.broadcast %cst_34 : f32 to vector<16x64xf32>
    %67 = arith.addf %66, %65 : vector<16x64xf32>
    %cst_35 = arith.constant 1.000000e+00 : f32
    %68 = vector.broadcast %cst_35 : f32 to vector<16x64xf32>
    %69 = arith.divf %68, %67 : vector<16x64xf32>
    %70 = arith.mulf %62, %69 : vector<16x64xf32>
    %c0_36 = arith.constant 0 : index
    %c0_37 = arith.constant 0 : index
    %71 = vector.load %arg6[%c0_36, %c0_37] : memref<64x34xf32, #tpu.memory_space<vmem>>, vector<64x34xf32>
    %cst_38 = arith.constant dense<0.000000e+00> : vector<16x34xf32>
    %72 = tpu.matmul %70, %71, %cst_38 {dimension_numbers = #tpu.dot_dimension_numbers<[1], [0], [0], [1], [0, 0, 1, 1], [], []>} : vector<16x64xf32>, vector<64x34xf32>, vector<16x34xf32> -> vector<16x34xf32>
    %73 = vector.extract_strided_slice %72 {offsets = [0, 0], sizes = [16, 2], strides = [1, 1]} : vector<16x34xf32> to vector<16x2xf32>
    %74 = vector.extract_strided_slice %72 {offsets = [0, 2], sizes = [16, 16], strides = [1, 1]} : vector<16x34xf32> to vector<16x16xf32>
    %75 = vector.extract_strided_slice %72 {offsets = [0, 18], sizes = [16, 16], strides = [1, 1]} : vector<16x34xf32> to vector<16x16xf32>
    %c0_39 = arith.constant 0 : index
    %c0_40 = arith.constant 0 : index
    %76 = vector.load %arg7[%c0_39, %c0_40] : memref<2x64xf32, #tpu.memory_space<vmem>>, vector<2x64xf32>
    %cst_41 = arith.constant dense<0.000000e+00> : vector<16x64xf32>
    %77 = tpu.matmul %73, %76, %cst_41 {dimension_numbers = #tpu.dot_dimension_numbers<[1], [0], [0], [1], [0, 0, 1, 1], [], []>} : vector<16x2xf32>, vector<2x64xf32>, vector<16x64xf32> -> vector<16x64xf32>
    %c0_42 = arith.constant 0 : index
    %c0_43 = arith.constant 0 : index
    %78 = vector.load %arg8[%c0_42, %c0_43] : memref<1x64xf32, #tpu.memory_space<vmem>>, vector<1x64xf32>
    %79 = vector.broadcast %78 : vector<1x64xf32> to vector<16x64xf32>
    %80 = arith.addf %77, %79 : vector<16x64xf32>
    %cst_44 = arith.constant 0.000000e+00 : f32
    %81 = vector.broadcast %cst_44 : f32 to vector<16x64xf32>
    %82 = arith.maximumf %80, %81 : vector<16x64xf32>
    %83 = math.absf %80 : vector<16x64xf32>
    %cst_45 = arith.constant 0.000000e+00 : f32
    %84 = vector.broadcast %cst_45 : f32 to vector<16x64xf32>
    %85 = arith.subf %84, %83 : vector<16x64xf32>
    %86 = math.exp %85 : vector<16x64xf32>
    %87 = math.log1p %86 : vector<16x64xf32>
    %88 = arith.addf %82, %87 : vector<16x64xf32>
    %c0_46 = arith.constant 0 : index
    %c0_47 = arith.constant 0 : index
    %89 = vector.load %arg9[%c0_46, %c0_47] : memref<16x64xf32, #tpu.memory_space<vmem>>, vector<16x64xf32>
    %90 = vector.shape_cast %88 : vector<16x64xf32> to vector<16x1x64xf32>
    %91 = vector.shape_cast %89 : vector<16x64xf32> to vector<1x16x64xf32>
    %92 = vector.broadcast %90 : vector<16x1x64xf32> to vector<16x16x64xf32>
    %93 = vector.broadcast %91 : vector<1x16x64xf32> to vector<16x16x64xf32>
    %94 = arith.mulf %92, %93 : vector<16x16x64xf32>
    %95 = math.exp %94 : vector<16x16x64xf32>
    %96 = arith.mulf %88, %70 : vector<16x64xf32>
    %97 = tpu.transpose %74, [1, 0] : vector<16x16xf32> -> vector<16x16xf32>
    %98 = tpu.transpose %75, [1, 0] : vector<16x16xf32> -> vector<16x16xf32>
    %cst_48 = arith.constant 0.000000e+00 : f32
    %99 = vector.broadcast %cst_48 : f32 to vector<16x64xf32>
    %100 = vector.extract_strided_slice %97 {offsets = [0, 0], sizes = [16, 1], strides = [1, 1]} : vector<16x16xf32> to vector<16x1xf32>
    %101 = vector.extract_strided_slice %96 {offsets = [0, 0], sizes = [1, 64], strides = [1, 1]} : vector<16x64xf32> to vector<1x64xf32>
    %102 = vector.broadcast %100 : vector<16x1xf32> to vector<16x64xf32>
    %103 = vector.broadcast %101 : vector<1x64xf32> to vector<16x64xf32>
    %104 = arith.mulf %102, %103 : vector<16x64xf32>
    %105 = vector.extract_strided_slice %95 {offsets = [0, 0, 0], sizes = [1, 16, 64], strides = [1, 1, 1]} : vector<16x16x64xf32> to vector<1x16x64xf32>
    %106 = vector.shape_cast %105 : vector<1x16x64xf32> to vector<16x64xf32>
    %107 = arith.mulf %106, %99 : vector<16x64xf32>
    %108 = arith.addf %107, %104 : vector<16x64xf32>
    %109 = vector.extract_strided_slice %98 {offsets = [0, 0], sizes = [16, 1], strides = [1, 1]} : vector<16x16xf32> to vector<16x1xf32>
    %110 = vector.broadcast %109 : vector<16x1xf32> to vector<16x64xf32>
    %111 = arith.mulf %110, %108 : vector<16x64xf32>
    %cst_49 = arith.constant dense<0.000000e+00> : vector<64xf32>
    %112 = vector.multi_reduction <add>, %111, %cst_49 [0] : vector<16x64xf32> to vector<64xf32>
    %113 = vector.shape_cast %112 : vector<64xf32> to vector<1x64xf32>
    %c0_50 = arith.constant 0 : index
    %c0_51 = arith.constant 0 : index
    %114 = vector.load %arg27[%c0_50, %c0_51] : memref<16x64xf32, #tpu.memory_space<vmem>>, vector<1x64xf32>
    tpu.vector_store %arg27[%c0_50, %c0_51], %113 {strides = array<i32>} : memref<16x64xf32, #tpu.memory_space<vmem>>, vector<1x64xf32>,
    %115 = vector.extract_strided_slice %97 {offsets = [0, 1], sizes = [16, 1], strides = [1, 1]} : vector<16x16xf32> to vector<16x1xf32>
    %116 = vector.extract_strided_slice %96 {offsets = [1, 0], sizes = [1, 64], strides = [1, 1]} : vector<16x64xf32> to vector<1x64xf32>
    %117 = vector.broadcast %115 : vector<16x1xf32> to vector<16x64xf32>
    %118 = vector.broadcast %116 : vector<1x64xf32> to vector<16x64xf32>
    %119 = arith.mulf %117, %118 : vector<16x64xf32>
    %120 = vector.extract_strided_slice %95 {offsets = [1, 0, 0], sizes = [1, 16, 64], strides = [1, 1, 1]} : vector<16x16x64xf32> to vector<1x16x64xf32>
    %121 = vector.shape_cast %120 : vector<1x16x64xf32> to vector<16x64xf32>
    %122 = arith.mulf %121, %108 : vector<16x64xf32>
    %123 = arith.addf %122, %119 : vector<16x64xf32>
    %124 = vector.extract_strided_slice %98 {offsets = [0, 1], sizes = [16, 1], strides = [1, 1]} : vector<16x16xf32> to vector<16x1xf32>
    %125 = vector.broadcast %124 : vector<16x1xf32> to vector<16x64xf32>
    %126 = arith.mulf %125, %123 : vector<16x64xf32>
    %cst_52 = arith.constant dense<0.000000e+00> : vector<64xf32>
    %127 = vector.multi_reduction <add>, %126, %cst_52 [0] : vector<16x64xf32> to vector<64xf32>
    %128 = vector.shape_cast %127 : vector<64xf32> to vector<1x64xf32>
    %c1_53 = arith.constant 1 : index
    %c0_54 = arith.constant 0 : index
    %129 = vector.load %arg27[%c1_53, %c0_54] : memref<16x64xf32, #tpu.memory_space<vmem>>, vector<1x64xf32>
    tpu.vector_store %arg27[%c1_53, %c0_54], %128 {strides = array<i32>} : memref<16x64xf32, #tpu.memory_space<vmem>>, vector<1x64xf32>,
    %130 = vector.extract_strided_slice %97 {offsets = [0, 2], sizes = [16, 1], strides = [1, 1]} : vector<16x16xf32> to vector<16x1xf32>
    %131 = vector.extract_strided_slice %96 {offsets = [2, 0], sizes = [1, 64], strides = [1, 1]} : vector<16x64xf32> to vector<1x64xf32>
    %132 = vector.broadcast %130 : vector<16x1xf32> to vector<16x64xf32>
    %133 = vector.broadcast %131 : vector<1x64xf32> to vector<16x64xf32>
    %134 = arith.mulf %132, %133 : vector<16x64xf32>
    %135 = vector.extract_strided_slice %95 {offsets = [2, 0, 0], sizes = [1, 16, 64], strides = [1, 1, 1]} : vector<16x16x64xf32> to vector<1x16x64xf32>
    %136 = vector.shape_cast %135 : vector<1x16x64xf32> to vector<16x64xf32>
    %137 = arith.mulf %136, %123 : vector<16x64xf32>
    %138 = arith.addf %137, %134 : vector<16x64xf32>
    %139 = vector.extract_strided_slice %98 {offsets = [0, 2], sizes = [16, 1], strides = [1, 1]} : vector<16x16xf32> to vector<16x1xf32>
    %140 = vector.broadcast %139 : vector<16x1xf32> to vector<16x64xf32>
    %141 = arith.mulf %140, %138 : vector<16x64xf32>
    %cst_55 = arith.constant dense<0.000000e+00> : vector<64xf32>
    %142 = vector.multi_reduction <add>, %141, %cst_55 [0] : vector<16x64xf32> to vector<64xf32>
    %143 = vector.shape_cast %142 : vector<64xf32> to vector<1x64xf32>
    %c2_56 = arith.constant 2 : index
    %c0_57 = arith.constant 0 : index
    %144 = vector.load %arg27[%c2_56, %c0_57] : memref<16x64xf32, #tpu.memory_space<vmem>>, vector<1x64xf32>
    tpu.vector_store %arg27[%c2_56, %c0_57], %143 {strides = array<i32>} : memref<16x64xf32, #tpu.memory_space<vmem>>, vector<1x64xf32>,
    %145 = vector.extract_strided_slice %97 {offsets = [0, 3], sizes = [16, 1], strides = [1, 1]} : vector<16x16xf32> to vector<16x1xf32>
    %146 = vector.extract_strided_slice %96 {offsets = [3, 0], sizes = [1, 64], strides = [1, 1]} : vector<16x64xf32> to vector<1x64xf32>
    %147 = vector.broadcast %145 : vector<16x1xf32> to vector<16x64xf32>
    %148 = vector.broadcast %146 : vector<1x64xf32> to vector<16x64xf32>
    %149 = arith.mulf %147, %148 : vector<16x64xf32>
    %150 = vector.extract_strided_slice %95 {offsets = [3, 0, 0], sizes = [1, 16, 64], strides = [1, 1, 1]} : vector<16x16x64xf32> to vector<1x16x64xf32>
    %151 = vector.shape_cast %150 : vector<1x16x64xf32> to vector<16x64xf32>
    %152 = arith.mulf %151, %138 : vector<16x64xf32>
    %153 = arith.addf %152, %149 : vector<16x64xf32>
    %154 = vector.extract_strided_slice %98 {offsets = [0, 3], sizes = [16, 1], strides = [1, 1]} : vector<16x16xf32> to vector<16x1xf32>
    %155 = vector.broadcast %154 : vector<16x1xf32> to vector<16x64xf32>
    %156 = arith.mulf %155, %153 : vector<16x64xf32>
    %cst_58 = arith.constant dense<0.000000e+00> : vector<64xf32>
    %157 = vector.multi_reduction <add>, %156, %cst_58 [0] : vector<16x64xf32> to vector<64xf32>
    %158 = vector.shape_cast %157 : vector<64xf32> to vector<1x64xf32>
    %c3_59 = arith.constant 3 : index
    %c0_60 = arith.constant 0 : index
    %159 = vector.load %arg27[%c3_59, %c0_60] : memref<16x64xf32, #tpu.memory_space<vmem>>, vector<1x64xf32>
    tpu.vector_store %arg27[%c3_59, %c0_60], %158 {strides = array<i32>} : memref<16x64xf32, #tpu.memory_space<vmem>>, vector<1x64xf32>,
    %160 = vector.extract_strided_slice %97 {offsets = [0, 4], sizes = [16, 1], strides = [1, 1]} : vector<16x16xf32> to vector<16x1xf32>
    %161 = vector.extract_strided_slice %96 {offsets = [4, 0], sizes = [1, 64], strides = [1, 1]} : vector<16x64xf32> to vector<1x64xf32>
    %162 = vector.broadcast %160 : vector<16x1xf32> to vector<16x64xf32>
    %163 = vector.broadcast %161 : vector<1x64xf32> to vector<16x64xf32>
    %164 = arith.mulf %162, %163 : vector<16x64xf32>
    %165 = vector.extract_strided_slice %95 {offsets = [4, 0, 0], sizes = [1, 16, 64], strides = [1, 1, 1]} : vector<16x16x64xf32> to vector<1x16x64xf32>
    %166 = vector.shape_cast %165 : vector<1x16x64xf32> to vector<16x64xf32>
    %167 = arith.mulf %166, %153 : vector<16x64xf32>
    %168 = arith.addf %167, %164 : vector<16x64xf32>
    %169 = vector.extract_strided_slice %98 {offsets = [0, 4], sizes = [16, 1], strides = [1, 1]} : vector<16x16xf32> to vector<16x1xf32>
    %170 = vector.broadcast %169 : vector<16x1xf32> to vector<16x64xf32>
    %171 = arith.mulf %170, %168 : vector<16x64xf32>
    %cst_61 = arith.constant dense<0.000000e+00> : vector<64xf32>
    %172 = vector.multi_reduction <add>, %171, %cst_61 [0] : vector<16x64xf32> to vector<64xf32>
    %173 = vector.shape_cast %172 : vector<64xf32> to vector<1x64xf32>
    %c4 = arith.constant 4 : index
    %c0_62 = arith.constant 0 : index
    %174 = vector.load %arg27[%c4, %c0_62] : memref<16x64xf32, #tpu.memory_space<vmem>>, vector<1x64xf32>
    tpu.vector_store %arg27[%c4, %c0_62], %173 {strides = array<i32>} : memref<16x64xf32, #tpu.memory_space<vmem>>, vector<1x64xf32>,
    %175 = vector.extract_strided_slice %97 {offsets = [0, 5], sizes = [16, 1], strides = [1, 1]} : vector<16x16xf32> to vector<16x1xf32>
    %176 = vector.extract_strided_slice %96 {offsets = [5, 0], sizes = [1, 64], strides = [1, 1]} : vector<16x64xf32> to vector<1x64xf32>
    %177 = vector.broadcast %175 : vector<16x1xf32> to vector<16x64xf32>
    %178 = vector.broadcast %176 : vector<1x64xf32> to vector<16x64xf32>
    %179 = arith.mulf %177, %178 : vector<16x64xf32>
    %180 = vector.extract_strided_slice %95 {offsets = [5, 0, 0], sizes = [1, 16, 64], strides = [1, 1, 1]} : vector<16x16x64xf32> to vector<1x16x64xf32>
    %181 = vector.shape_cast %180 : vector<1x16x64xf32> to vector<16x64xf32>
    %182 = arith.mulf %181, %168 : vector<16x64xf32>
    %183 = arith.addf %182, %179 : vector<16x64xf32>
    %184 = vector.extract_strided_slice %98 {offsets = [0, 5], sizes = [16, 1], strides = [1, 1]} : vector<16x16xf32> to vector<16x1xf32>
    %185 = vector.broadcast %184 : vector<16x1xf32> to vector<16x64xf32>
    %186 = arith.mulf %185, %183 : vector<16x64xf32>
    %cst_63 = arith.constant dense<0.000000e+00> : vector<64xf32>
    %187 = vector.multi_reduction <add>, %186, %cst_63 [0] : vector<16x64xf32> to vector<64xf32>
    %188 = vector.shape_cast %187 : vector<64xf32> to vector<1x64xf32>
    %c5 = arith.constant 5 : index
    %c0_64 = arith.constant 0 : index
    %189 = vector.load %arg27[%c5, %c0_64] : memref<16x64xf32, #tpu.memory_space<vmem>>, vector<1x64xf32>
    tpu.vector_store %arg27[%c5, %c0_64], %188 {strides = array<i32>} : memref<16x64xf32, #tpu.memory_space<vmem>>, vector<1x64xf32>,
    %190 = vector.extract_strided_slice %97 {offsets = [0, 6], sizes = [16, 1], strides = [1, 1]} : vector<16x16xf32> to vector<16x1xf32>
    %191 = vector.extract_strided_slice %96 {offsets = [6, 0], sizes = [1, 64], strides = [1, 1]} : vector<16x64xf32> to vector<1x64xf32>
    %192 = vector.broadcast %190 : vector<16x1xf32> to vector<16x64xf32>
    %193 = vector.broadcast %191 : vector<1x64xf32> to vector<16x64xf32>
    %194 = arith.mulf %192, %193 : vector<16x64xf32>
    %195 = vector.extract_strided_slice %95 {offsets = [6, 0, 0], sizes = [1, 16, 64], strides = [1, 1, 1]} : vector<16x16x64xf32> to vector<1x16x64xf32>
    %196 = vector.shape_cast %195 : vector<1x16x64xf32> to vector<16x64xf32>
    %197 = arith.mulf %196, %183 : vector<16x64xf32>
    %198 = arith.addf %197, %194 : vector<16x64xf32>
    %199 = vector.extract_strided_slice %98 {offsets = [0, 6], sizes = [16, 1], strides = [1, 1]} : vector<16x16xf32> to vector<16x1xf32>
    %200 = vector.broadcast %199 : vector<16x1xf32> to vector<16x64xf32>
    %201 = arith.mulf %200, %198 : vector<16x64xf32>
    %cst_65 = arith.constant dense<0.000000e+00> : vector<64xf32>
    %202 = vector.multi_reduction <add>, %201, %cst_65 [0] : vector<16x64xf32> to vector<64xf32>
    %203 = vector.shape_cast %202 : vector<64xf32> to vector<1x64xf32>
    %c6 = arith.constant 6 : index
    %c0_66 = arith.constant 0 : index
    %204 = vector.load %arg27[%c6, %c0_66] : memref<16x64xf32, #tpu.memory_space<vmem>>, vector<1x64xf32>
    tpu.vector_store %arg27[%c6, %c0_66], %203 {strides = array<i32>} : memref<16x64xf32, #tpu.memory_space<vmem>>, vector<1x64xf32>,
    %205 = vector.extract_strided_slice %97 {offsets = [0, 7], sizes = [16, 1], strides = [1, 1]} : vector<16x16xf32> to vector<16x1xf32>
    %206 = vector.extract_strided_slice %96 {offsets = [7, 0], sizes = [1, 64], strides = [1, 1]} : vector<16x64xf32> to vector<1x64xf32>
    %207 = vector.broadcast %205 : vector<16x1xf32> to vector<16x64xf32>
    %208 = vector.broadcast %206 : vector<1x64xf32> to vector<16x64xf32>
    %209 = arith.mulf %207, %208 : vector<16x64xf32>
    %210 = vector.extract_strided_slice %95 {offsets = [7, 0, 0], sizes = [1, 16, 64], strides = [1, 1, 1]} : vector<16x16x64xf32> to vector<1x16x64xf32>
    %211 = vector.shape_cast %210 : vector<1x16x64xf32> to vector<16x64xf32>
    %212 = arith.mulf %211, %198 : vector<16x64xf32>
    %213 = arith.addf %212, %209 : vector<16x64xf32>
    %214 = vector.extract_strided_slice %98 {offsets = [0, 7], sizes = [16, 1], strides = [1, 1]} : vector<16x16xf32> to vector<16x1xf32>
    %215 = vector.broadcast %214 : vector<16x1xf32> to vector<16x64xf32>
    %216 = arith.mulf %215, %213 : vector<16x64xf32>
    %cst_67 = arith.constant dense<0.000000e+00> : vector<64xf32>
    %217 = vector.multi_reduction <add>, %216, %cst_67 [0] : vector<16x64xf32> to vector<64xf32>
    %218 = vector.shape_cast %217 : vector<64xf32> to vector<1x64xf32>
    %c7 = arith.constant 7 : index
    %c0_68 = arith.constant 0 : index
    %219 = vector.load %arg27[%c7, %c0_68] : memref<16x64xf32, #tpu.memory_space<vmem>>, vector<1x64xf32>
    tpu.vector_store %arg27[%c7, %c0_68], %218 {strides = array<i32>} : memref<16x64xf32, #tpu.memory_space<vmem>>, vector<1x64xf32>,
    %cst_69 = arith.constant 0.000000e+00 : f32
    %220 = vector.broadcast %cst_69 : f32 to vector<16x64xf32>
    %221 = vector.extract_strided_slice %97 {offsets = [0, 8], sizes = [16, 1], strides = [1, 1]} : vector<16x16xf32> to vector<16x1xf32>
    %222 = vector.extract_strided_slice %96 {offsets = [8, 0], sizes = [1, 64], strides = [1, 1]} : vector<16x64xf32> to vector<1x64xf32>
    %223 = vector.broadcast %221 : vector<16x1xf32> to vector<16x64xf32>
    %224 = vector.broadcast %222 : vector<1x64xf32> to vector<16x64xf32>
    %225 = arith.mulf %223, %224 : vector<16x64xf32>
    %226 = vector.extract_strided_slice %95 {offsets = [8, 0, 0], sizes = [1, 16, 64], strides = [1, 1, 1]} : vector<16x16x64xf32> to vector<1x16x64xf32>
    %227 = vector.shape_cast %226 : vector<1x16x64xf32> to vector<16x64xf32>
    %228 = arith.mulf %227, %220 : vector<16x64xf32>
    %229 = arith.addf %228, %225 : vector<16x64xf32>
    %230 = vector.extract_strided_slice %98 {offsets = [0, 8], sizes = [16, 1], strides = [1, 1]} : vector<16x16xf32> to vector<16x1xf32>
    %231 = vector.broadcast %230 : vector<16x1xf32> to vector<16x64xf32>
    %232 = arith.mulf %231, %229 : vector<16x64xf32>
    %cst_70 = arith.constant dense<0.000000e+00> : vector<64xf32>
    %233 = vector.multi_reduction <add>, %232, %cst_70 [0] : vector<16x64xf32> to vector<64xf32>
    %234 = vector.shape_cast %233 : vector<64xf32> to vector<1x64xf32>
    %c8 = arith.constant 8 : index
    %c0_71 = arith.constant 0 : index
    %235 = vector.load %arg27[%c8, %c0_71] : memref<16x64xf32, #tpu.memory_space<vmem>>, vector<1x64xf32>
    tpu.vector_store %arg27[%c8, %c0_71], %234 {strides = array<i32>} : memref<16x64xf32, #tpu.memory_space<vmem>>, vector<1x64xf32>,
    %236 = vector.extract_strided_slice %97 {offsets = [0, 9], sizes = [16, 1], strides = [1, 1]} : vector<16x16xf32> to vector<16x1xf32>
    %237 = vector.extract_strided_slice %96 {offsets = [9, 0], sizes = [1, 64], strides = [1, 1]} : vector<16x64xf32> to vector<1x64xf32>
    %238 = vector.broadcast %236 : vector<16x1xf32> to vector<16x64xf32>
    %239 = vector.broadcast %237 : vector<1x64xf32> to vector<16x64xf32>
    %240 = arith.mulf %238, %239 : vector<16x64xf32>
    %241 = vector.extract_strided_slice %95 {offsets = [9, 0, 0], sizes = [1, 16, 64], strides = [1, 1, 1]} : vector<16x16x64xf32> to vector<1x16x64xf32>
    %242 = vector.shape_cast %241 : vector<1x16x64xf32> to vector<16x64xf32>
    %243 = arith.mulf %242, %229 : vector<16x64xf32>
    %244 = arith.addf %243, %240 : vector<16x64xf32>
    %245 = vector.extract_strided_slice %98 {offsets = [0, 9], sizes = [16, 1], strides = [1, 1]} : vector<16x16xf32> to vector<16x1xf32>
    %246 = vector.broadcast %245 : vector<16x1xf32> to vector<16x64xf32>
    %247 = arith.mulf %246, %244 : vector<16x64xf32>
    %cst_72 = arith.constant dense<0.000000e+00> : vector<64xf32>
    %248 = vector.multi_reduction <add>, %247, %cst_72 [0] : vector<16x64xf32> to vector<64xf32>
    %249 = vector.shape_cast %248 : vector<64xf32> to vector<1x64xf32>
    %c9 = arith.constant 9 : index
    %c0_73 = arith.constant 0 : index
    %250 = vector.load %arg27[%c9, %c0_73] : memref<16x64xf32, #tpu.memory_space<vmem>>, vector<1x64xf32>
    tpu.vector_store %arg27[%c9, %c0_73], %249 {strides = array<i32>} : memref<16x64xf32, #tpu.memory_space<vmem>>, vector<1x64xf32>,
    %251 = vector.extract_strided_slice %97 {offsets = [0, 10], sizes = [16, 1], strides = [1, 1]} : vector<16x16xf32> to vector<16x1xf32>
    %252 = vector.extract_strided_slice %96 {offsets = [10, 0], sizes = [1, 64], strides = [1, 1]} : vector<16x64xf32> to vector<1x64xf32>
    %253 = vector.broadcast %251 : vector<16x1xf32> to vector<16x64xf32>
    %254 = vector.broadcast %252 : vector<1x64xf32> to vector<16x64xf32>
    %255 = arith.mulf %253, %254 : vector<16x64xf32>
    %256 = vector.extract_strided_slice %95 {offsets = [10, 0, 0], sizes = [1, 16, 64], strides = [1, 1, 1]} : vector<16x16x64xf32> to vector<1x16x64xf32>
    %257 = vector.shape_cast %256 : vector<1x16x64xf32> to vector<16x64xf32>
    %258 = arith.mulf %257, %244 : vector<16x64xf32>
    %259 = arith.addf %258, %255 : vector<16x64xf32>
    %260 = vector.extract_strided_slice %98 {offsets = [0, 10], sizes = [16, 1], strides = [1, 1]} : vector<16x16xf32> to vector<16x1xf32>
    %261 = vector.broadcast %260 : vector<16x1xf32> to vector<16x64xf32>
    %262 = arith.mulf %261, %259 : vector<16x64xf32>
    %cst_74 = arith.constant dense<0.000000e+00> : vector<64xf32>
    %263 = vector.multi_reduction <add>, %262, %cst_74 [0] : vector<16x64xf32> to vector<64xf32>
    %264 = vector.shape_cast %263 : vector<64xf32> to vector<1x64xf32>
    %c10 = arith.constant 10 : index
    %c0_75 = arith.constant 0 : index
    %265 = vector.load %arg27[%c10, %c0_75] : memref<16x64xf32, #tpu.memory_space<vmem>>, vector<1x64xf32>
    tpu.vector_store %arg27[%c10, %c0_75], %264 {strides = array<i32>} : memref<16x64xf32, #tpu.memory_space<vmem>>, vector<1x64xf32>,
    %266 = vector.extract_strided_slice %97 {offsets = [0, 11], sizes = [16, 1], strides = [1, 1]} : vector<16x16xf32> to vector<16x1xf32>
    %267 = vector.extract_strided_slice %96 {offsets = [11, 0], sizes = [1, 64], strides = [1, 1]} : vector<16x64xf32> to vector<1x64xf32>
    %268 = vector.broadcast %266 : vector<16x1xf32> to vector<16x64xf32>
    %269 = vector.broadcast %267 : vector<1x64xf32> to vector<16x64xf32>
    %270 = arith.mulf %268, %269 : vector<16x64xf32>
    %271 = vector.extract_strided_slice %95 {offsets = [11, 0, 0], sizes = [1, 16, 64], strides = [1, 1, 1]} : vector<16x16x64xf32> to vector<1x16x64xf32>
    %272 = vector.shape_cast %271 : vector<1x16x64xf32> to vector<16x64xf32>
    %273 = arith.mulf %272, %259 : vector<16x64xf32>
    %274 = arith.addf %273, %270 : vector<16x64xf32>
    %275 = vector.extract_strided_slice %98 {offsets = [0, 11], sizes = [16, 1], strides = [1, 1]} : vector<16x16xf32> to vector<16x1xf32>
    %276 = vector.broadcast %275 : vector<16x1xf32> to vector<16x64xf32>
    %277 = arith.mulf %276, %274 : vector<16x64xf32>
    %cst_76 = arith.constant dense<0.000000e+00> : vector<64xf32>
    %278 = vector.multi_reduction <add>, %277, %cst_76 [0] : vector<16x64xf32> to vector<64xf32>
    %279 = vector.shape_cast %278 : vector<64xf32> to vector<1x64xf32>
    %c11 = arith.constant 11 : index
    %c0_77 = arith.constant 0 : index
    %280 = vector.load %arg27[%c11, %c0_77] : memref<16x64xf32, #tpu.memory_space<vmem>>, vector<1x64xf32>
    tpu.vector_store %arg27[%c11, %c0_77], %279 {strides = array<i32>} : memref<16x64xf32, #tpu.memory_space<vmem>>, vector<1x64xf32>,
    %281 = vector.extract_strided_slice %97 {offsets = [0, 12], sizes = [16, 1], strides = [1, 1]} : vector<16x16xf32> to vector<16x1xf32>
    %282 = vector.extract_strided_slice %96 {offsets = [12, 0], sizes = [1, 64], strides = [1, 1]} : vector<16x64xf32> to vector<1x64xf32>
    %283 = vector.broadcast %281 : vector<16x1xf32> to vector<16x64xf32>
    %284 = vector.broadcast %282 : vector<1x64xf32> to vector<16x64xf32>
    %285 = arith.mulf %283, %284 : vector<16x64xf32>
    %286 = vector.extract_strided_slice %95 {offsets = [12, 0, 0], sizes = [1, 16, 64], strides = [1, 1, 1]} : vector<16x16x64xf32> to vector<1x16x64xf32>
    %287 = vector.shape_cast %286 : vector<1x16x64xf32> to vector<16x64xf32>
    %288 = arith.mulf %287, %274 : vector<16x64xf32>
    %289 = arith.addf %288, %285 : vector<16x64xf32>
    %290 = vector.extract_strided_slice %98 {offsets = [0, 12], sizes = [16, 1], strides = [1, 1]} : vector<16x16xf32> to vector<16x1xf32>
    %291 = vector.broadcast %290 : vector<16x1xf32> to vector<16x64xf32>
    %292 = arith.mulf %291, %289 : vector<16x64xf32>
    %cst_78 = arith.constant dense<0.000000e+00> : vector<64xf32>
    %293 = vector.multi_reduction <add>, %292, %cst_78 [0] : vector<16x64xf32> to vector<64xf32>
    %294 = vector.shape_cast %293 : vector<64xf32> to vector<1x64xf32>
    %c12 = arith.constant 12 : index
    %c0_79 = arith.constant 0 : index
    %295 = vector.load %arg27[%c12, %c0_79] : memref<16x64xf32, #tpu.memory_space<vmem>>, vector<1x64xf32>
    tpu.vector_store %arg27[%c12, %c0_79], %294 {strides = array<i32>} : memref<16x64xf32, #tpu.memory_space<vmem>>, vector<1x64xf32>,
    %296 = vector.extract_strided_slice %97 {offsets = [0, 13], sizes = [16, 1], strides = [1, 1]} : vector<16x16xf32> to vector<16x1xf32>
    %297 = vector.extract_strided_slice %96 {offsets = [13, 0], sizes = [1, 64], strides = [1, 1]} : vector<16x64xf32> to vector<1x64xf32>
    %298 = vector.broadcast %296 : vector<16x1xf32> to vector<16x64xf32>
    %299 = vector.broadcast %297 : vector<1x64xf32> to vector<16x64xf32>
    %300 = arith.mulf %298, %299 : vector<16x64xf32>
    %301 = vector.extract_strided_slice %95 {offsets = [13, 0, 0], sizes = [1, 16, 64], strides = [1, 1, 1]} : vector<16x16x64xf32> to vector<1x16x64xf32>
    %302 = vector.shape_cast %301 : vector<1x16x64xf32> to vector<16x64xf32>
    %303 = arith.mulf %302, %289 : vector<16x64xf32>
    %304 = arith.addf %303, %300 : vector<16x64xf32>
    %305 = vector.extract_strided_slice %98 {offsets = [0, 13], sizes = [16, 1], strides = [1, 1]} : vector<16x16xf32> to vector<16x1xf32>
    %306 = vector.broadcast %305 : vector<16x1xf32> to vector<16x64xf32>
    %307 = arith.mulf %306, %304 : vector<16x64xf32>
    %cst_80 = arith.constant dense<0.000000e+00> : vector<64xf32>
    %308 = vector.multi_reduction <add>, %307, %cst_80 [0] : vector<16x64xf32> to vector<64xf32>
    %309 = vector.shape_cast %308 : vector<64xf32> to vector<1x64xf32>
    %c13 = arith.constant 13 : index
    %c0_81 = arith.constant 0 : index
    %310 = vector.load %arg27[%c13, %c0_81] : memref<16x64xf32, #tpu.memory_space<vmem>>, vector<1x64xf32>
    tpu.vector_store %arg27[%c13, %c0_81], %309 {strides = array<i32>} : memref<16x64xf32, #tpu.memory_space<vmem>>, vector<1x64xf32>,
    %311 = vector.extract_strided_slice %97 {offsets = [0, 14], sizes = [16, 1], strides = [1, 1]} : vector<16x16xf32> to vector<16x1xf32>
    %312 = vector.extract_strided_slice %96 {offsets = [14, 0], sizes = [1, 64], strides = [1, 1]} : vector<16x64xf32> to vector<1x64xf32>
    %313 = vector.broadcast %311 : vector<16x1xf32> to vector<16x64xf32>
    %314 = vector.broadcast %312 : vector<1x64xf32> to vector<16x64xf32>
    %315 = arith.mulf %313, %314 : vector<16x64xf32>
    %316 = vector.extract_strided_slice %95 {offsets = [14, 0, 0], sizes = [1, 16, 64], strides = [1, 1, 1]} : vector<16x16x64xf32> to vector<1x16x64xf32>
    %317 = vector.shape_cast %316 : vector<1x16x64xf32> to vector<16x64xf32>
    %318 = arith.mulf %317, %304 : vector<16x64xf32>
    %319 = arith.addf %318, %315 : vector<16x64xf32>
    %320 = vector.extract_strided_slice %98 {offsets = [0, 14], sizes = [16, 1], strides = [1, 1]} : vector<16x16xf32> to vector<16x1xf32>
    %321 = vector.broadcast %320 : vector<16x1xf32> to vector<16x64xf32>
    %322 = arith.mulf %321, %319 : vector<16x64xf32>
    %cst_82 = arith.constant dense<0.000000e+00> : vector<64xf32>
    %323 = vector.multi_reduction <add>, %322, %cst_82 [0] : vector<16x64xf32> to vector<64xf32>
    %324 = vector.shape_cast %323 : vector<64xf32> to vector<1x64xf32>
    %c14 = arith.constant 14 : index
    %c0_83 = arith.constant 0 : index
    %325 = vector.load %arg27[%c14, %c0_83] : memref<16x64xf32, #tpu.memory_space<vmem>>, vector<1x64xf32>
    tpu.vector_store %arg27[%c14, %c0_83], %324 {strides = array<i32>} : memref<16x64xf32, #tpu.memory_space<vmem>>, vector<1x64xf32>,
    %326 = vector.extract_strided_slice %97 {offsets = [0, 15], sizes = [16, 1], strides = [1, 1]} : vector<16x16xf32> to vector<16x1xf32>
    %327 = vector.extract_strided_slice %96 {offsets = [15, 0], sizes = [1, 64], strides = [1, 1]} : vector<16x64xf32> to vector<1x64xf32>
    %328 = vector.broadcast %326 : vector<16x1xf32> to vector<16x64xf32>
    %329 = vector.broadcast %327 : vector<1x64xf32> to vector<16x64xf32>
    %330 = arith.mulf %328, %329 : vector<16x64xf32>
    %331 = vector.extract_strided_slice %95 {offsets = [15, 0, 0], sizes = [1, 16, 64], strides = [1, 1, 1]} : vector<16x16x64xf32> to vector<1x16x64xf32>
    %332 = vector.shape_cast %331 : vector<1x16x64xf32> to vector<16x64xf32>
    %333 = arith.mulf %332, %319 : vector<16x64xf32>
    %334 = arith.addf %333, %330 : vector<16x64xf32>
    %335 = vector.extract_strided_slice %98 {offsets = [0, 15], sizes = [16, 1], strides = [1, 1]} : vector<16x16xf32> to vector<16x1xf32>
    %336 = vector.broadcast %335 : vector<16x1xf32> to vector<16x64xf32>
    %337 = arith.mulf %336, %334 : vector<16x64xf32>
    %cst_84 = arith.constant dense<0.000000e+00> : vector<64xf32>
    %338 = vector.multi_reduction <add>, %337, %cst_84 [0] : vector<16x64xf32> to vector<64xf32>
    %339 = vector.shape_cast %338 : vector<64xf32> to vector<1x64xf32>
    %c15 = arith.constant 15 : index
    %c0_85 = arith.constant 0 : index
    %340 = vector.load %arg27[%c15, %c0_85] : memref<16x64xf32, #tpu.memory_space<vmem>>, vector<1x64xf32>
    tpu.vector_store %arg27[%c15, %c0_85], %339 {strides = array<i32>} : memref<16x64xf32, #tpu.memory_space<vmem>>, vector<1x64xf32>,
    %c0_86 = arith.constant 0 : index
    %c0_87 = arith.constant 0 : index
    %341 = vector.load %arg27[%c0_86, %c0_87] : memref<16x64xf32, #tpu.memory_space<vmem>>, vector<16x64xf32>
    %c0_88 = arith.constant 0 : index
    %c0_89 = arith.constant 0 : index
    %342 = vector.load %arg10[%c0_88, %c0_89] : memref<1x64xf32, #tpu.memory_space<vmem>>, vector<1x64xf32>
    %343 = vector.broadcast %342 : vector<1x64xf32> to vector<16x64xf32>
    %344 = arith.mulf %70, %343 : vector<16x64xf32>
    %345 = arith.addf %341, %344 : vector<16x64xf32>
    %cst_90 = arith.constant 0.000000e+00 : f32
    %346 = vector.broadcast %cst_90 : f32 to vector<16x64xf32>
    %347 = arith.subf %346, %30 : vector<16x64xf32>
    %348 = math.exp %347 : vector<16x64xf32>
    %cst_91 = arith.constant 1.000000e+00 : f32
    %349 = vector.broadcast %cst_91 : f32 to vector<16x64xf32>
    %350 = arith.addf %349, %348 : vector<16x64xf32>
    %cst_92 = arith.constant 1.000000e+00 : f32
    %351 = vector.broadcast %cst_92 : f32 to vector<16x64xf32>
    %352 = arith.divf %351, %350 : vector<16x64xf32>
    %353 = arith.mulf %30, %352 : vector<16x64xf32>
    %354 = arith.mulf %345, %353 : vector<16x64xf32>
    %c0_93 = arith.constant 0 : index
    %c0_94 = arith.constant 0 : index
    %355 = vector.load %arg11[%c0_93, %c0_94] : memref<64x32xf32, #tpu.memory_space<vmem>>, vector<64x32xf32>
    %cst_95 = arith.constant dense<0.000000e+00> : vector<16x32xf32>
    %356 = tpu.matmul %354, %355, %cst_95 {dimension_numbers = #tpu.dot_dimension_numbers<[1], [0], [0], [1], [0, 0, 1, 1], [], []>} : vector<16x64xf32>, vector<64x32xf32>, vector<16x32xf32> -> vector<16x32xf32>
    %357 = arith.addf %356, %2 : vector<16x32xf32>
    %cst_96 = arith.constant dense<0.000000e+00> : vector<16xf32>
    %358 = vector.multi_reduction <add>, %357, %cst_96 [1] : vector<16x32xf32> to vector<16xf32>
    %359 = vector.shape_cast %358 : vector<16xf32> to vector<16x1xf32>
    %cst_97 = arith.constant 3.200000e+01 : f32
    %360 = vector.broadcast %cst_97 : f32 to vector<16x1xf32>
    %361 = arith.divf %359, %360 : vector<16x1xf32>
    %362 = vector.broadcast %361 : vector<16x1xf32> to vector<16x32xf32>
    %363 = arith.subf %357, %362 : vector<16x32xf32>
    %364 = arith.mulf %363, %363 : vector<16x32xf32>
    %cst_98 = arith.constant dense<0.000000e+00> : vector<16xf32>
    %365 = vector.multi_reduction <add>, %364, %cst_98 [1] : vector<16x32xf32> to vector<16xf32>
    %366 = vector.shape_cast %365 : vector<16xf32> to vector<16x1xf32>
    %cst_99 = arith.constant 3.200000e+01 : f32
    %367 = vector.broadcast %cst_99 : f32 to vector<16x1xf32>
    %368 = arith.divf %366, %367 : vector<16x1xf32>
    %369 = vector.broadcast %361 : vector<16x1xf32> to vector<16x32xf32>
    %370 = arith.subf %357, %369 : vector<16x32xf32>
    %cst_100 = arith.constant 9.99999974E-6 : f32
    %371 = vector.broadcast %cst_100 : f32 to vector<16x1xf32>
    %372 = arith.addf %368, %371 : vector<16x1xf32>
    %373 = math.rsqrt %372 : vector<16x1xf32>
    %374 = vector.broadcast %373 : vector<16x1xf32> to vector<16x32xf32>
    %375 = arith.mulf %370, %374 : vector<16x32xf32>
    %c0_101 = arith.constant 0 : index
    %c0_102 = arith.constant 0 : index
    %376 = vector.load %arg12[%c0_101, %c0_102] : memref<1x32xf32, #tpu.memory_space<vmem>>, vector<1x32xf32>
    %377 = vector.broadcast %376 : vector<1x32xf32> to vector<16x32xf32>
    %378 = arith.mulf %375, %377 : vector<16x32xf32>
    %c0_103 = arith.constant 0 : index
    %c0_104 = arith.constant 0 : index
    %379 = vector.load %arg13[%c0_103, %c0_104] : memref<1x32xf32, #tpu.memory_space<vmem>>, vector<1x32xf32>
    %380 = vector.broadcast %379 : vector<1x32xf32> to vector<16x32xf32>
    %381 = arith.addf %378, %380 : vector<16x32xf32>
    %c0_105 = arith.constant 0 : index
    %c0_106 = arith.constant 0 : index
    %382 = vector.load %arg14[%c0_105, %c0_106] : memref<32x128xf32, #tpu.memory_space<vmem>>, vector<32x128xf32>
    %cst_107 = arith.constant dense<0.000000e+00> : vector<16x128xf32>
    %383 = tpu.matmul %381, %382, %cst_107 {dimension_numbers = #tpu.dot_dimension_numbers<[1], [0], [0], [1], [0, 0, 1, 1], [], []>} : vector<16x32xf32>, vector<32x128xf32>, vector<16x128xf32> -> vector<16x128xf32>
    %384 = vector.extract_strided_slice %383 {offsets = [0, 0], sizes = [16, 64], strides = [1, 1]} : vector<16x128xf32> to vector<16x64xf32>
    %385 = vector.extract_strided_slice %383 {offsets = [0, 64], sizes = [16, 64], strides = [1, 1]} : vector<16x128xf32> to vector<16x64xf32>
    %386 = vector.shape_cast %384 : vector<16x64xf32> to vector<2x8x64xf32>
    %c0_108 = arith.constant 0 : index
    %c3_109 = arith.constant 3 : index
    %c0_110 = arith.constant 0 : index
    %387 = vector.load %arg26[%c0_108, %c3_109, %c0_110] : memref<2x11x64xf32, #tpu.memory_space<vmem>>, vector<2x8x64xf32>
    tpu.vector_store %arg26[%c0_108, %c3_109, %c0_110], %386 {strides = array<i32>} : memref<2x11x64xf32, #tpu.memory_space<vmem>>, vector<2x8x64xf32>,
    %c0_111 = arith.constant 0 : index
    %c0_112 = arith.constant 0 : index
    %388 = vector.load %arg15[%c0_111, %c0_112] : memref<4x64xf32, #tpu.memory_space<vmem>>, vector<4x64xf32>
    %cst_113 = arith.constant 0.000000e+00 : f32
    %389 = vector.broadcast %cst_113 : f32 to vector<2x8x64xf32>
    %c0_114 = arith.constant 0 : index
    %c0_115 = arith.constant 0 : index
    %c0_116 = arith.constant 0 : index
    %390 = vector.load %arg26[%c0_114, %c0_115, %c0_116] : memref<2x11x64xf32, #tpu.memory_space<vmem>>, vector<2x8x64xf32>
    %391 = vector.extract_strided_slice %388 {offsets = [0, 0], sizes = [1, 64], strides = [1, 1]} : vector<4x64xf32> to vector<1x64xf32>
    %392 = vector.shape_cast %391 : vector<1x64xf32> to vector<1x1x64xf32>
    %393 = vector.broadcast %392 : vector<1x1x64xf32> to vector<2x8x64xf32>
    %394 = arith.mulf %390, %393 : vector<2x8x64xf32>
    %395 = arith.addf %389, %394 : vector<2x8x64xf32>
    %c0_117 = arith.constant 0 : index
    %c1_118 = arith.constant 1 : index
    %c0_119 = arith.constant 0 : index
    %396 = vector.load %arg26[%c0_117, %c1_118, %c0_119] : memref<2x11x64xf32, #tpu.memory_space<vmem>>, vector<2x8x64xf32>
    %397 = vector.extract_strided_slice %388 {offsets = [1, 0], sizes = [1, 64], strides = [1, 1]} : vector<4x64xf32> to vector<1x64xf32>
    %398 = vector.shape_cast %397 : vector<1x64xf32> to vector<1x1x64xf32>
    %399 = vector.broadcast %398 : vector<1x1x64xf32> to vector<2x8x64xf32>
    %400 = arith.mulf %396, %399 : vector<2x8x64xf32>
    %401 = arith.addf %395, %400 : vector<2x8x64xf32>
    %c0_120 = arith.constant 0 : index
    %c2_121 = arith.constant 2 : index
    %c0_122 = arith.constant 0 : index
    %402 = vector.load %arg26[%c0_120, %c2_121, %c0_122] : memref<2x11x64xf32, #tpu.memory_space<vmem>>, vector<2x8x64xf32>
    %403 = vector.extract_strided_slice %388 {offsets = [2, 0], sizes = [1, 64], strides = [1, 1]} : vector<4x64xf32> to vector<1x64xf32>
    %404 = vector.shape_cast %403 : vector<1x64xf32> to vector<1x1x64xf32>
    %405 = vector.broadcast %404 : vector<1x1x64xf32> to vector<2x8x64xf32>
    %406 = arith.mulf %402, %405 : vector<2x8x64xf32>
    %407 = arith.addf %401, %406 : vector<2x8x64xf32>
    %c0_123 = arith.constant 0 : index
    %c3_124 = arith.constant 3 : index
    %c0_125 = arith.constant 0 : index
    %408 = vector.load %arg26[%c0_123, %c3_124, %c0_125] : memref<2x11x64xf32, #tpu.memory_space<vmem>>, vector<2x8x64xf32>
    %409 = vector.extract_strided_slice %388 {offsets = [3, 0], sizes = [1, 64], strides = [1, 1]} : vector<4x64xf32> to vector<1x64xf32>
    %410 = vector.shape_cast %409 : vector<1x64xf32> to vector<1x1x64xf32>
    %411 = vector.broadcast %410 : vector<1x1x64xf32> to vector<2x8x64xf32>
    %412 = arith.mulf %408, %411 : vector<2x8x64xf32>
    %413 = arith.addf %407, %412 : vector<2x8x64xf32>
    %414 = vector.shape_cast %413 : vector<2x8x64xf32> to vector<16x64xf32>
    %c0_126 = arith.constant 0 : index
    %c0_127 = arith.constant 0 : index
    %415 = vector.load %arg16[%c0_126, %c0_127] : memref<1x64xf32, #tpu.memory_space<vmem>>, vector<1x64xf32>
    %416 = vector.broadcast %415 : vector<1x64xf32> to vector<16x64xf32>
    %417 = arith.addf %414, %416 : vector<16x64xf32>
    %cst_128 = arith.constant 0.000000e+00 : f32
    %418 = vector.broadcast %cst_128 : f32 to vector<16x64xf32>
    %419 = arith.subf %418, %417 : vector<16x64xf32>
    %420 = math.exp %419 : vector<16x64xf32>
    %cst_129 = arith.constant 1.000000e+00 : f32
    %421 = vector.broadcast %cst_129 : f32 to vector<16x64xf32>
    %422 = arith.addf %421, %420 : vector<16x64xf32>
    %cst_130 = arith.constant 1.000000e+00 : f32
    %423 = vector.broadcast %cst_130 : f32 to vector<16x64xf32>
    %424 = arith.divf %423, %422 : vector<16x64xf32>
    %425 = arith.mulf %417, %424 : vector<16x64xf32>
    %c0_131 = arith.constant 0 : index
    %c0_132 = arith.constant 0 : index
    %426 = vector.load %arg17[%c0_131, %c0_132] : memref<64x34xf32, #tpu.memory_space<vmem>>, vector<64x34xf32>
    %cst_133 = arith.constant dense<0.000000e+00> : vector<16x34xf32>
    %427 = tpu.matmul %425, %426, %cst_133 {dimension_numbers = #tpu.dot_dimension_numbers<[1], [0], [0], [1], [0, 0, 1, 1], [], []>} : vector<16x64xf32>, vector<64x34xf32>, vector<16x34xf32> -> vector<16x34xf32>
    %428 = vector.extract_strided_slice %427 {offsets = [0, 0], sizes = [16, 2], strides = [1, 1]} : vector<16x34xf32> to vector<16x2xf32>
    %429 = vector.extract_strided_slice %427 {offsets = [0, 2], sizes = [16, 16], strides = [1, 1]} : vector<16x34xf32> to vector<16x16xf32>
    %430 = vector.extract_strided_slice %427 {offsets = [0, 18], sizes = [16, 16], strides = [1, 1]} : vector<16x34xf32> to vector<16x16xf32>
    %c0_134 = arith.constant 0 : index
    %c0_135 = arith.constant 0 : index
    %431 = vector.load %arg18[%c0_134, %c0_135] : memref<2x64xf32, #tpu.memory_space<vmem>>, vector<2x64xf32>
    %cst_136 = arith.constant dense<0.000000e+00> : vector<16x64xf32>
    %432 = tpu.matmul %428, %431, %cst_136 {dimension_numbers = #tpu.dot_dimension_numbers<[1], [0], [0], [1], [0, 0, 1, 1], [], []>} : vector<16x2xf32>, vector<2x64xf32>, vector<16x64xf32> -> vector<16x64xf32>
    %c0_137 = arith.constant 0 : index
    %c0_138 = arith.constant 0 : index
    %433 = vector.load %arg19[%c0_137, %c0_138] : memref<1x64xf32, #tpu.memory_space<vmem>>, vector<1x64xf32>
    %434 = vector.broadcast %433 : vector<1x64xf32> to vector<16x64xf32>
    %435 = arith.addf %432, %434 : vector<16x64xf32>
    %cst_139 = arith.constant 0.000000e+00 : f32
    %436 = vector.broadcast %cst_139 : f32 to vector<16x64xf32>
    %437 = arith.maximumf %435, %436 : vector<16x64xf32>
    %438 = math.absf %435 : vector<16x64xf32>
    %cst_140 = arith.constant 0.000000e+00 : f32
    %439 = vector.broadcast %cst_140 : f32 to vector<16x64xf32>
    %440 = arith.subf %439, %438 : vector<16x64xf32>
    %441 = math.exp %440 : vector<16x64xf32>
    %442 = math.log1p %441 : vector<16x64xf32>
    %443 = arith.addf %437, %442 : vector<16x64xf32>
    %c0_141 = arith.constant 0 : index
    %c0_142 = arith.constant 0 : index
    %444 = vector.load %arg20[%c0_141, %c0_142] : memref<16x64xf32, #tpu.memory_space<vmem>>, vector<16x64xf32>
    %445 = vector.shape_cast %443 : vector<16x64xf32> to vector<16x1x64xf32>
    %446 = vector.shape_cast %444 : vector<16x64xf32> to vector<1x16x64xf32>
    %447 = vector.broadcast %445 : vector<16x1x64xf32> to vector<16x16x64xf32>
    %448 = vector.broadcast %446 : vector<1x16x64xf32> to vector<16x16x64xf32>
    %449 = arith.mulf %447, %448 : vector<16x16x64xf32>
    %450 = math.exp %449 : vector<16x16x64xf32>
    %451 = arith.mulf %443, %425 : vector<16x64xf32>
    %452 = tpu.transpose %429, [1, 0] : vector<16x16xf32> -> vector<16x16xf32>
    %453 = tpu.transpose %430, [1, 0] : vector<16x16xf32> -> vector<16x16xf32>
    %cst_143 = arith.constant 0.000000e+00 : f32
    %454 = vector.broadcast %cst_143 : f32 to vector<16x64xf32>
    %455 = vector.extract_strided_slice %452 {offsets = [0, 0], sizes = [16, 1], strides = [1, 1]} : vector<16x16xf32> to vector<16x1xf32>
    %456 = vector.extract_strided_slice %451 {offsets = [0, 0], sizes = [1, 64], strides = [1, 1]} : vector<16x64xf32> to vector<1x64xf32>
    %457 = vector.broadcast %455 : vector<16x1xf32> to vector<16x64xf32>
    %458 = vector.broadcast %456 : vector<1x64xf32> to vector<16x64xf32>
    %459 = arith.mulf %457, %458 : vector<16x64xf32>
    %460 = vector.extract_strided_slice %450 {offsets = [0, 0, 0], sizes = [1, 16, 64], strides = [1, 1, 1]} : vector<16x16x64xf32> to vector<1x16x64xf32>
    %461 = vector.shape_cast %460 : vector<1x16x64xf32> to vector<16x64xf32>
    %462 = arith.mulf %461, %454 : vector<16x64xf32>
    %463 = arith.addf %462, %459 : vector<16x64xf32>
    %464 = vector.extract_strided_slice %453 {offsets = [0, 0], sizes = [16, 1], strides = [1, 1]} : vector<16x16xf32> to vector<16x1xf32>
    %465 = vector.broadcast %464 : vector<16x1xf32> to vector<16x64xf32>
    %466 = arith.mulf %465, %463 : vector<16x64xf32>
    %cst_144 = arith.constant dense<0.000000e+00> : vector<64xf32>
    %467 = vector.multi_reduction <add>, %466, %cst_144 [0] : vector<16x64xf32> to vector<64xf32>
    %468 = vector.shape_cast %467 : vector<64xf32> to vector<1x64xf32>
    %c0_145 = arith.constant 0 : index
    %c0_146 = arith.constant 0 : index
    %469 = vector.load %arg27[%c0_145, %c0_146] : memref<16x64xf32, #tpu.memory_space<vmem>>, vector<1x64xf32>
    tpu.vector_store %arg27[%c0_145, %c0_146], %468 {strides = array<i32>} : memref<16x64xf32, #tpu.memory_space<vmem>>, vector<1x64xf32>,
    %470 = vector.extract_strided_slice %452 {offsets = [0, 1], sizes = [16, 1], strides = [1, 1]} : vector<16x16xf32> to vector<16x1xf32>
    %471 = vector.extract_strided_slice %451 {offsets = [1, 0], sizes = [1, 64], strides = [1, 1]} : vector<16x64xf32> to vector<1x64xf32>
    %472 = vector.broadcast %470 : vector<16x1xf32> to vector<16x64xf32>
    %473 = vector.broadcast %471 : vector<1x64xf32> to vector<16x64xf32>
    %474 = arith.mulf %472, %473 : vector<16x64xf32>
    %475 = vector.extract_strided_slice %450 {offsets = [1, 0, 0], sizes = [1, 16, 64], strides = [1, 1, 1]} : vector<16x16x64xf32> to vector<1x16x64xf32>
    %476 = vector.shape_cast %475 : vector<1x16x64xf32> to vector<16x64xf32>
    %477 = arith.mulf %476, %463 : vector<16x64xf32>
    %478 = arith.addf %477, %474 : vector<16x64xf32>
    %479 = vector.extract_strided_slice %453 {offsets = [0, 1], sizes = [16, 1], strides = [1, 1]} : vector<16x16xf32> to vector<16x1xf32>
    %480 = vector.broadcast %479 : vector<16x1xf32> to vector<16x64xf32>
    %481 = arith.mulf %480, %478 : vector<16x64xf32>
    %cst_147 = arith.constant dense<0.000000e+00> : vector<64xf32>
    %482 = vector.multi_reduction <add>, %481, %cst_147 [0] : vector<16x64xf32> to vector<64xf32>
    %483 = vector.shape_cast %482 : vector<64xf32> to vector<1x64xf32>
    %c1_148 = arith.constant 1 : index
    %c0_149 = arith.constant 0 : index
    %484 = vector.load %arg27[%c1_148, %c0_149] : memref<16x64xf32, #tpu.memory_space<vmem>>, vector<1x64xf32>
    tpu.vector_store %arg27[%c1_148, %c0_149], %483 {strides = array<i32>} : memref<16x64xf32, #tpu.memory_space<vmem>>, vector<1x64xf32>,
    %485 = vector.extract_strided_slice %452 {offsets = [0, 2], sizes = [16, 1], strides = [1, 1]} : vector<16x16xf32> to vector<16x1xf32>
    %486 = vector.extract_strided_slice %451 {offsets = [2, 0], sizes = [1, 64], strides = [1, 1]} : vector<16x64xf32> to vector<1x64xf32>
    %487 = vector.broadcast %485 : vector<16x1xf32> to vector<16x64xf32>
    %488 = vector.broadcast %486 : vector<1x64xf32> to vector<16x64xf32>
    %489 = arith.mulf %487, %488 : vector<16x64xf32>
    %490 = vector.extract_strided_slice %450 {offsets = [2, 0, 0], sizes = [1, 16, 64], strides = [1, 1, 1]} : vector<16x16x64xf32> to vector<1x16x64xf32>
    %491 = vector.shape_cast %490 : vector<1x16x64xf32> to vector<16x64xf32>
    %492 = arith.mulf %491, %478 : vector<16x64xf32>
    %493 = arith.addf %492, %489 : vector<16x64xf32>
    %494 = vector.extract_strided_slice %453 {offsets = [0, 2], sizes = [16, 1], strides = [1, 1]} : vector<16x16xf32> to vector<16x1xf32>
    %495 = vector.broadcast %494 : vector<16x1xf32> to vector<16x64xf32>
    %496 = arith.mulf %495, %493 : vector<16x64xf32>
    %cst_150 = arith.constant dense<0.000000e+00> : vector<64xf32>
    %497 = vector.multi_reduction <add>, %496, %cst_150 [0] : vector<16x64xf32> to vector<64xf32>
    %498 = vector.shape_cast %497 : vector<64xf32> to vector<1x64xf32>
    %c2_151 = arith.constant 2 : index
    %c0_152 = arith.constant 0 : index
    %499 = vector.load %arg27[%c2_151, %c0_152] : memref<16x64xf32, #tpu.memory_space<vmem>>, vector<1x64xf32>
    tpu.vector_store %arg27[%c2_151, %c0_152], %498 {strides = array<i32>} : memref<16x64xf32, #tpu.memory_space<vmem>>, vector<1x64xf32>,
    %500 = vector.extract_strided_slice %452 {offsets = [0, 3], sizes = [16, 1], strides = [1, 1]} : vector<16x16xf32> to vector<16x1xf32>
    %501 = vector.extract_strided_slice %451 {offsets = [3, 0], sizes = [1, 64], strides = [1, 1]} : vector<16x64xf32> to vector<1x64xf32>
    %502 = vector.broadcast %500 : vector<16x1xf32> to vector<16x64xf32>
    %503 = vector.broadcast %501 : vector<1x64xf32> to vector<16x64xf32>
    %504 = arith.mulf %502, %503 : vector<16x64xf32>
    %505 = vector.extract_strided_slice %450 {offsets = [3, 0, 0], sizes = [1, 16, 64], strides = [1, 1, 1]} : vector<16x16x64xf32> to vector<1x16x64xf32>
    %506 = vector.shape_cast %505 : vector<1x16x64xf32> to vector<16x64xf32>
    %507 = arith.mulf %506, %493 : vector<16x64xf32>
    %508 = arith.addf %507, %504 : vector<16x64xf32>
    %509 = vector.extract_strided_slice %453 {offsets = [0, 3], sizes = [16, 1], strides = [1, 1]} : vector<16x16xf32> to vector<16x1xf32>
    %510 = vector.broadcast %509 : vector<16x1xf32> to vector<16x64xf32>
    %511 = arith.mulf %510, %508 : vector<16x64xf32>
    %cst_153 = arith.constant dense<0.000000e+00> : vector<64xf32>
    %512 = vector.multi_reduction <add>, %511, %cst_153 [0] : vector<16x64xf32> to vector<64xf32>
    %513 = vector.shape_cast %512 : vector<64xf32> to vector<1x64xf32>
    %c3_154 = arith.constant 3 : index
    %c0_155 = arith.constant 0 : index
    %514 = vector.load %arg27[%c3_154, %c0_155] : memref<16x64xf32, #tpu.memory_space<vmem>>, vector<1x64xf32>
    tpu.vector_store %arg27[%c3_154, %c0_155], %513 {strides = array<i32>} : memref<16x64xf32, #tpu.memory_space<vmem>>, vector<1x64xf32>,
    %515 = vector.extract_strided_slice %452 {offsets = [0, 4], sizes = [16, 1], strides = [1, 1]} : vector<16x16xf32> to vector<16x1xf32>
    %516 = vector.extract_strided_slice %451 {offsets = [4, 0], sizes = [1, 64], strides = [1, 1]} : vector<16x64xf32> to vector<1x64xf32>
    %517 = vector.broadcast %515 : vector<16x1xf32> to vector<16x64xf32>
    %518 = vector.broadcast %516 : vector<1x64xf32> to vector<16x64xf32>
    %519 = arith.mulf %517, %518 : vector<16x64xf32>
    %520 = vector.extract_strided_slice %450 {offsets = [4, 0, 0], sizes = [1, 16, 64], strides = [1, 1, 1]} : vector<16x16x64xf32> to vector<1x16x64xf32>
    %521 = vector.shape_cast %520 : vector<1x16x64xf32> to vector<16x64xf32>
    %522 = arith.mulf %521, %508 : vector<16x64xf32>
    %523 = arith.addf %522, %519 : vector<16x64xf32>
    %524 = vector.extract_strided_slice %453 {offsets = [0, 4], sizes = [16, 1], strides = [1, 1]} : vector<16x16xf32> to vector<16x1xf32>
    %525 = vector.broadcast %524 : vector<16x1xf32> to vector<16x64xf32>
    %526 = arith.mulf %525, %523 : vector<16x64xf32>
    %cst_156 = arith.constant dense<0.000000e+00> : vector<64xf32>
    %527 = vector.multi_reduction <add>, %526, %cst_156 [0] : vector<16x64xf32> to vector<64xf32>
    %528 = vector.shape_cast %527 : vector<64xf32> to vector<1x64xf32>
    %c4_157 = arith.constant 4 : index
    %c0_158 = arith.constant 0 : index
    %529 = vector.load %arg27[%c4_157, %c0_158] : memref<16x64xf32, #tpu.memory_space<vmem>>, vector<1x64xf32>
    tpu.vector_store %arg27[%c4_157, %c0_158], %528 {strides = array<i32>} : memref<16x64xf32, #tpu.memory_space<vmem>>, vector<1x64xf32>,
    %530 = vector.extract_strided_slice %452 {offsets = [0, 5], sizes = [16, 1], strides = [1, 1]} : vector<16x16xf32> to vector<16x1xf32>
    %531 = vector.extract_strided_slice %451 {offsets = [5, 0], sizes = [1, 64], strides = [1, 1]} : vector<16x64xf32> to vector<1x64xf32>
    %532 = vector.broadcast %530 : vector<16x1xf32> to vector<16x64xf32>
    %533 = vector.broadcast %531 : vector<1x64xf32> to vector<16x64xf32>
    %534 = arith.mulf %532, %533 : vector<16x64xf32>
    %535 = vector.extract_strided_slice %450 {offsets = [5, 0, 0], sizes = [1, 16, 64], strides = [1, 1, 1]} : vector<16x16x64xf32> to vector<1x16x64xf32>
    %536 = vector.shape_cast %535 : vector<1x16x64xf32> to vector<16x64xf32>
    %537 = arith.mulf %536, %523 : vector<16x64xf32>
    %538 = arith.addf %537, %534 : vector<16x64xf32>
    %539 = vector.extract_strided_slice %453 {offsets = [0, 5], sizes = [16, 1], strides = [1, 1]} : vector<16x16xf32> to vector<16x1xf32>
    %540 = vector.broadcast %539 : vector<16x1xf32> to vector<16x64xf32>
    %541 = arith.mulf %540, %538 : vector<16x64xf32>
    %cst_159 = arith.constant dense<0.000000e+00> : vector<64xf32>
    %542 = vector.multi_reduction <add>, %541, %cst_159 [0] : vector<16x64xf32> to vector<64xf32>
    %543 = vector.shape_cast %542 : vector<64xf32> to vector<1x64xf32>
    %c5_160 = arith.constant 5 : index
    %c0_161 = arith.constant 0 : index
    %544 = vector.load %arg27[%c5_160, %c0_161] : memref<16x64xf32, #tpu.memory_space<vmem>>, vector<1x64xf32>
    tpu.vector_store %arg27[%c5_160, %c0_161], %543 {strides = array<i32>} : memref<16x64xf32, #tpu.memory_space<vmem>>, vector<1x64xf32>,
    %545 = vector.extract_strided_slice %452 {offsets = [0, 6], sizes = [16, 1], strides = [1, 1]} : vector<16x16xf32> to vector<16x1xf32>
    %546 = vector.extract_strided_slice %451 {offsets = [6, 0], sizes = [1, 64], strides = [1, 1]} : vector<16x64xf32> to vector<1x64xf32>
    %547 = vector.broadcast %545 : vector<16x1xf32> to vector<16x64xf32>
    %548 = vector.broadcast %546 : vector<1x64xf32> to vector<16x64xf32>
    %549 = arith.mulf %547, %548 : vector<16x64xf32>
    %550 = vector.extract_strided_slice %450 {offsets = [6, 0, 0], sizes = [1, 16, 64], strides = [1, 1, 1]} : vector<16x16x64xf32> to vector<1x16x64xf32>
    %551 = vector.shape_cast %550 : vector<1x16x64xf32> to vector<16x64xf32>
    %552 = arith.mulf %551, %538 : vector<16x64xf32>
    %553 = arith.addf %552, %549 : vector<16x64xf32>
    %554 = vector.extract_strided_slice %453 {offsets = [0, 6], sizes = [16, 1], strides = [1, 1]} : vector<16x16xf32> to vector<16x1xf32>
    %555 = vector.broadcast %554 : vector<16x1xf32> to vector<16x64xf32>
    %556 = arith.mulf %555, %553 : vector<16x64xf32>
    %cst_162 = arith.constant dense<0.000000e+00> : vector<64xf32>
    %557 = vector.multi_reduction <add>, %556, %cst_162 [0] : vector<16x64xf32> to vector<64xf32>
    %558 = vector.shape_cast %557 : vector<64xf32> to vector<1x64xf32>
    %c6_163 = arith.constant 6 : index
    %c0_164 = arith.constant 0 : index
    %559 = vector.load %arg27[%c6_163, %c0_164] : memref<16x64xf32, #tpu.memory_space<vmem>>, vector<1x64xf32>
    tpu.vector_store %arg27[%c6_163, %c0_164], %558 {strides = array<i32>} : memref<16x64xf32, #tpu.memory_space<vmem>>, vector<1x64xf32>,
    %560 = vector.extract_strided_slice %452 {offsets = [0, 7], sizes = [16, 1], strides = [1, 1]} : vector<16x16xf32> to vector<16x1xf32>
    %561 = vector.extract_strided_slice %451 {offsets = [7, 0], sizes = [1, 64], strides = [1, 1]} : vector<16x64xf32> to vector<1x64xf32>
    %562 = vector.broadcast %560 : vector<16x1xf32> to vector<16x64xf32>
    %563 = vector.broadcast %561 : vector<1x64xf32> to vector<16x64xf32>
    %564 = arith.mulf %562, %563 : vector<16x64xf32>
    %565 = vector.extract_strided_slice %450 {offsets = [7, 0, 0], sizes = [1, 16, 64], strides = [1, 1, 1]} : vector<16x16x64xf32> to vector<1x16x64xf32>
    %566 = vector.shape_cast %565 : vector<1x16x64xf32> to vector<16x64xf32>
    %567 = arith.mulf %566, %553 : vector<16x64xf32>
    %568 = arith.addf %567, %564 : vector<16x64xf32>
    %569 = vector.extract_strided_slice %453 {offsets = [0, 7], sizes = [16, 1], strides = [1, 1]} : vector<16x16xf32> to vector<16x1xf32>
    %570 = vector.broadcast %569 : vector<16x1xf32> to vector<16x64xf32>
    %571 = arith.mulf %570, %568 : vector<16x64xf32>
    %cst_165 = arith.constant dense<0.000000e+00> : vector<64xf32>
    %572 = vector.multi_reduction <add>, %571, %cst_165 [0] : vector<16x64xf32> to vector<64xf32>
    %573 = vector.shape_cast %572 : vector<64xf32> to vector<1x64xf32>
    %c7_166 = arith.constant 7 : index
    %c0_167 = arith.constant 0 : index
    %574 = vector.load %arg27[%c7_166, %c0_167] : memref<16x64xf32, #tpu.memory_space<vmem>>, vector<1x64xf32>
    tpu.vector_store %arg27[%c7_166, %c0_167], %573 {strides = array<i32>} : memref<16x64xf32, #tpu.memory_space<vmem>>, vector<1x64xf32>,
    %cst_168 = arith.constant 0.000000e+00 : f32
    %575 = vector.broadcast %cst_168 : f32 to vector<16x64xf32>
    %576 = vector.extract_strided_slice %452 {offsets = [0, 8], sizes = [16, 1], strides = [1, 1]} : vector<16x16xf32> to vector<16x1xf32>
    %577 = vector.extract_strided_slice %451 {offsets = [8, 0], sizes = [1, 64], strides = [1, 1]} : vector<16x64xf32> to vector<1x64xf32>
    %578 = vector.broadcast %576 : vector<16x1xf32> to vector<16x64xf32>
    %579 = vector.broadcast %577 : vector<1x64xf32> to vector<16x64xf32>
    %580 = arith.mulf %578, %579 : vector<16x64xf32>
    %581 = vector.extract_strided_slice %450 {offsets = [8, 0, 0], sizes = [1, 16, 64], strides = [1, 1, 1]} : vector<16x16x64xf32> to vector<1x16x64xf32>
    %582 = vector.shape_cast %581 : vector<1x16x64xf32> to vector<16x64xf32>
    %583 = arith.mulf %582, %575 : vector<16x64xf32>
    %584 = arith.addf %583, %580 : vector<16x64xf32>
    %585 = vector.extract_strided_slice %453 {offsets = [0, 8], sizes = [16, 1], strides = [1, 1]} : vector<16x16xf32> to vector<16x1xf32>
    %586 = vector.broadcast %585 : vector<16x1xf32> to vector<16x64xf32>
    %587 = arith.mulf %586, %584 : vector<16x64xf32>
    %cst_169 = arith.constant dense<0.000000e+00> : vector<64xf32>
    %588 = vector.multi_reduction <add>, %587, %cst_169 [0] : vector<16x64xf32> to vector<64xf32>
    %589 = vector.shape_cast %588 : vector<64xf32> to vector<1x64xf32>
    %c8_170 = arith.constant 8 : index
    %c0_171 = arith.constant 0 : index
    %590 = vector.load %arg27[%c8_170, %c0_171] : memref<16x64xf32, #tpu.memory_space<vmem>>, vector<1x64xf32>
    tpu.vector_store %arg27[%c8_170, %c0_171], %589 {strides = array<i32>} : memref<16x64xf32, #tpu.memory_space<vmem>>, vector<1x64xf32>,
    %591 = vector.extract_strided_slice %452 {offsets = [0, 9], sizes = [16, 1], strides = [1, 1]} : vector<16x16xf32> to vector<16x1xf32>
    %592 = vector.extract_strided_slice %451 {offsets = [9, 0], sizes = [1, 64], strides = [1, 1]} : vector<16x64xf32> to vector<1x64xf32>
    %593 = vector.broadcast %591 : vector<16x1xf32> to vector<16x64xf32>
    %594 = vector.broadcast %592 : vector<1x64xf32> to vector<16x64xf32>
    %595 = arith.mulf %593, %594 : vector<16x64xf32>
    %596 = vector.extract_strided_slice %450 {offsets = [9, 0, 0], sizes = [1, 16, 64], strides = [1, 1, 1]} : vector<16x16x64xf32> to vector<1x16x64xf32>
    %597 = vector.shape_cast %596 : vector<1x16x64xf32> to vector<16x64xf32>
    %598 = arith.mulf %597, %584 : vector<16x64xf32>
    %599 = arith.addf %598, %595 : vector<16x64xf32>
    %600 = vector.extract_strided_slice %453 {offsets = [0, 9], sizes = [16, 1], strides = [1, 1]} : vector<16x16xf32> to vector<16x1xf32>
    %601 = vector.broadcast %600 : vector<16x1xf32> to vector<16x64xf32>
    %602 = arith.mulf %601, %599 : vector<16x64xf32>
    %cst_172 = arith.constant dense<0.000000e+00> : vector<64xf32>
    %603 = vector.multi_reduction <add>, %602, %cst_172 [0] : vector<16x64xf32> to vector<64xf32>
    %604 = vector.shape_cast %603 : vector<64xf32> to vector<1x64xf32>
    %c9_173 = arith.constant 9 : index
    %c0_174 = arith.constant 0 : index
    %605 = vector.load %arg27[%c9_173, %c0_174] : memref<16x64xf32, #tpu.memory_space<vmem>>, vector<1x64xf32>
    tpu.vector_store %arg27[%c9_173, %c0_174], %604 {strides = array<i32>} : memref<16x64xf32, #tpu.memory_space<vmem>>, vector<1x64xf32>,
    %606 = vector.extract_strided_slice %452 {offsets = [0, 10], sizes = [16, 1], strides = [1, 1]} : vector<16x16xf32> to vector<16x1xf32>
    %607 = vector.extract_strided_slice %451 {offsets = [10, 0], sizes = [1, 64], strides = [1, 1]} : vector<16x64xf32> to vector<1x64xf32>
    %608 = vector.broadcast %606 : vector<16x1xf32> to vector<16x64xf32>
    %609 = vector.broadcast %607 : vector<1x64xf32> to vector<16x64xf32>
    %610 = arith.mulf %608, %609 : vector<16x64xf32>
    %611 = vector.extract_strided_slice %450 {offsets = [10, 0, 0], sizes = [1, 16, 64], strides = [1, 1, 1]} : vector<16x16x64xf32> to vector<1x16x64xf32>
    %612 = vector.shape_cast %611 : vector<1x16x64xf32> to vector<16x64xf32>
    %613 = arith.mulf %612, %599 : vector<16x64xf32>
    %614 = arith.addf %613, %610 : vector<16x64xf32>
    %615 = vector.extract_strided_slice %453 {offsets = [0, 10], sizes = [16, 1], strides = [1, 1]} : vector<16x16xf32> to vector<16x1xf32>
    %616 = vector.broadcast %615 : vector<16x1xf32> to vector<16x64xf32>
    %617 = arith.mulf %616, %614 : vector<16x64xf32>
    %cst_175 = arith.constant dense<0.000000e+00> : vector<64xf32>
    %618 = vector.multi_reduction <add>, %617, %cst_175 [0] : vector<16x64xf32> to vector<64xf32>
    %619 = vector.shape_cast %618 : vector<64xf32> to vector<1x64xf32>
    %c10_176 = arith.constant 10 : index
    %c0_177 = arith.constant 0 : index
    %620 = vector.load %arg27[%c10_176, %c0_177] : memref<16x64xf32, #tpu.memory_space<vmem>>, vector<1x64xf32>
    tpu.vector_store %arg27[%c10_176, %c0_177], %619 {strides = array<i32>} : memref<16x64xf32, #tpu.memory_space<vmem>>, vector<1x64xf32>,
    %621 = vector.extract_strided_slice %452 {offsets = [0, 11], sizes = [16, 1], strides = [1, 1]} : vector<16x16xf32> to vector<16x1xf32>
    %622 = vector.extract_strided_slice %451 {offsets = [11, 0], sizes = [1, 64], strides = [1, 1]} : vector<16x64xf32> to vector<1x64xf32>
    %623 = vector.broadcast %621 : vector<16x1xf32> to vector<16x64xf32>
    %624 = vector.broadcast %622 : vector<1x64xf32> to vector<16x64xf32>
    %625 = arith.mulf %623, %624 : vector<16x64xf32>
    %626 = vector.extract_strided_slice %450 {offsets = [11, 0, 0], sizes = [1, 16, 64], strides = [1, 1, 1]} : vector<16x16x64xf32> to vector<1x16x64xf32>
    %627 = vector.shape_cast %626 : vector<1x16x64xf32> to vector<16x64xf32>
    %628 = arith.mulf %627, %614 : vector<16x64xf32>
    %629 = arith.addf %628, %625 : vector<16x64xf32>
    %630 = vector.extract_strided_slice %453 {offsets = [0, 11], sizes = [16, 1], strides = [1, 1]} : vector<16x16xf32> to vector<16x1xf32>
    %631 = vector.broadcast %630 : vector<16x1xf32> to vector<16x64xf32>
    %632 = arith.mulf %631, %629 : vector<16x64xf32>
    %cst_178 = arith.constant dense<0.000000e+00> : vector<64xf32>
    %633 = vector.multi_reduction <add>, %632, %cst_178 [0] : vector<16x64xf32> to vector<64xf32>
    %634 = vector.shape_cast %633 : vector<64xf32> to vector<1x64xf32>
    %c11_179 = arith.constant 11 : index
    %c0_180 = arith.constant 0 : index
    %635 = vector.load %arg27[%c11_179, %c0_180] : memref<16x64xf32, #tpu.memory_space<vmem>>, vector<1x64xf32>
    tpu.vector_store %arg27[%c11_179, %c0_180], %634 {strides = array<i32>} : memref<16x64xf32, #tpu.memory_space<vmem>>, vector<1x64xf32>,
    %636 = vector.extract_strided_slice %452 {offsets = [0, 12], sizes = [16, 1], strides = [1, 1]} : vector<16x16xf32> to vector<16x1xf32>
    %637 = vector.extract_strided_slice %451 {offsets = [12, 0], sizes = [1, 64], strides = [1, 1]} : vector<16x64xf32> to vector<1x64xf32>
    %638 = vector.broadcast %636 : vector<16x1xf32> to vector<16x64xf32>
    %639 = vector.broadcast %637 : vector<1x64xf32> to vector<16x64xf32>
    %640 = arith.mulf %638, %639 : vector<16x64xf32>
    %641 = vector.extract_strided_slice %450 {offsets = [12, 0, 0], sizes = [1, 16, 64], strides = [1, 1, 1]} : vector<16x16x64xf32> to vector<1x16x64xf32>
    %642 = vector.shape_cast %641 : vector<1x16x64xf32> to vector<16x64xf32>
    %643 = arith.mulf %642, %629 : vector<16x64xf32>
    %644 = arith.addf %643, %640 : vector<16x64xf32>
    %645 = vector.extract_strided_slice %453 {offsets = [0, 12], sizes = [16, 1], strides = [1, 1]} : vector<16x16xf32> to vector<16x1xf32>
    %646 = vector.broadcast %645 : vector<16x1xf32> to vector<16x64xf32>
    %647 = arith.mulf %646, %644 : vector<16x64xf32>
    %cst_181 = arith.constant dense<0.000000e+00> : vector<64xf32>
    %648 = vector.multi_reduction <add>, %647, %cst_181 [0] : vector<16x64xf32> to vector<64xf32>
    %649 = vector.shape_cast %648 : vector<64xf32> to vector<1x64xf32>
    %c12_182 = arith.constant 12 : index
    %c0_183 = arith.constant 0 : index
    %650 = vector.load %arg27[%c12_182, %c0_183] : memref<16x64xf32, #tpu.memory_space<vmem>>, vector<1x64xf32>
    tpu.vector_store %arg27[%c12_182, %c0_183], %649 {strides = array<i32>} : memref<16x64xf32, #tpu.memory_space<vmem>>, vector<1x64xf32>,
    %651 = vector.extract_strided_slice %452 {offsets = [0, 13], sizes = [16, 1], strides = [1, 1]} : vector<16x16xf32> to vector<16x1xf32>
    %652 = vector.extract_strided_slice %451 {offsets = [13, 0], sizes = [1, 64], strides = [1, 1]} : vector<16x64xf32> to vector<1x64xf32>
    %653 = vector.broadcast %651 : vector<16x1xf32> to vector<16x64xf32>
    %654 = vector.broadcast %652 : vector<1x64xf32> to vector<16x64xf32>
    %655 = arith.mulf %653, %654 : vector<16x64xf32>
    %656 = vector.extract_strided_slice %450 {offsets = [13, 0, 0], sizes = [1, 16, 64], strides = [1, 1, 1]} : vector<16x16x64xf32> to vector<1x16x64xf32>
    %657 = vector.shape_cast %656 : vector<1x16x64xf32> to vector<16x64xf32>
    %658 = arith.mulf %657, %644 : vector<16x64xf32>
    %659 = arith.addf %658, %655 : vector<16x64xf32>
    %660 = vector.extract_strided_slice %453 {offsets = [0, 13], sizes = [16, 1], strides = [1, 1]} : vector<16x16xf32> to vector<16x1xf32>
    %661 = vector.broadcast %660 : vector<16x1xf32> to vector<16x64xf32>
    %662 = arith.mulf %661, %659 : vector<16x64xf32>
    %cst_184 = arith.constant dense<0.000000e+00> : vector<64xf32>
    %663 = vector.multi_reduction <add>, %662, %cst_184 [0] : vector<16x64xf32> to vector<64xf32>
    %664 = vector.shape_cast %663 : vector<64xf32> to vector<1x64xf32>
    %c13_185 = arith.constant 13 : index
    %c0_186 = arith.constant 0 : index
    %665 = vector.load %arg27[%c13_185, %c0_186] : memref<16x64xf32, #tpu.memory_space<vmem>>, vector<1x64xf32>
    tpu.vector_store %arg27[%c13_185, %c0_186], %664 {strides = array<i32>} : memref<16x64xf32, #tpu.memory_space<vmem>>, vector<1x64xf32>,
    %666 = vector.extract_strided_slice %452 {offsets = [0, 14], sizes = [16, 1], strides = [1, 1]} : vector<16x16xf32> to vector<16x1xf32>
    %667 = vector.extract_strided_slice %451 {offsets = [14, 0], sizes = [1, 64], strides = [1, 1]} : vector<16x64xf32> to vector<1x64xf32>
    %668 = vector.broadcast %666 : vector<16x1xf32> to vector<16x64xf32>
    %669 = vector.broadcast %667 : vector<1x64xf32> to vector<16x64xf32>
    %670 = arith.mulf %668, %669 : vector<16x64xf32>
    %671 = vector.extract_strided_slice %450 {offsets = [14, 0, 0], sizes = [1, 16, 64], strides = [1, 1, 1]} : vector<16x16x64xf32> to vector<1x16x64xf32>
    %672 = vector.shape_cast %671 : vector<1x16x64xf32> to vector<16x64xf32>
    %673 = arith.mulf %672, %659 : vector<16x64xf32>
    %674 = arith.addf %673, %670 : vector<16x64xf32>
    %675 = vector.extract_strided_slice %453 {offsets = [0, 14], sizes = [16, 1], strides = [1, 1]} : vector<16x16xf32> to vector<16x1xf32>
    %676 = vector.broadcast %675 : vector<16x1xf32> to vector<16x64xf32>
    %677 = arith.mulf %676, %674 : vector<16x64xf32>
    %cst_187 = arith.constant dense<0.000000e+00> : vector<64xf32>
    %678 = vector.multi_reduction <add>, %677, %cst_187 [0] : vector<16x64xf32> to vector<64xf32>
    %679 = vector.shape_cast %678 : vector<64xf32> to vector<1x64xf32>
    %c14_188 = arith.constant 14 : index
    %c0_189 = arith.constant 0 : index
    %680 = vector.load %arg27[%c14_188, %c0_189] : memref<16x64xf32, #tpu.memory_space<vmem>>, vector<1x64xf32>
    tpu.vector_store %arg27[%c14_188, %c0_189], %679 {strides = array<i32>} : memref<16x64xf32, #tpu.memory_space<vmem>>, vector<1x64xf32>,
    %681 = vector.extract_strided_slice %452 {offsets = [0, 15], sizes = [16, 1], strides = [1, 1]} : vector<16x16xf32> to vector<16x1xf32>
    %682 = vector.extract_strided_slice %451 {offsets = [15, 0], sizes = [1, 64], strides = [1, 1]} : vector<16x64xf32> to vector<1x64xf32>
    %683 = vector.broadcast %681 : vector<16x1xf32> to vector<16x64xf32>
    %684 = vector.broadcast %682 : vector<1x64xf32> to vector<16x64xf32>
    %685 = arith.mulf %683, %684 : vector<16x64xf32>
    %686 = vector.extract_strided_slice %450 {offsets = [15, 0, 0], sizes = [1, 16, 64], strides = [1, 1, 1]} : vector<16x16x64xf32> to vector<1x16x64xf32>
    %687 = vector.shape_cast %686 : vector<1x16x64xf32> to vector<16x64xf32>
    %688 = arith.mulf %687, %674 : vector<16x64xf32>
    %689 = arith.addf %688, %685 : vector<16x64xf32>
    %690 = vector.extract_strided_slice %453 {offsets = [0, 15], sizes = [16, 1], strides = [1, 1]} : vector<16x16xf32> to vector<16x1xf32>
    %691 = vector.broadcast %690 : vector<16x1xf32> to vector<16x64xf32>
    %692 = arith.mulf %691, %689 : vector<16x64xf32>
    %cst_190 = arith.constant dense<0.000000e+00> : vector<64xf32>
    %693 = vector.multi_reduction <add>, %692, %cst_190 [0] : vector<16x64xf32> to vector<64xf32>
    %694 = vector.shape_cast %693 : vector<64xf32> to vector<1x64xf32>
    %c15_191 = arith.constant 15 : index
    %c0_192 = arith.constant 0 : index
    %695 = vector.load %arg27[%c15_191, %c0_192] : memref<16x64xf32, #tpu.memory_space<vmem>>, vector<1x64xf32>
    tpu.vector_store %arg27[%c15_191, %c0_192], %694 {strides = array<i32>} : memref<16x64xf32, #tpu.memory_space<vmem>>, vector<1x64xf32>,
    %c0_193 = arith.constant 0 : index
    %c0_194 = arith.constant 0 : index
    %696 = vector.load %arg27[%c0_193, %c0_194] : memref<16x64xf32, #tpu.memory_space<vmem>>, vector<16x64xf32>
    %c0_195 = arith.constant 0 : index
    %c0_196 = arith.constant 0 : index
    %697 = vector.load %arg21[%c0_195, %c0_196] : memref<1x64xf32, #tpu.memory_space<vmem>>, vector<1x64xf32>
    %698 = vector.broadcast %697 : vector<1x64xf32> to vector<16x64xf32>
    %699 = arith.mulf %425, %698 : vector<16x64xf32>
    %700 = arith.addf %696, %699 : vector<16x64xf32>
    %cst_197 = arith.constant 0.000000e+00 : f32
    %701 = vector.broadcast %cst_197 : f32 to vector<16x64xf32>
    %702 = arith.subf %701, %385 : vector<16x64xf32>
    %703 = math.exp %702 : vector<16x64xf32>
    %cst_198 = arith.constant 1.000000e+00 : f32
    %704 = vector.broadcast %cst_198 : f32 to vector<16x64xf32>
    %705 = arith.addf %704, %703 : vector<16x64xf32>
    %cst_199 = arith.constant 1.000000e+00 : f32
    %706 = vector.broadcast %cst_199 : f32 to vector<16x64xf32>
    %707 = arith.divf %706, %705 : vector<16x64xf32>
    %708 = arith.mulf %385, %707 : vector<16x64xf32>
    %709 = arith.mulf %700, %708 : vector<16x64xf32>
    %c0_200 = arith.constant 0 : index
    %c0_201 = arith.constant 0 : index
    %710 = vector.load %arg22[%c0_200, %c0_201] : memref<64x32xf32, #tpu.memory_space<vmem>>, vector<64x32xf32>
    %cst_202 = arith.constant dense<0.000000e+00> : vector<16x32xf32>
    %711 = tpu.matmul %709, %710, %cst_202 {dimension_numbers = #tpu.dot_dimension_numbers<[1], [0], [0], [1], [0, 0, 1, 1], [], []>} : vector<16x64xf32>, vector<64x32xf32>, vector<16x32xf32> -> vector<16x32xf32>
    %712 = arith.addf %711, %357 : vector<16x32xf32>
    %cst_203 = arith.constant dense<0.000000e+00> : vector<16xf32>
    %713 = vector.multi_reduction <add>, %712, %cst_203 [1] : vector<16x32xf32> to vector<16xf32>
    %714 = vector.shape_cast %713 : vector<16xf32> to vector<16x1xf32>
    %cst_204 = arith.constant 3.200000e+01 : f32
    %715 = vector.broadcast %cst_204 : f32 to vector<16x1xf32>
    %716 = arith.divf %714, %715 : vector<16x1xf32>
    %717 = vector.broadcast %716 : vector<16x1xf32> to vector<16x32xf32>
    %718 = arith.subf %712, %717 : vector<16x32xf32>
    %719 = arith.mulf %718, %718 : vector<16x32xf32>
    %cst_205 = arith.constant dense<0.000000e+00> : vector<16xf32>
    %720 = vector.multi_reduction <add>, %719, %cst_205 [1] : vector<16x32xf32> to vector<16xf32>
    %721 = vector.shape_cast %720 : vector<16xf32> to vector<16x1xf32>
    %cst_206 = arith.constant 3.200000e+01 : f32
    %722 = vector.broadcast %cst_206 : f32 to vector<16x1xf32>
    %723 = arith.divf %721, %722 : vector<16x1xf32>
    %724 = vector.broadcast %716 : vector<16x1xf32> to vector<16x32xf32>
    %725 = arith.subf %712, %724 : vector<16x32xf32>
    %cst_207 = arith.constant 9.99999974E-6 : f32
    %726 = vector.broadcast %cst_207 : f32 to vector<16x1xf32>
    %727 = arith.addf %723, %726 : vector<16x1xf32>
    %728 = math.rsqrt %727 : vector<16x1xf32>
    %729 = vector.broadcast %728 : vector<16x1xf32> to vector<16x32xf32>
    %730 = arith.mulf %725, %729 : vector<16x32xf32>
    %c0_208 = arith.constant 0 : index
    %c0_209 = arith.constant 0 : index
    %731 = vector.load %arg23[%c0_208, %c0_209] : memref<1x32xf32, #tpu.memory_space<vmem>>, vector<1x32xf32>
    %732 = vector.broadcast %731 : vector<1x32xf32> to vector<16x32xf32>
    %733 = arith.mulf %730, %732 : vector<16x32xf32>
    %c0_210 = arith.constant 0 : index
    %c0_211 = arith.constant 0 : index
    %734 = vector.load %arg24[%c0_210, %c0_211] : memref<1x32xf32, #tpu.memory_space<vmem>>, vector<1x32xf32>
    %735 = vector.broadcast %734 : vector<1x32xf32> to vector<16x32xf32>
    %736 = arith.addf %733, %735 : vector<16x32xf32>
    %c0_212 = arith.constant 0 : index
    %c0_213 = arith.constant 0 : index
    %737 = vector.load %arg25[%c0_212, %c0_213] : memref<16x32xf32, #tpu.memory_space<vmem>>, vector<16x32xf32>
    tpu.vector_store %arg25[%c0_212, %c0_213], %736 {strides = array<i32>} : memref<16x32xf32, #tpu.memory_space<vmem>>, vector<16x32xf32>,
    return
  }
}

</mosaic_0001>

<llo_original>
// kernel: tpu_custom_call.1
$region0: #{tpu_custom_call.1}
  #allocation0 [shape = 'u32[]', space=smem, size = 0x4, offset = 0x4, fixed_abs, tag = 'smem constant byte address 0x4 - core index']
  #allocation1 [shape = 'u32[72,128]{1,0:T(1,128)}', space=vmem, size = 0x9000, scoped, tag = 'internal scratch']
  #allocation2 [shape = 'f32[2,11,64]{2,1,0:T(8,128)}', space=vmem, size = 0x4000, scoped, tag = 'scratch operand']
  #allocation3 [shape = 'f32[16,64]{1,0:T(8,128)}', space=vmem, size = 0x2000, scoped, tag = 'scratch operand']
  %s0 = inlined_call_operand.vmem [shape: f32[16,32], index: 0, kind: input, shape index: {}]
  %s1 = inlined_call_operand.vmem [shape: f32[1,32], index: 1, kind: input, shape index: {}]
  %s2 = inlined_call_operand.vmem [shape: f32[1,32], index: 2, kind: input, shape index: {}]
  %s3 = inlined_call_operand.vmem [shape: f32[32,128], index: 3, kind: input, shape index: {}]
  %s4 = inlined_call_operand.vmem [shape: f32[4,64], index: 4, kind: input, shape index: {}]
  %s5 = inlined_call_operand.vmem [shape: f32[1,64], index: 5, kind: input, shape index: {}]
  %s6 = inlined_call_operand.vmem [shape: f32[64,34], index: 6, kind: input, shape index: {}]
  %s7 = inlined_call_operand.vmem [shape: f32[2,64], index: 7, kind: input, shape index: {}]
  %s8 = inlined_call_operand.vmem [shape: f32[1,64], index: 8, kind: input, shape index: {}]
  %s9 = inlined_call_operand.vmem [shape: f32[16,64], index: 9, kind: input, shape index: {}]
  %s10 = inlined_call_operand.vmem [shape: f32[1,64], index: 10, kind: input, shape index: {}]
  %s11 = inlined_call_operand.vmem [shape: f32[64,32], index: 11, kind: input, shape index: {}]
  %s12 = inlined_call_operand.vmem [shape: f32[1,32], index: 12, kind: input, shape index: {}]
  %s13 = inlined_call_operand.vmem [shape: f32[1,32], index: 13, kind: input, shape index: {}]
  %s14 = inlined_call_operand.vmem [shape: f32[32,128], index: 14, kind: input, shape index: {}]
  %s15 = inlined_call_operand.vmem [shape: f32[4,64], index: 15, kind: input, shape index: {}]
  %s16 = inlined_call_operand.vmem [shape: f32[1,64], index: 16, kind: input, shape index: {}]
  %s17 = inlined_call_operand.vmem [shape: f32[64,34], index: 17, kind: input, shape index: {}]
  %s18 = inlined_call_operand.vmem [shape: f32[2,64], index: 18, kind: input, shape index: {}]
  %s19 = inlined_call_operand.vmem [shape: f32[1,64], index: 19, kind: input, shape index: {}]
  %s20 = inlined_call_operand.vmem [shape: f32[16,64], index: 20, kind: input, shape index: {}]
  %s21 = inlined_call_operand.vmem [shape: f32[1,64], index: 21, kind: input, shape index: {}]
  %s22 = inlined_call_operand.vmem [shape: f32[64,32], index: 22, kind: input, shape index: {}]
  %s23 = inlined_call_operand.vmem [shape: f32[1,32], index: 23, kind: input, shape index: {}]
  %s24 = inlined_call_operand.vmem [shape: f32[1,32], index: 24, kind: input, shape index: {}]
  %s25 = inlined_call_operand.hbm [shape: f32[16,32], index: 25, kind: output, shape index: {}]
  %s26 = sld [smem:[#allocation0]]
  $region110: #{tpu_custom_call.1} parent=0
    _
  %s28 = ssub.s32 1, %s26
  %s29 = scalar_select 0, %s28, %s26
  $region1: #{tpu_custom_call.1} parent=0
    #allocation4 [shape = 'u8[8192]{0}', space=vmem, size = 0x2000, scoped, tag = 'output window, operand 0, single buffered']
    #allocation5 [shape = 's32[1]{0}', space=sflag, size = 0x4, scoped, tag = 'scoped memory for tpu_custom_call.1']
    %30 = vsyncpa [#allocation5], 0
    // Predicated region
    $region2: #{tpu_custom_call.1} parent=1 // pred_check
      _
    $region3: #{tpu_custom_call.1} parent=1 // pred_check_branch
      %32 = sbr.rel (0) target = $region5
    $region4: #{tpu_custom_call.1} parent=1 // pred_region
      _
    $region5: #{tpu_custom_call.1} parent=1 // pred_fallthru
      _
    // Predicated region
    $region6: #{tpu_custom_call.1} parent=1 // pred_check
      _
    $region7: #{tpu_custom_call.1} parent=1 // pred_check_branch
      %34 = sbr.rel (0) target = $region9
    $region8: #{tpu_custom_call.1} parent=1 // pred_region
      _
    $region9: #{tpu_custom_call.1} parent=1 // pred_fallthru
      _
    // Predicated region
    $region10: #{tpu_custom_call.1} parent=1 // pred_check
      _
    $region11: #{tpu_custom_call.1} parent=1 // pred_check_branch
      %36 = sbr.rel (0) target = $region13
    $region12: #{tpu_custom_call.1} parent=1 // pred_region
      _
    $region13: #{tpu_custom_call.1} parent=1 // pred_fallthru
      _
    // Predicated region
    $region14: #{tpu_custom_call.1} parent=1 // pred_check
      _
    $region15: #{tpu_custom_call.1} parent=1 // pred_check_branch
      %38 = sbr.rel (0) target = $region17
    $region16: #{tpu_custom_call.1} parent=1 // pred_region
      _
    $region17: #{tpu_custom_call.1} parent=1 // pred_fallthru
      _
    // Predicated region
    $region18: #{tpu_custom_call.1} parent=1 // pred_check
      _
    $region19: #{tpu_custom_call.1} parent=1 // pred_check_branch
      %40 = sbr.rel (0) target = $region21
    $region20: #{tpu_custom_call.1} parent=1 // pred_region
      _
    $region21: #{tpu_custom_call.1} parent=1 // pred_fallthru
      _
    // Predicated region
    $region22: #{tpu_custom_call.1} parent=1 // pred_check
      _
    $region23: #{tpu_custom_call.1} parent=1 // pred_check_branch
      %42 = sbr.rel (0) target = $region25
    $region24: #{tpu_custom_call.1} parent=1 // pred_region
      _
    $region25: #{tpu_custom_call.1} parent=1 // pred_fallthru
      _
    // Predicated region
    $region26: #{tpu_custom_call.1} parent=1 // pred_check
      _
    $region27: #{tpu_custom_call.1} parent=1 // pred_check_branch
      %44 = sbr.rel (0) target = $region29
    $region28: #{tpu_custom_call.1} parent=1 // pred_region
      _
    $region29: #{tpu_custom_call.1} parent=1 // pred_fallthru
      _
    // Predicated region
    $region30: #{tpu_custom_call.1} parent=1 // pred_check
      _
    $region31: #{tpu_custom_call.1} parent=1 // pred_check_branch
      %46 = sbr.rel (0) target = $region33
    $region32: #{tpu_custom_call.1} parent=1 // pred_region
      _
    $region33: #{tpu_custom_call.1} parent=1 // pred_fallthru
      _
    // Predicated region
    $region34: #{tpu_custom_call.1} parent=1 // pred_check
      _
    $region35: #{tpu_custom_call.1} parent=1 // pred_check_branch
      %48 = sbr.rel (0) target = $region37
    $region36: #{tpu_custom_call.1} parent=1 // pred_region
      _
    $region37: #{tpu_custom_call.1} parent=1 // pred_fallthru
      _
    // Predicated region
    $region38: #{tpu_custom_call.1} parent=1 // pred_check
      _
    $region39: #{tpu_custom_call.1} parent=1 // pred_check_branch
      %50 = sbr.rel (0) target = $region41
    $region40: #{tpu_custom_call.1} parent=1 // pred_region
      _
    $region41: #{tpu_custom_call.1} parent=1 // pred_fallthru
      _
    // Predicated region
    $region42: #{tpu_custom_call.1} parent=1 // pred_check
      _
    $region43: #{tpu_custom_call.1} parent=1 // pred_check_branch
      %52 = sbr.rel (0) target = $region45
    $region44: #{tpu_custom_call.1} parent=1 // pred_region
      _
    $region45: #{tpu_custom_call.1} parent=1 // pred_fallthru
      _
    // Predicated region
    $region46: #{tpu_custom_call.1} parent=1 // pred_check
      _
    $region47: #{tpu_custom_call.1} parent=1 // pred_check_branch
      %54 = sbr.rel (0) target = $region49
    $region48: #{tpu_custom_call.1} parent=1 // pred_region
      _
    $region49: #{tpu_custom_call.1} parent=1 // pred_fallthru
      _
    // Predicated region
    $region50: #{tpu_custom_call.1} parent=1 // pred_check
      _
    $region51: #{tpu_custom_call.1} parent=1 // pred_check_branch
      %56 = sbr.rel (0) target = $region53
    $region52: #{tpu_custom_call.1} parent=1 // pred_region
      _
    $region53: #{tpu_custom_call.1} parent=1 // pred_fallthru
      _
    // Predicated region
    $region54: #{tpu_custom_call.1} parent=1 // pred_check
      _
    $region55: #{tpu_custom_call.1} parent=1 // pred_check_branch
      %58 = sbr.rel (0) target = $region57
    $region56: #{tpu_custom_call.1} parent=1 // pred_region
      _
    $region57: #{tpu_custom_call.1} parent=1 // pred_fallthru
      _
    // Predicated region
    $region58: #{tpu_custom_call.1} parent=1 // pred_check
      _
    $region59: #{tpu_custom_call.1} parent=1 // pred_check_branch
      %60 = sbr.rel (0) target = $region61
    $region60: #{tpu_custom_call.1} parent=1 // pred_region
      _
    $region61: #{tpu_custom_call.1} parent=1 // pred_fallthru
      _
    // Predicated region
    $region62: #{tpu_custom_call.1} parent=1 // pred_check
      _
    $region63: #{tpu_custom_call.1} parent=1 // pred_check_branch
      %62 = sbr.rel (0) target = $region65
    $region64: #{tpu_custom_call.1} parent=1 // pred_region
      _
    $region65: #{tpu_custom_call.1} parent=1 // pred_fallthru
      _
    // Predicated region
    $region66: #{tpu_custom_call.1} parent=1 // pred_check
      _
    $region67: #{tpu_custom_call.1} parent=1 // pred_check_branch
      %64 = sbr.rel (0) target = $region69
    $region68: #{tpu_custom_call.1} parent=1 // pred_region
      _
    $region69: #{tpu_custom_call.1} parent=1 // pred_fallthru
      _
    // Predicated region
    $region70: #{tpu_custom_call.1} parent=1 // pred_check
      _
    $region71: #{tpu_custom_call.1} parent=1 // pred_check_branch
      %66 = sbr.rel (0) target = $region73
    $region72: #{tpu_custom_call.1} parent=1 // pred_region
      _
    $region73: #{tpu_custom_call.1} parent=1 // pred_fallthru
      _
    // Predicated region
    $region74: #{tpu_custom_call.1} parent=1 // pred_check
      _
    $region75: #{tpu_custom_call.1} parent=1 // pred_check_branch
      %68 = sbr.rel (0) target = $region77
    $region76: #{tpu_custom_call.1} parent=1 // pred_region
      _
    $region77: #{tpu_custom_call.1} parent=1 // pred_fallthru
      _
    // Predicated region
    $region78: #{tpu_custom_call.1} parent=1 // pred_check
      _
    $region79: #{tpu_custom_call.1} parent=1 // pred_check_branch
      %70 = sbr.rel (0) target = $region81
    $region80: #{tpu_custom_call.1} parent=1 // pred_region
      _
    $region81: #{tpu_custom_call.1} parent=1 // pred_fallthru
      _
    // Predicated region
    $region82: #{tpu_custom_call.1} parent=1 // pred_check
      _
    $region83: #{tpu_custom_call.1} parent=1 // pred_check_branch
      %72 = sbr.rel (0) target = $region85
    $region84: #{tpu_custom_call.1} parent=1 // pred_region
      _
    $region85: #{tpu_custom_call.1} parent=1 // pred_fallthru
      _
    // Predicated region
    $region86: #{tpu_custom_call.1} parent=1 // pred_check
      _
    $region87: #{tpu_custom_call.1} parent=1 // pred_check_branch
      %74 = sbr.rel (0) target = $region89
    $region88: #{tpu_custom_call.1} parent=1 // pred_region
      _
    $region89: #{tpu_custom_call.1} parent=1 // pred_fallthru
      _
    // Predicated region
    $region90: #{tpu_custom_call.1} parent=1 // pred_check
      _
    $region91: #{tpu_custom_call.1} parent=1 // pred_check_branch
      %76 = sbr.rel (0) target = $region93
    $region92: #{tpu_custom_call.1} parent=1 // pred_region
      _
    $region93: #{tpu_custom_call.1} parent=1 // pred_fallthru
      _
    // Predicated region
    $region94: #{tpu_custom_call.1} parent=1 // pred_check
      _
    $region95: #{tpu_custom_call.1} parent=1 // pred_check_branch
      %78 = sbr.rel (0) target = $region97
    $region96: #{tpu_custom_call.1} parent=1 // pred_region
      _
    $region97: #{tpu_custom_call.1} parent=1 // pred_fallthru
      _
    // Predicated region
    $region98: #{tpu_custom_call.1} parent=1 // pred_check
      _
    $region99: #{tpu_custom_call.1} parent=1 // pred_check_branch
      %80 = sbr.rel (0) target = $region101
    $region100: #{tpu_custom_call.1} parent=1 // pred_region
      _
    $region101: #{tpu_custom_call.1} parent=1 // pred_fallthru
      _
    %vm81 = vcmask 523264
    %82 = vst.msk [vmem:[#allocation2] sm:$0xff] %vm81, 0.0
    %vm83 = vcmask 518144
    %84 = vst.msk [vmem:[#allocation2 + $0x8] sm:$0x7] %vm83, 0.0
    %85 = vst.msk [vmem:[#allocation2 + $0x10] sm:$0xff] %vm81, 0.0
    %86 = vst.msk [vmem:[#allocation2 + $0x18] sm:$0x7] %vm83, 0.0
    %v87 = vld [vmem:[%s0] sm:$0xff]
    %v88 = vld [vmem:[%s0 + $0x8] sm:$0xff]
    %vm89 = vcmask 261120
    %v90 = vsel %vm89, %v87, 0.0
    %91 = vadd.xlane.f32.xlu0 %v90
    %v92 = vpop.xlane.xlu0 %91
    %v93 = vsel %vm89, %v88, 0.0
    %94 = vadd.xlane.f32.xlu0 %v93
    %v95 = vpop.xlane.xlu0 %94
    %v96 = vrcp.pop 32.0
    %v97 = vmul.f32 32.0, %v96
    %v98 = vsub.f32 1.0, %v97
    %v99 = vmul.f32 %v96, %v98
    %v100 = vadd.f32 %v96, %v99
    %vm101 = vweird.f32 %v96
    %v102 = vsel %vm101, %v96, %v100
    %v103 = vmul.f32 %v92, %v102
    %v104 = vmul.f32 %v95, %v102
    %v105 = vsub.f32 %v87, %v103
    %v106 = vsub.f32 %v88, %v104
    %v107 = vmul.f32 %v105, %v105
    %v108 = vmul.f32 %v106, %v106
    %v109 = vsel %vm89, %v107, 0.0
    %110 = vadd.xlane.f32.xlu0 %v109
    %v111 = vpop.xlane.xlu0 %110
    %v112 = vsel %vm89, %v108, 0.0
    %113 = vadd.xlane.f32.xlu0 %v112
    %v114 = vpop.xlane.xlu0 %113
    %v115 = vmul.f32 %v111, %v102
    %v116 = vmul.f32 %v114, %v102
    %v117 = vadd.f32 %v115, 1e-05
    %v118 = vadd.f32 %v116, 1e-05
    %v119 = vrsqrt.pop %v117
    %v120 = vmul.f32 %v119, %v117
    %v121 = vmul.f32 %v120, %v119
    %v122 = vmul.f32 0.5, %v121
    %v123 = vsub.f32 1.5, %v122
    %v124 = vmul.f32 %v119, %v123
    %vm125 = vweird.f32 %v117
    %vm126 = vweird.f32 %v119
    %vm127 = vmor %vm125, %vm126
    %v128 = vsel %vm127, %v119, %v124
    %v129 = vrsqrt.pop %v118
    %v130 = vmul.f32 %v129, %v118
    %v131 = vmul.f32 %v130, %v129
    %v132 = vmul.f32 0.5, %v131
    %v133 = vsub.f32 1.5, %v132
    %v134 = vmul.f32 %v129, %v133
    %vm135 = vweird.f32 %v118
    %vm136 = vweird.f32 %v129
    %vm137 = vmor %vm135, %vm136
    %v138 = vsel %vm137, %v129, %v134
    %v139 = vmul.f32 %v105, %v128
    %v140 = vmul.f32 %v106, %v138
    %v141 = vld [vmem:[%s1] sm:$0x1]
    %v143 = vperm.slane %v141, 0
    %v145 = vmul.f32 %v139, %v143
    %v146 = vmul.f32 %v140, %v143
    %v147 = vld [vmem:[%s2] sm:$0x1]
    %v149 = vperm.slane %v147, 0
    %v151 = vadd.f32 %v145, %v149
    %v152 = vadd.f32 %v146, %v149
    %v153 = vld [vmem:[%s3] sm:$0xff]
    %v154 = vld [vmem:[%s3 + $0x8] sm:$0xff]
    %v155 = vld [vmem:[%s3 + $0x10] sm:$0xff]
    %v156 = vld [vmem:[%s3 + $0x18] sm:$0xff]
    %v158 = vsel %vm89, %v151, 0
    %v161 = vsel %vm89, %v152, 0
    %163 = vmatpush.msra.mxu0 0.0
    %164 = vmatpush.msra.mxu0 0.0
    %165 = vmatpush.msra.mxu0 0.0
    %166 = vmatpush.msra.mxu0 0.0
    %167 = vmatpush.msra.mxu0 0.0
    %168 = vmatpush.msra.mxu0 0.0
    %169 = vmatpush.msra.mxu0 0.0
    %170 = vmatpush.msra.mxu0 0.0
    %171 = vmatpush.msra.mxu0 0.0
    %172 = vmatpush.msra.mxu0 0.0
    %173 = vmatpush.msra.mxu0 0.0
    %174 = vmatpush.msra.mxu0 0.0
    %175 = vmatpush.msra.mxu0 %v156
    %176 = vmatpush.msra.mxu0 %v155
    %177 = vmatpush.msra.mxu0 %v154
    %178 = vmatpush.msra.mxu0 %v153
    %179 = vmatmul.f32.gmra.mxu0 %v158
    %v180 = vpop.f32.mrf.mxu0
    %v181 = vadd.f32 0.0, %v180
    %182 = vmatmul.f32.gmra.mxu0 %v161
    %v183 = vpop.f32.mrf.mxu0
    %v184 = vadd.f32 0.0, %v183
    %185 = vdwg.mxu0
    %186 = vst.msk [vmem:[#allocation2 + $0x3] sm:$0xff] %vm81, %v181
    %187 = vst.msk [vmem:[#allocation2 + $0x13] sm:$0xff] %vm81, %v184
    %v188 = vld [vmem:[%s4] sm:$0xf]
    %v189 = vld [vmem:[#allocation2] sm:$0xff]
    %v190 = vld [vmem:[#allocation2 + $0x10] sm:$0xff]
    %v191 = vperm.slane %v188, 0
    %v192 = vmul.f32 %v189, %v191
    %v193 = vmul.f32 %v190, %v191
    %v194 = vadd.f32 %v192, 0.0
    %v195 = vadd.f32 %v193, 0.0
    %v196 = vld [vmem:[#allocation2 + $0x1] sm:$0xff]
    %v197 = vld [vmem:[#allocation2 + $0x11] sm:$0xff]
    %v198 = vperm.slane %v188, 1
    %v199 = vmul.f32 %v196, %v198
    %v200 = vmul.f32 %v197, %v198
    %v201 = vadd.f32 %v194, %v199
    %v202 = vadd.f32 %v195, %v200
    %v203 = vld [vmem:[#allocation2 + $0x2] sm:$0xff]
    %v204 = vld [vmem:[#allocation2 + $0x12] sm:$0xff]
    %v205 = vperm.slane %v188, 2
    %v206 = vmul.f32 %v203, %v205
    %v207 = vmul.f32 %v204, %v205
    %v208 = vadd.f32 %v201, %v206
    %v209 = vadd.f32 %v202, %v207
    %v210 = vld [vmem:[#allocation2 + $0x3] sm:$0xff]
    %v211 = vld [vmem:[#allocation2 + $0x13] sm:$0xff]
    %v212 = vperm.slane %v188, 3
    %v213 = vmul.f32 %v210, %v212
    %v214 = vmul.f32 %v211, %v212
    %v215 = vadd.f32 %v208, %v213
    %v216 = vadd.f32 %v209, %v214
    %v217 = vld [vmem:[%s5] sm:$0x1]
    %v219 = vperm.slane %v217, 0
    %v221 = vadd.f32 %v215, %v219
    %v222 = vadd.f32 %v216, %v219
    %v223 = vsub.f32 0.0, %v221
    %v224 = vsub.f32 0.0, %v222
    %v225 = vmul.f32 %v223, 1.442695
    %v226 = vpow.pop %v225
    %v227 = vmul.f32 %v224, 1.442695
    %v228 = vpow.pop %v227
    %v229 = vadd.f32 %v226, 1.0
    %v230 = vadd.f32 %v228, 1.0
    %v231 = vrcp.pop %v229
    %v232 = vmul.f32 %v229, %v231
    %v233 = vsub.f32 1.0, %v232
    %v234 = vmul.f32 %v231, %v233
    %v235 = vadd.f32 %v231, %v234
    %vm236 = vweird.f32 %v229
    %vm237 = vweird.f32 %v231
    %vm238 = vmor %vm236, %vm237
    %v239 = vsel %vm238, %v231, %v235
    %v240 = vand.u32 2147483647, %v229
    %vm241 = vcmp.eq.f32.partialorder %v240, 8.507059e+37
    %v242 = vand.u32 %v229, 2147483648
    %v243 = vor.u32 1.1754944e-38, %v242
    %v244 = vsel %vm241, %v243, %v239
    %v245 = vmul.f32 1.0, %v244
    %v246 = vrcp.pop %v230
    %v247 = vmul.f32 %v230, %v246
    %v248 = vsub.f32 1.0, %v247
    %v249 = vmul.f32 %v246, %v248
    %v250 = vadd.f32 %v246, %v249
    %vm251 = vweird.f32 %v230
    %vm252 = vweird.f32 %v246
    %vm253 = vmor %vm251, %vm252
    %v254 = vsel %vm253, %v246, %v250
    %v255 = vand.u32 2147483647, %v230
    %vm256 = vcmp.eq.f32.partialorder %v255, 8.507059e+37
    %v257 = vand.u32 %v230, 2147483648
    %v258 = vor.u32 1.1754944e-38, %v257
    %v259 = vsel %vm256, %v258, %v254
    %v260 = vmul.f32 1.0, %v259
    %v261 = vmul.f32 %v221, %v245
    %v262 = vmul.f32 %v222, %v260
    %v263 = vld [vmem:[%s6] sm:$0xff]
    %v264 = vld [vmem:[%s6 + $0x8] sm:$0xff]
    %v265 = vld [vmem:[%s6 + $0x10] sm:$0xff]
    %v266 = vld [vmem:[%s6 + $0x18] sm:$0xff]
    %v267 = vld [vmem:[%s6 + $0x20] sm:$0xff]
    %v268 = vld [vmem:[%s6 + $0x28] sm:$0xff]
    %v269 = vld [vmem:[%s6 + $0x30] sm:$0xff]
    %v270 = vld [vmem:[%s6 + $0x38] sm:$0xff]
    %v272 = vsel %vm81, %v261, 0
    %v275 = vsel %vm81, %v262, 0
    %277 = vmatpush.msra.mxu0 0.0
    %278 = vmatpush.msra.mxu0 0.0
    %279 = vmatpush.msra.mxu0 0.0
    %280 = vmatpush.msra.mxu0 0.0
    %281 = vmatpush.msra.mxu0 0.0
    %282 = vmatpush.msra.mxu0 0.0
    %283 = vmatpush.msra.mxu0 0.0
    %284 = vmatpush.msra.mxu0 0.0
    %285 = vmatpush.msra.mxu0 %v270
    %286 = vmatpush.msra.mxu0 %v269
    %287 = vmatpush.msra.mxu0 %v268
    %288 = vmatpush.msra.mxu0 %v267
    %289 = vmatpush.msra.mxu0 %v266
    %290 = vmatpush.msra.mxu0 %v265
    %291 = vmatpush.msra.mxu0 %v264
    %292 = vmatpush.msra.mxu0 %v263
    %293 = vmatmul.f32.gmra.mxu0 %v272
    %v294 = vpop.f32.mrf.mxu0
    %v295 = vadd.f32 0.0, %v294
    %296 = vmatmul.f32.gmra.mxu0 %v275
    %v297 = vpop.f32.mrf.mxu0
    %v298 = vadd.f32 0.0, %v297
    %299 = vdwg.mxu0
    %v300 = vld [vmem:[%s7] sm:$0x3]
    %v301 = vld [vmem:[%s8] sm:$0x1]
    %v303 = vperm.slane %v301, 0
    %vm305 = vcmask 15360
    %v307 = vsel %vm305, %v295, 0
    %v310 = vsel %vm305, %v298, 0
    %vm312 = vcmask 1041408
    %v314 = vsel %vm312, %v300, 0
    %316 = vmatpush.msra.mxu0 0.0
    %317 = vmatpush.msra.mxu0 0.0
    %318 = vmatpush.msra.mxu0 0.0
    %319 = vmatpush.msra.mxu0 0.0
    %320 = vmatpush.msra.mxu0 0.0
    %321 = vmatpush.msra.mxu0 0.0
    %322 = vmatpush.msra.mxu0 0.0
    %323 = vmatpush.msra.mxu0 0.0
    %324 = vmatpush.msra.mxu0 0.0
    %325 = vmatpush.msra.mxu0 0.0
    %326 = vmatpush.msra.mxu0 0.0
    %327 = vmatpush.msra.mxu0 0.0
    %328 = vmatpush.msra.mxu0 0.0
    %329 = vmatpush.msra.mxu0 0.0
    %330 = vmatpush.msra.mxu0 0.0
    %331 = vmatpush.msra.mxu0 %v314
    %332 = vmatmul.f32.gmra.mxu0 %v307
    %v333 = vpop.f32.mrf.mxu0
    %v334 = vadd.f32 %v303, %v333
    %335 = vmatmul.f32.gmra.mxu0 %v310
    %v336 = vpop.f32.mrf.mxu0
    %v337 = vadd.f32 %v303, %v336
    %338 = vdwg.mxu0
    %v339 = vmax.f32 %v334, 0.0
    %v340 = vmax.f32 %v337, 0.0
    %v341 = vand.u32 2147483647, %v334
    %v342 = vand.u32 2147483647, %v337
    %v343 = vsub.f32 0.0, %v341
    %v344 = vsub.f32 0.0, %v342
    %v345 = vmul.f32 %v343, 1.442695
    %v346 = vpow.pop %v345
    %v347 = vmul.f32 %v344, 1.442695
    %v348 = vpow.pop %v347
    %v349 = vadd.f32 %v346, 1.0
    %v350 = vlog2.pop %v349
    %v351 = vmul.f32 %v350, 0.6931472
    %v352 = vmul.f32 -0.5, %v346
    %v353 = vadd.f32 %v352, 1.0
    %v354 = vmul.f32 %v353, %v346
    %v355 = vand.u32 2147483647, %v346
    %vm356 = vcmp.lt.f32.partialorder %v355, 0.0004427343
    %v357 = vsel %vm356, %v354, %v351
    %v358 = vadd.f32 %v348, 1.0
    %v359 = vlog2.pop %v358
    %v360 = vmul.f32 %v359, 0.6931472
    %v361 = vmul.f32 -0.5, %v348
    %v362 = vadd.f32 %v361, 1.0
    %v363 = vmul.f32 %v362, %v348
    %v364 = vand.u32 2147483647, %v348
    %vm365 = vcmp.lt.f32.partialorder %v364, 0.0004427343
    %v366 = vsel %vm365, %v363, %v360
    %v367 = vadd.f32 %v339, %v357
    %v368 = vadd.f32 %v340, %v366
    %v369 = vld [vmem:[%s9] sm:$0xff]
    %v370 = vld [vmem:[%s9 + $0x8] sm:$0xff]
    %v373 = vrot.slane %v367, 1
    %v374 = vrot.slane %v367, 2
    %v375 = vrot.slane %v367, 3
    %v376 = vrot.slane %v367, 4
    %v377 = vrot.slane %v367, 5
    %v378 = vrot.slane %v367, 6
    %v379 = vrot.slane %v367, 7
    %v380 = vrot.slane %v368, 1
    %v381 = vrot.slane %v368, 2
    %v382 = vrot.slane %v368, 3
    %v383 = vrot.slane %v368, 4
    %v384 = vrot.slane %v368, 5
    %v385 = vrot.slane %v368, 6
    %v386 = vrot.slane %v368, 7
    %v387 = vperm.slane %v367, 0
    %v388 = vperm.slane %v373, 0
    %v389 = vperm.slane %v374, 0
    %v390 = vperm.slane %v375, 0
    %v391 = vperm.slane %v376, 0
    %v392 = vperm.slane %v377, 0
    %v393 = vperm.slane %v378, 0
    %v394 = vperm.slane %v379, 0
    %v395 = vperm.slane %v368, 0
    %v396 = vperm.slane %v380, 0
    %v397 = vperm.slane %v381, 0
    %v398 = vperm.slane %v382, 0
    %v399 = vperm.slane %v383, 0
    %v400 = vperm.slane %v384, 0
    %v401 = vperm.slane %v385, 0
    %v402 = vperm.slane %v386, 0
    %v419 = vmul.f32 %v387, %v369
    %v420 = vmul.f32 %v387, %v370
    %v421 = vmul.f32 %v388, %v369
    %v422 = vmul.f32 %v388, %v370
    %v423 = vmul.f32 %v389, %v369
    %v424 = vmul.f32 %v389, %v370
    %v425 = vmul.f32 %v390, %v369
    %v426 = vmul.f32 %v390, %v370
    %v427 = vmul.f32 %v391, %v369
    %v428 = vmul.f32 %v391, %v370
    %v429 = vmul.f32 %v392, %v369
    %v430 = vmul.f32 %v392, %v370
    %v431 = vmul.f32 %v393, %v369
    %v432 = vmul.f32 %v393, %v370
    %v433 = vmul.f32 %v394, %v369
    %v434 = vmul.f32 %v394, %v370
    %v435 = vmul.f32 %v395, %v369
    %v436 = vmul.f32 %v395, %v370
    %v437 = vmul.f32 %v396, %v369
    %v438 = vmul.f32 %v396, %v370
    %v439 = vmul.f32 %v397, %v369
    %v440 = vmul.f32 %v397, %v370
    %v441 = vmul.f32 %v398, %v369
    %v442 = vmul.f32 %v398, %v370
    %v443 = vmul.f32 %v399, %v369
    %v444 = vmul.f32 %v399, %v370
    %v445 = vmul.f32 %v400, %v369
    %v446 = vmul.f32 %v400, %v370
    %v447 = vmul.f32 %v401, %v369
    %v448 = vmul.f32 %v401, %v370
    %v449 = vmul.f32 %v402, %v369
    %v450 = vmul.f32 %v402, %v370
    %v451 = vmul.f32 %v419, 1.442695
    %v452 = vpow.pop %v451
    %v453 = vmul.f32 %v420, 1.442695
    %v454 = vpow.pop %v453
    %v455 = vmul.f32 %v421, 1.442695
    %v456 = vpow.pop %v455
    %v457 = vmul.f32 %v422, 1.442695
    %v458 = vpow.pop %v457
    %v459 = vmul.f32 %v423, 1.442695
    %v460 = vpow.pop %v459
    %v461 = vmul.f32 %v424, 1.442695
    %v462 = vpow.pop %v461
    %v463 = vmul.f32 %v425, 1.442695
    %v464 = vpow.pop %v463
    %v465 = vmul.f32 %v426, 1.442695
    %v466 = vpow.pop %v465
    %v467 = vmul.f32 %v427, 1.442695
    %v468 = vpow.pop %v467
    %v469 = vmul.f32 %v428, 1.442695
    %v470 = vpow.pop %v469
    %v471 = vmul.f32 %v429, 1.442695
    %v472 = vpow.pop %v471
    %v473 = vmul.f32 %v430, 1.442695
    %v474 = vpow.pop %v473
    %v475 = vmul.f32 %v431, 1.442695
    %v476 = vpow.pop %v475
    %v477 = vmul.f32 %v432, 1.442695
    %v478 = vpow.pop %v477
    %v479 = vmul.f32 %v433, 1.442695
    %v480 = vpow.pop %v479
    %v481 = vmul.f32 %v434, 1.442695
    %v482 = vpow.pop %v481
    %v483 = vmul.f32 %v435, 1.442695
    %v484 = vpow.pop %v483
    %v485 = vmul.f32 %v436, 1.442695
    %v486 = vpow.pop %v485
    %v487 = vmul.f32 %v437, 1.442695
    %v488 = vpow.pop %v487
    %v489 = vmul.f32 %v438, 1.442695
    %v490 = vpow.pop %v489
    %v491 = vmul.f32 %v439, 1.442695
    %v492 = vpow.pop %v491
    %v493 = vmul.f32 %v440, 1.442695
    %v494 = vpow.pop %v493
    %v495 = vmul.f32 %v441, 1.442695
    %v496 = vpow.pop %v495
    %v497 = vmul.f32 %v442, 1.442695
    %v498 = vpow.pop %v497
    %v499 = vmul.f32 %v443, 1.442695
    %v500 = vpow.pop %v499
    %v501 = vmul.f32 %v444, 1.442695
    %v502 = vpow.pop %v501
    %v503 = vmul.f32 %v445, 1.442695
    %v504 = vpow.pop %v503
    %v505 = vmul.f32 %v446, 1.442695
    %v506 = vpow.pop %v505
    %v507 = vmul.f32 %v447, 1.442695
    %v508 = vpow.pop %v507
    %v509 = vmul.f32 %v448, 1.442695
    %v510 = vpow.pop %v509
    %v511 = vmul.f32 %v449, 1.442695
    %v512 = vpow.pop %v511
    %v513 = vmul.f32 %v450, 1.442695
    %v514 = vpow.pop %v513
    %v515 = vmul.f32 %v367, %v261
    %v516 = vmul.f32 %v368, %v262
    %517 = vrot.lane.b32.xlu0 %v295, 126
    %v518 = vpop.permute.xlu0 %517
    %519 = vrot.lane.b32.xlu0 %v298, 126
    %v520 = vpop.permute.xlu0 %519
    %523 = vxpose.xlu0.b32.start [1/16] %v518, 128
    %524 = vxpose.xlu0.b32.cont [2/16] %v520, 128
    %525 = vxpose.xlu0.b32.cont [3/16] 0.0, 128
    %526 = vxpose.xlu0.b32.cont [4/16] 0.0, 128
    %527 = vxpose.xlu0.b32.cont [5/16] 0.0, 128
    %528 = vxpose.xlu0.b32.cont [6/16] 0.0, 128
    %529 = vxpose.xlu0.b32.cont [7/16] 0.0, 128
    %530 = vxpose.xlu0.b32.cont [8/16] 0.0, 128
    %531 = vxpose.xlu0.b32.cont [9/16] 0.0, 128
    %532 = vxpose.xlu0.b32.cont [10/16] 0.0, 128
    %533 = vxpose.xlu0.b32.cont [11/16] 0.0, 128
    %534 = vxpose.xlu0.b32.cont [12/16] 0.0, 128
    %535 = vxpose.xlu0.b32.cont [13/16] 0.0, 128
    %536 = vxpose.xlu0.b32.cont [14/16] 0.0, 128
    %537 = vxpose.xlu0.b32.cont [15/16] 0.0, 128
    %538 = vxpose.xlu0.b32.end [16/16] 0.0, 128
    %v539 = vpop.trf.xlu0
    %v540 = vpop.trf.xlu0
    %v541 = vpop.trf.xlu0
    %v542 = vpop.trf.xlu0
    %v543 = vpop.trf.xlu0
    %v544 = vpop.trf.xlu0
    %v545 = vpop.trf.xlu0
    %v546 = vpop.trf.xlu0
    %v547 = vpop.trf.xlu0
    %v548 = vpop.trf.xlu0
    %v549 = vpop.trf.xlu0
    %v550 = vpop.trf.xlu0
    %v551 = vpop.trf.xlu0
    %v552 = vpop.trf.xlu0
    %v553 = vpop.trf.xlu0
    %v554 = vpop.trf.xlu0
    %555 = vrot.lane.b32.xlu0 %v295, 110
    %v556 = vpop.permute.xlu0 %555
    %557 = vrot.lane.b32.xlu0 %v298, 110
    %v558 = vpop.permute.xlu0 %557
    %561 = vxpose.xlu0.b32.start [1/16] %v556, 128
    %562 = vxpose.xlu0.b32.cont [2/16] %v558, 128
    %563 = vxpose.xlu0.b32.cont [3/16] 0.0, 128
    %564 = vxpose.xlu0.b32.cont [4/16] 0.0, 128
    %565 = vxpose.xlu0.b32.cont [5/16] 0.0, 128
    %566 = vxpose.xlu0.b32.cont [6/16] 0.0, 128
    %567 = vxpose.xlu0.b32.cont [7/16] 0.0, 128
    %568 = vxpose.xlu0.b32.cont [8/16] 0.0, 128
    %569 = vxpose.xlu0.b32.cont [9/16] 0.0, 128
    %570 = vxpose.xlu0.b32.cont [10/16] 0.0, 128
    %571 = vxpose.xlu0.b32.cont [11/16] 0.0, 128
    %572 = vxpose.xlu0.b32.cont [12/16] 0.0, 128
    %573 = vxpose.xlu0.b32.cont [13/16] 0.0, 128
    %574 = vxpose.xlu0.b32.cont [14/16] 0.0, 128
    %575 = vxpose.xlu0.b32.cont [15/16] 0.0, 128
    %576 = vxpose.xlu0.b32.end [16/16] 0.0, 128
    %v577 = vpop.trf.xlu0
    %v578 = vpop.trf.xlu0
    %v579 = vpop.trf.xlu0
    %v580 = vpop.trf.xlu0
    %v581 = vpop.trf.xlu0
    %v582 = vpop.trf.xlu0
    %v583 = vpop.trf.xlu0
    %v584 = vpop.trf.xlu0
    %v585 = vpop.trf.xlu0
    %v586 = vpop.trf.xlu0
    %v587 = vpop.trf.xlu0
    %v588 = vpop.trf.xlu0
    %v589 = vpop.trf.xlu0
    %v590 = vpop.trf.xlu0
    %v591 = vpop.trf.xlu0
    %v592 = vpop.trf.xlu0
    %594 = vset.pattern.permute.xlu0 0
    %595 = vperm.xlu0 %594, %v539
    %v596 = vpop.permute.xlu0 %595
    %599 = vset.pattern.permute.xlu0 0
    %600 = vperm.xlu0 %599, %v540
    %v601 = vpop.permute.xlu0 %600
    %v603 = vperm.slane %v515, 0
    %v604 = vmul.f32 %v596, %v603
    %v605 = vmul.f32 %v601, %v603
    %v606 = vmul.f32 %v452, 0.0
    %v607 = vmul.f32 %v454, 0.0
    %v608 = vadd.f32 %v606, %v604
    %v609 = vadd.f32 %v607, %v605
    %611 = vset.pattern.permute.xlu0 0
    %612 = vperm.xlu0 %611, %v577
    %v613 = vpop.permute.xlu0 %612
    %616 = vset.pattern.permute.xlu0 0
    %617 = vperm.xlu0 %616, %v578
    %v618 = vpop.permute.xlu0 %617
    %v620 = vmul.f32 %v613, %v608
    %v621 = vmul.f32 %v618, %v609
    %v622 = vsel %vm81, %v620, 0.0
    %v623 = vsel %vm81, %v621, 0.0
    %v624 = vadd.f32 %v622, %v623
    %v625 = vrot.slane %v624, 4
    %v626 = vadd.f32 %v624, %v625
    %v627 = vrot.slane %v626, 2
    %v628 = vadd.f32 %v626, %v627
    %v629 = vrot.slane %v628, 1
    %v630 = vadd.f32 %v628, %v629
    %vm631 = vcmask 516096
    %632 = vst.msk [vmem:[#allocation3] sm:$0x1] %vm631, %v630
    %633 = vset.pattern.permute.xlu0 1
    %634 = vperm.xlu0 %633, %v539
    %v635 = vpop.permute.xlu0 %634
    %637 = vset.pattern.permute.xlu0 1
    %638 = vperm.xlu0 %637, %v540
    %v639 = vpop.permute.xlu0 %638
    %v641 = vperm.slane %v515, 1
    %v642 = vmul.f32 %v635, %v641
    %v643 = vmul.f32 %v639, %v641
    %v644 = vmul.f32 %v456, %v608
    %v645 = vmul.f32 %v458, %v609
    %v646 = vadd.f32 %v644, %v642
    %v647 = vadd.f32 %v645, %v643
    %648 = vset.pattern.permute.xlu0 1
    %649 = vperm.xlu0 %648, %v577
    %v650 = vpop.permute.xlu0 %649
    %652 = vset.pattern.permute.xlu0 1
    %653 = vperm.xlu0 %652, %v578
    %v654 = vpop.permute.xlu0 %653
    %v656 = vmul.f32 %v650, %v646
    %v657 = vmul.f32 %v654, %v647
    %v658 = vsel %vm81, %v656, 0.0
    %v659 = vsel %vm81, %v657, 0.0
    %v660 = vadd.f32 %v658, %v659
    %v661 = vrot.slane %v660, 4
    %v662 = vadd.f32 %v660, %v661
    %v663 = vrot.slane %v662, 2
    %v664 = vadd.f32 %v662, %v663
    %v665 = vrot.slane %v664, 1
    %v666 = vadd.f32 %v664, %v665
    %667 = vst.msk [vmem:[#allocation3 + $0x1] sm:$0x1] %vm631, %v666
    %668 = vset.pattern.permute.xlu0 2
    %669 = vperm.xlu0 %668, %v539
    %v670 = vpop.permute.xlu0 %669
    %672 = vset.pattern.permute.xlu0 2
    %673 = vperm.xlu0 %672, %v540
    %v674 = vpop.permute.xlu0 %673
    %v676 = vperm.slane %v515, 2
    %v677 = vmul.f32 %v670, %v676
    %v678 = vmul.f32 %v674, %v676
    %v679 = vmul.f32 %v460, %v646
    %v680 = vmul.f32 %v462, %v647
    %v681 = vadd.f32 %v679, %v677
    %v682 = vadd.f32 %v680, %v678
    %683 = vset.pattern.permute.xlu0 2
    %684 = vperm.xlu0 %683, %v577
    %v685 = vpop.permute.xlu0 %684
    %687 = vset.pattern.permute.xlu0 2
    %688 = vperm.xlu0 %687, %v578
    %v689 = vpop.permute.xlu0 %688
    %v691 = vmul.f32 %v685, %v681
    %v692 = vmul.f32 %v689, %v682
    %v693 = vsel %vm81, %v691, 0.0
    %v694 = vsel %vm81, %v692, 0.0
    %v695 = vadd.f32 %v693, %v694
    %v696 = vrot.slane %v695, 4
    %v697 = vadd.f32 %v695, %v696
    %v698 = vrot.slane %v697, 2
    %v699 = vadd.f32 %v697, %v698
    %v700 = vrot.slane %v699, 1
    %v701 = vadd.f32 %v699, %v700
    %702 = vst.msk [vmem:[#allocation3 + $0x2] sm:$0x1] %vm631, %v701
    %703 = vset.pattern.permute.xlu0 3
    %704 = vperm.xlu0 %703, %v539
    %v705 = vpop.permute.xlu0 %704
    %707 = vset.pattern.permute.xlu0 3
    %708 = vperm.xlu0 %707, %v540
    %v709 = vpop.permute.xlu0 %708
    %v711 = vperm.slane %v515, 3
    %v712 = vmul.f32 %v705, %v711
    %v713 = vmul.f32 %v709, %v711
    %v714 = vmul.f32 %v464, %v681
    %v715 = vmul.f32 %v466, %v682
    %v716 = vadd.f32 %v714, %v712
    %v717 = vadd.f32 %v715, %v713
    %718 = vset.pattern.permute.xlu0 3
    %719 = vperm.xlu0 %718, %v577
    %v720 = vpop.permute.xlu0 %719
    %722 = vset.pattern.permute.xlu0 3
    %723 = vperm.xlu0 %722, %v578
    %v724 = vpop.permute.xlu0 %723
    %v726 = vmul.f32 %v720, %v716
    %v727 = vmul.f32 %v724, %v717
    %v728 = vsel %vm81, %v726, 0.0
    %v729 = vsel %vm81, %v727, 0.0
    %v730 = vadd.f32 %v728, %v729
    %v731 = vrot.slane %v730, 4
    %v732 = vadd.f32 %v730, %v731
    %v733 = vrot.slane %v732, 2
    %v734 = vadd.f32 %v732, %v733
    %v735 = vrot.slane %v734, 1
    %v736 = vadd.f32 %v734, %v735
    %737 = vst.msk [vmem:[#allocation3 + $0x3] sm:$0x1] %vm631, %v736
    %738 = vset.pattern.permute.xlu0 4
    %739 = vperm.xlu0 %738, %v539
    %v740 = vpop.permute.xlu0 %739
    %742 = vset.pattern.permute.xlu0 4
    %743 = vperm.xlu0 %742, %v540
    %v744 = vpop.permute.xlu0 %743
    %v746 = vperm.slane %v515, 4
    %v747 = vmul.f32 %v740, %v746
    %v748 = vmul.f32 %v744, %v746
    %v749 = vmul.f32 %v468, %v716
    %v750 = vmul.f32 %v470, %v717
    %v751 = vadd.f32 %v749, %v747
    %v752 = vadd.f32 %v750, %v748
    %753 = vset.pattern.permute.xlu0 4
    %754 = vperm.xlu0 %753, %v577
    %v755 = vpop.permute.xlu0 %754
    %757 = vset.pattern.permute.xlu0 4
    %758 = vperm.xlu0 %757, %v578
    %v759 = vpop.permute.xlu0 %758
    %v761 = vmul.f32 %v755, %v751
    %v762 = vmul.f32 %v759, %v752
    %v763 = vsel %vm81, %v761, 0.0
    %v764 = vsel %vm81, %v762, 0.0
    %v765 = vadd.f32 %v763, %v764
    %v766 = vrot.slane %v765, 4
    %v767 = vadd.f32 %v765, %v766
    %v768 = vrot.slane %v767, 2
    %v769 = vadd.f32 %v767, %v768
    %v770 = vrot.slane %v769, 1
    %v771 = vadd.f32 %v769, %v770
    %772 = vst.msk [vmem:[#allocation3 + $0x4] sm:$0x1] %vm631, %v771
    %773 = vset.pattern.permute.xlu0 5
    %774 = vperm.xlu0 %773, %v539
    %v775 = vpop.permute.xlu0 %774
    %777 = vset.pattern.permute.xlu0 5
    %778 = vperm.xlu0 %777, %v540
    %v779 = vpop.permute.xlu0 %778
    %v781 = vperm.slane %v515, 5
    %v782 = vmul.f32 %v775, %v781
    %v783 = vmul.f32 %v779, %v781
    %v784 = vmul.f32 %v472, %v751
    %v785 = vmul.f32 %v474, %v752
    %v786 = vadd.f32 %v784, %v782
    %v787 = vadd.f32 %v785, %v783
    %788 = vset.pattern.permute.xlu0 5
    %789 = vperm.xlu0 %788, %v577
    %v790 = vpop.permute.xlu0 %789
    %792 = vset.pattern.permute.xlu0 5
    %793 = vperm.xlu0 %792, %v578
    %v794 = vpop.permute.xlu0 %793
    %v796 = vmul.f32 %v790, %v786
    %v797 = vmul.f32 %v794, %v787
    %v798 = vsel %vm81, %v796, 0.0
    %v799 = vsel %vm81, %v797, 0.0
    %v800 = vadd.f32 %v798, %v799
    %v801 = vrot.slane %v800, 4
    %v802 = vadd.f32 %v800, %v801
    %v803 = vrot.slane %v802, 2
    %v804 = vadd.f32 %v802, %v803
    %v805 = vrot.slane %v804, 1
    %v806 = vadd.f32 %v804, %v805
    %807 = vst.msk [vmem:[#allocation3 + $0x5] sm:$0x1] %vm631, %v806
    %808 = vset.pattern.permute.xlu0 6
    %809 = vperm.xlu0 %808, %v539
    %v810 = vpop.permute.xlu0 %809
    %812 = vset.pattern.permute.xlu0 6
    %813 = vperm.xlu0 %812, %v540
    %v814 = vpop.permute.xlu0 %813
    %v816 = vperm.slane %v515, 6
    %v817 = vmul.f32 %v810, %v816
    %v818 = vmul.f32 %v814, %v816
    %v819 = vmul.f32 %v476, %v786
    %v820 = vmul.f32 %v478, %v787
    %v821 = vadd.f32 %v819, %v817
    %v822 = vadd.f32 %v820, %v818
    %823 = vset.pattern.permute.xlu0 6
    %824 = vperm.xlu0 %823, %v577
    %v825 = vpop.permute.xlu0 %824
    %827 = vset.pattern.permute.xlu0 6
    %828 = vperm.xlu0 %827, %v578
    %v829 = vpop.permute.xlu0 %828
    %v831 = vmul.f32 %v825, %v821
    %v832 = vmul.f32 %v829, %v822
    %v833 = vsel %vm81, %v831, 0.0
    %v834 = vsel %vm81, %v832, 0.0
    %v835 = vadd.f32 %v833, %v834
    %v836 = vrot.slane %v835, 4
    %v837 = vadd.f32 %v835, %v836
    %v838 = vrot.slane %v837, 2
    %v839 = vadd.f32 %v837, %v838
    %v840 = vrot.slane %v839, 1
    %v841 = vadd.f32 %v839, %v840
    %842 = vst.msk [vmem:[#allocation3 + $0x6] sm:$0x1] %vm631, %v841
    %843 = vset.pattern.permute.xlu0 7
    %844 = vperm.xlu0 %843, %v539
    %v845 = vpop.permute.xlu0 %844
    %847 = vset.pattern.permute.xlu0 7
    %848 = vperm.xlu0 %847, %v540
    %v849 = vpop.permute.xlu0 %848
    %v851 = vperm.slane %v515, 7
    %v852 = vmul.f32 %v845, %v851
    %v853 = vmul.f32 %v849, %v851
    %v854 = vmul.f32 %v480, %v821
    %v855 = vmul.f32 %v482, %v822
    %v856 = vadd.f32 %v854, %v852
    %v857 = vadd.f32 %v855, %v853
    %858 = vset.pattern.permute.xlu0 7
    %859 = vperm.xlu0 %858, %v577
    %v860 = vpop.permute.xlu0 %859
    %862 = vset.pattern.permute.xlu0 7
    %863 = vperm.xlu0 %862, %v578
    %v864 = vpop.permute.xlu0 %863
    %v866 = vmul.f32 %v860, %v856
    %v867 = vmul.f32 %v864, %v857
    %v868 = vsel %vm81, %v866, 0.0
    %v869 = vsel %vm81, %v867, 0.0
    %v870 = vadd.f32 %v868, %v869
    %v871 = vrot.slane %v870, 4
    %v872 = vadd.f32 %v870, %v871
    %v873 = vrot.slane %v872, 2
    %v874 = vadd.f32 %v872, %v873
    %v875 = vrot.slane %v874, 1
    %v876 = vadd.f32 %v874, %v875
    %877 = vst.msk [vmem:[#allocation3 + $0x7] sm:$0x1] %vm631, %v876
    %878 = vset.pattern.permute.xlu0 8
    %879 = vperm.xlu0 %878, %v539
    %v880 = vpop.permute.xlu0 %879
    %882 = vset.pattern.permute.xlu0 8
    %883 = vperm.xlu0 %882, %v540
    %v884 = vpop.permute.xlu0 %883
    %v886 = vperm.slane %v516, 0
    %v887 = vmul.f32 %v880, %v886
    %v888 = vmul.f32 %v884, %v886
    %v889 = vmul.f32 %v484, 0.0
    %v890 = vmul.f32 %v486, 0.0
    %v891 = vadd.f32 %v889, %v887
    %v892 = vadd.f32 %v890, %v888
    %893 = vset.pattern.permute.xlu0 8
    %894 = vperm.xlu0 %893, %v577
    %v895 = vpop.permute.xlu0 %894
    %897 = vset.pattern.permute.xlu0 8
    %898 = vperm.xlu0 %897, %v578
    %v899 = vpop.permute.xlu0 %898
    %v901 = vmul.f32 %v895, %v891
    %v902 = vmul.f32 %v899, %v892
    %v903 = vsel %vm81, %v901, 0.0
    %v904 = vsel %vm81, %v902, 0.0
    %v905 = vadd.f32 %v903, %v904
    %v906 = vrot.slane %v905, 4
    %v907 = vadd.f32 %v905, %v906
    %v908 = vrot.slane %v907, 2
    %v909 = vadd.f32 %v907, %v908
    %v910 = vrot.slane %v909, 1
    %v911 = vadd.f32 %v909, %v910
    %912 = vst.msk [vmem:[#allocation3 + $0x8] sm:$0x1] %vm631, %v911
    %913 = vset.pattern.permute.xlu0 9
    %914 = vperm.xlu0 %913, %v539
    %v915 = vpop.permute.xlu0 %914
    %917 = vset.pattern.permute.xlu0 9
    %918 = vperm.xlu0 %917, %v540
    %v919 = vpop.permute.xlu0 %918
    %v921 = vperm.slane %v516, 1
    %v922 = vmul.f32 %v915, %v921
    %v923 = vmul.f32 %v919, %v921
    %v924 = vmul.f32 %v488, %v891
    %v925 = vmul.f32 %v490, %v892
    %v926 = vadd.f32 %v924, %v922
    %v927 = vadd.f32 %v925, %v923
    %928 = vset.pattern.permute.xlu0 9
    %929 = vperm.xlu0 %928, %v577
    %v930 = vpop.permute.xlu0 %929
    %932 = vset.pattern.permute.xlu0 9
    %933 = vperm.xlu0 %932, %v578
    %v934 = vpop.permute.xlu0 %933
    %v936 = vmul.f32 %v930, %v926
    %v937 = vmul.f32 %v934, %v927
    %v938 = vsel %vm81, %v936, 0.0
    %v939 = vsel %vm81, %v937, 0.0
    %v940 = vadd.f32 %v938, %v939
    %v941 = vrot.slane %v940, 4
    %v942 = vadd.f32 %v940, %v941
    %v943 = vrot.slane %v942, 2
    %v944 = vadd.f32 %v942, %v943
    %v945 = vrot.slane %v944, 1
    %v946 = vadd.f32 %v944, %v945
    %947 = vst.msk [vmem:[#allocation3 + $0x9] sm:$0x1] %vm631, %v946
    %948 = vset.pattern.permute.xlu0 10
    %949 = vperm.xlu0 %948, %v539
    %v950 = vpop.permute.xlu0 %949
    %952 = vset.pattern.permute.xlu0 10
    %953 = vperm.xlu0 %952, %v540
    %v954 = vpop.permute.xlu0 %953
    %v956 = vperm.slane %v516, 2
    %v957 = vmul.f32 %v950, %v956
    %v958 = vmul.f32 %v954, %v956
    %v959 = vmul.f32 %v492, %v926
    %v960 = vmul.f32 %v494, %v927
    %v961 = vadd.f32 %v959, %v957
    %v962 = vadd.f32 %v960, %v958
    %963 = vset.pattern.permute.xlu0 10
    %964 = vperm.xlu0 %963, %v577
    %v965 = vpop.permute.xlu0 %964
    %967 = vset.pattern.permute.xlu0 10
    %968 = vperm.xlu0 %967, %v578
    %v969 = vpop.permute.xlu0 %968
    %v971 = vmul.f32 %v965, %v961
    %v972 = vmul.f32 %v969, %v962
    %v973 = vsel %vm81, %v971, 0.0
    %v974 = vsel %vm81, %v972, 0.0
    %v975 = vadd.f32 %v973, %v974
    %v976 = vrot.slane %v975, 4
    %v977 = vadd.f32 %v975, %v976
    %v978 = vrot.slane %v977, 2
    %v979 = vadd.f32 %v977, %v978
    %v980 = vrot.slane %v979, 1
    %v981 = vadd.f32 %v979, %v980
    %982 = vst.msk [vmem:[#allocation3 + $0xa] sm:$0x1] %vm631, %v981
    %983 = vset.pattern.permute.xlu0 11
    %984 = vperm.xlu0 %983, %v539
    %v985 = vpop.permute.xlu0 %984
    %987 = vset.pattern.permute.xlu0 11
    %988 = vperm.xlu0 %987, %v540
    %v989 = vpop.permute.xlu0 %988
    %v991 = vperm.slane %v516, 3
    %v992 = vmul.f32 %v985, %v991
    %v993 = vmul.f32 %v989, %v991
    %v994 = vmul.f32 %v496, %v961
    %v995 = vmul.f32 %v498, %v962
    %v996 = vadd.f32 %v994, %v992
    %v997 = vadd.f32 %v995, %v993
    %998 = vset.pattern.permute.xlu0 11
    %999 = vperm.xlu0 %998, %v577
    %v1000 = vpop.permute.xlu0 %999
    %1002 = vset.pattern.permute.xlu0 11
    %1003 = vperm.xlu0 %1002, %v578
    %v1004 = vpop.permute.xlu0 %1003
    %v1006 = vmul.f32 %v1000, %v996
    %v1007 = vmul.f32 %v1004, %v997
    %v1008 = vsel %vm81, %v1006, 0.0
    %v1009 = vsel %vm81, %v1007, 0.0
    %v1010 = vadd.f32 %v1008, %v1009
    %v1011 = vrot.slane %v1010, 4
    %v1012 = vadd.f32 %v1010, %v1011
    %v1013 = vrot.slane %v1012, 2
    %v1014 = vadd.f32 %v1012, %v1013
    %v1015 = vrot.slane %v1014, 1
    %v1016 = vadd.f32 %v1014, %v1015
    %1017 = vst.msk [vmem:[#allocation3 + $0xb] sm:$0x1] %vm631, %v1016
    %1018 = vset.pattern.permute.xlu0 12
    %1019 = vperm.xlu0 %1018, %v539
    %v1020 = vpop.permute.xlu0 %1019
    %1022 = vset.pattern.permute.xlu0 12
    %1023 = vperm.xlu0 %1022, %v540
    %v1024 = vpop.permute.xlu0 %1023
    %v1026 = vperm.slane %v516, 4
    %v1027 = vmul.f32 %v1020, %v1026
    %v1028 = vmul.f32 %v1024, %v1026
    %v1029 = vmul.f32 %v500, %v996
    %v1030 = vmul.f32 %v502, %v997
    %v1031 = vadd.f32 %v1029, %v1027
    %v1032 = vadd.f32 %v1030, %v1028
    %1033 = vset.pattern.permute.xlu0 12
    %1034 = vperm.xlu0 %1033, %v577
    %v1035 = vpop.permute.xlu0 %1034
    %1037 = vset.pattern.permute.xlu0 12
    %1038 = vperm.xlu0 %1037, %v578
    %v1039 = vpop.permute.xlu0 %1038
    %v1041 = vmul.f32 %v1035, %v1031
    %v1042 = vmul.f32 %v1039, %v1032
    %v1043 = vsel %vm81, %v1041, 0.0
    %v1044 = vsel %vm81, %v1042, 0.0
    %v1045 = vadd.f32 %v1043, %v1044
    %v1046 = vrot.slane %v1045, 4
    %v1047 = vadd.f32 %v1045, %v1046
    %v1048 = vrot.slane %v1047, 2
    %v1049 = vadd.f32 %v1047, %v1048
    %v1050 = vrot.slane %v1049, 1
    %v1051 = vadd.f32 %v1049, %v1050
    %1052 = vst.msk [vmem:[#allocation3 + $0xc] sm:$0x1] %vm631, %v1051
    %1053 = vset.pattern.permute.xlu0 13
    %1054 = vperm.xlu0 %1053, %v539
    %v1055 = vpop.permute.xlu0 %1054
    %1057 = vset.pattern.permute.xlu0 13
    %1058 = vperm.xlu0 %1057, %v540
    %v1059 = vpop.permute.xlu0 %1058
    %v1061 = vperm.slane %v516, 5
    %v1062 = vmul.f32 %v1055, %v1061
    %v1063 = vmul.f32 %v1059, %v1061
    %v1064 = vmul.f32 %v504, %v1031
    %v1065 = vmul.f32 %v506, %v1032
    %v1066 = vadd.f32 %v1064, %v1062
    %v1067 = vadd.f32 %v1065, %v1063
    %1068 = vset.pattern.permute.xlu0 13
    %1069 = vperm.xlu0 %1068, %v577
    %v1070 = vpop.permute.xlu0 %1069
    %1072 = vset.pattern.permute.xlu0 13
    %1073 = vperm.xlu0 %1072, %v578
    %v1074 = vpop.permute.xlu0 %1073
    %v1076 = vmul.f32 %v1070, %v1066
    %v1077 = vmul.f32 %v1074, %v1067
    %v1078 = vsel %vm81, %v1076, 0.0
    %v1079 = vsel %vm81, %v1077, 0.0
    %v1080 = vadd.f32 %v1078, %v1079
    %v1081 = vrot.slane %v1080, 4
    %v1082 = vadd.f32 %v1080, %v1081
    %v1083 = vrot.slane %v1082, 2
    %v1084 = vadd.f32 %v1082, %v1083
    %v1085 = vrot.slane %v1084, 1
    %v1086 = vadd.f32 %v1084, %v1085
    %1087 = vst.msk [vmem:[#allocation3 + $0xd] sm:$0x1] %vm631, %v1086
    %1088 = vset.pattern.permute.xlu0 14
    %1089 = vperm.xlu0 %1088, %v539
    %v1090 = vpop.permute.xlu0 %1089
    %1092 = vset.pattern.permute.xlu0 14
    %1093 = vperm.xlu0 %1092, %v540
    %v1094 = vpop.permute.xlu0 %1093
    %v1096 = vperm.slane %v516, 6
    %v1097 = vmul.f32 %v1090, %v1096
    %v1098 = vmul.f32 %v1094, %v1096
    %v1099 = vmul.f32 %v508, %v1066
    %v1100 = vmul.f32 %v510, %v1067
    %v1101 = vadd.f32 %v1099, %v1097
    %v1102 = vadd.f32 %v1100, %v1098
    %1103 = vset.pattern.permute.xlu0 14
    %1104 = vperm.xlu0 %1103, %v577
    %v1105 = vpop.permute.xlu0 %1104
    %1107 = vset.pattern.permute.xlu0 14
    %1108 = vperm.xlu0 %1107, %v578
    %v1109 = vpop.permute.xlu0 %1108
    %v1111 = vmul.f32 %v1105, %v1101
    %v1112 = vmul.f32 %v1109, %v1102
    %v1113 = vsel %vm81, %v1111, 0.0
    %v1114 = vsel %vm81, %v1112, 0.0
    %v1115 = vadd.f32 %v1113, %v1114
    %v1116 = vrot.slane %v1115, 4
    %v1117 = vadd.f32 %v1115, %v1116
    %v1118 = vrot.slane %v1117, 2
    %v1119 = vadd.f32 %v1117, %v1118
    %v1120 = vrot.slane %v1119, 1
    %v1121 = vadd.f32 %v1119, %v1120
    %1122 = vst.msk [vmem:[#allocation3 + $0xe] sm:$0x1] %vm631, %v1121
    %1123 = vset.pattern.permute.xlu0 15
    %1124 = vperm.xlu0 %1123, %v539
    %v1125 = vpop.permute.xlu0 %1124
    %1127 = vset.pattern.permute.xlu0 15
    %1128 = vperm.xlu0 %1127, %v540
    %v1129 = vpop.permute.xlu0 %1128
    %v1131 = vperm.slane %v516, 7
    %v1132 = vmul.f32 %v1125, %v1131
    %v1133 = vmul.f32 %v1129, %v1131
    %v1134 = vmul.f32 %v512, %v1101
    %v1135 = vmul.f32 %v514, %v1102
    %v1136 = vadd.f32 %v1134, %v1132
    %v1137 = vadd.f32 %v1135, %v1133
    %1138 = vset.pattern.permute.xlu0 15
    %1139 = vperm.xlu0 %1138, %v577
    %v1140 = vpop.permute.xlu0 %1139
    %1142 = vset.pattern.permute.xlu0 15
    %1143 = vperm.xlu0 %1142, %v578
    %v1144 = vpop.permute.xlu0 %1143
    %v1146 = vmul.f32 %v1140, %v1136
    %v1147 = vmul.f32 %v1144, %v1137
    %v1148 = vsel %vm81, %v1146, 0.0
    %v1149 = vsel %vm81, %v1147, 0.0
    %v1150 = vadd.f32 %v1148, %v1149
    %v1151 = vrot.slane %v1150, 4
    %v1152 = vadd.f32 %v1150, %v1151
    %v1153 = vrot.slane %v1152, 2
    %v1154 = vadd.f32 %v1152, %v1153
    %v1155 = vrot.slane %v1154, 1
    %v1156 = vadd.f32 %v1154, %v1155
    %1157 = vst.msk [vmem:[#allocation3 + $0xf] sm:$0x1] %vm631, %v1156
    %v1158 = vld [vmem:[#allocation3] sm:$0xff]
    %v1159 = vld [vmem:[#allocation3 + $0x8] sm:$0xff]
    %v1160 = vld [vmem:[%s10] sm:$0x1]
    %v1162 = vperm.slane %v1160, 0
    %v1164 = vmul.f32 %v261, %v1162
    %v1165 = vmul.f32 %v262, %v1162
    %v1166 = vadd.f32 %v1158, %v1164
    %v1167 = vadd.f32 %v1159, %v1165
    %v1168 = vsub.f32 0.0, %v181
    %v1169 = vsub.f32 0.0, %v184
    %v1170 = vmul.f32 %v1168, 1.442695
    %v1171 = vpow.pop %v1170
    %v1172 = vmul.f32 %v1169, 1.442695
    %v1173 = vpow.pop %v1172
    %v1174 = vadd.f32 %v1171, 1.0
    %v1175 = vadd.f32 %v1173, 1.0
    %v1176 = vrcp.pop %v1174
    %v1177 = vmul.f32 %v1174, %v1176
    %v1178 = vsub.f32 1.0, %v1177
    %v1179 = vmul.f32 %v1176, %v1178
    %v1180 = vadd.f32 %v1176, %v1179
    %vm1181 = vweird.f32 %v1174
    %vm1182 = vweird.f32 %v1176
    %vm1183 = vmor %vm1181, %vm1182
    %v1184 = vsel %vm1183, %v1176, %v1180
    %v1185 = vand.u32 2147483647, %v1174
    %vm1186 = vcmp.eq.f32.partialorder %v1185, 8.507059e+37
    %v1187 = vand.u32 %v1174, 2147483648
    %v1188 = vor.u32 1.1754944e-38, %v1187
    %v1189 = vsel %vm1186, %v1188, %v1184
    %v1190 = vmul.f32 1.0, %v1189
    %v1191 = vrcp.pop %v1175
    %v1192 = vmul.f32 %v1175, %v1191
    %v1193 = vsub.f32 1.0, %v1192
    %v1194 = vmul.f32 %v1191, %v1193
    %v1195 = vadd.f32 %v1191, %v1194
    %vm1196 = vweird.f32 %v1175
    %vm1197 = vweird.f32 %v1191
    %vm1198 = vmor %vm1196, %vm1197
    %v1199 = vsel %vm1198, %v1191, %v1195
    %v1200 = vand.u32 2147483647, %v1175
    %vm1201 = vcmp.eq.f32.partialorder %v1200, 8.507059e+37
    %v1202 = vand.u32 %v1175, 2147483648
    %v1203 = vor.u32 1.1754944e-38, %v1202
    %v1204 = vsel %vm1201, %v1203, %v1199
    %v1205 = vmul.f32 1.0, %v1204
    %v1206 = vmul.f32 %v181, %v1190
    %v1207 = vmul.f32 %v184, %v1205
    %1210 = vrot.lane.b32.xlu0 %v1206, 64
    %v1211 = vpop.permute.xlu0 %1210
    %1212 = vrot.lane.b32.xlu0 %v1207, 64
    %v1213 = vpop.permute.xlu0 %1212
    %v1216 = vmul.f32 %v1166, %v1211
    %v1217 = vmul.f32 %v1167, %v1213
    %v1218 = vld [vmem:[%s11] sm:$0xff]
    %v1219 = vld [vmem:[%s11 + $0x8] sm:$0xff]
    %v1220 = vld [vmem:[%s11 + $0x10] sm:$0xff]
    %v1221 = vld [vmem:[%s11 + $0x18] sm:$0xff]
    %v1222 = vld [vmem:[%s11 + $0x20] sm:$0xff]
    %v1223 = vld [vmem:[%s11 + $0x28] sm:$0xff]
    %v1224 = vld [vmem:[%s11 + $0x30] sm:$0xff]
    %v1225 = vld [vmem:[%s11 + $0x38] sm:$0xff]
    %v1227 = vsel %vm81, %v1216, 0
    %v1230 = vsel %vm81, %v1217, 0
    %1232 = vmatpush.msra.mxu0 0.0
    %1233 = vmatpush.msra.mxu0 0.0
    %1234 = vmatpush.msra.mxu0 0.0
    %1235 = vmatpush.msra.mxu0 0.0
    %1236 = vmatpush.msra.mxu0 0.0
    %1237 = vmatpush.msra.mxu0 0.0
    %1238 = vmatpush.msra.mxu0 0.0
    %1239 = vmatpush.msra.mxu0 0.0
    %1240 = vmatpush.msra.mxu0 %v1225
    %1241 = vmatpush.msra.mxu0 %v1224
    %1242 = vmatpush.msra.mxu0 %v1223
    %1243 = vmatpush.msra.mxu0 %v1222
    %1244 = vmatpush.msra.mxu0 %v1221
    %1245 = vmatpush.msra.mxu0 %v1220
    %1246 = vmatpush.msra.mxu0 %v1219
    %1247 = vmatpush.msra.mxu0 %v1218
    %1248 = vmatmul.f32.gmra.mxu0 %v1227
    %v1249 = vpop.f32.mrf.mxu0
    %v1250 = vadd.f32 %v87, %v1249
    %1251 = vmatmul.f32.gmra.mxu0 %v1230
    %v1252 = vpop.f32.mrf.mxu0
    %v1253 = vadd.f32 %v88, %v1252
    %1254 = vdwg.mxu0
    %v1255 = vsel %vm89, %v1250, 0.0
    %1256 = vadd.xlane.f32.xlu0 %v1255
    %v1257 = vpop.xlane.xlu0 %1256
    %v1258 = vsel %vm89, %v1253, 0.0
    %1259 = vadd.xlane.f32.xlu0 %v1258
    %v1260 = vpop.xlane.xlu0 %1259
    %v1261 = vmul.f32 %v1257, %v102
    %v1262 = vmul.f32 %v1260, %v102
    %v1263 = vsub.f32 %v1250, %v1261
    %v1264 = vsub.f32 %v1253, %v1262
    %v1265 = vmul.f32 %v1263, %v1263
    %v1266 = vmul.f32 %v1264, %v1264
    %v1267 = vsel %vm89, %v1265, 0.0
    %1268 = vadd.xlane.f32.xlu0 %v1267
    %v1269 = vpop.xlane.xlu0 %1268
    %v1270 = vsel %vm89, %v1266, 0.0
    %1271 = vadd.xlane.f32.xlu0 %v1270
    %v1272 = vpop.xlane.xlu0 %1271
    %v1273 = vmul.f32 %v1269, %v102
    %v1274 = vmul.f32 %v1272, %v102
    %v1275 = vadd.f32 %v1273, 1e-05
    %v1276 = vadd.f32 %v1274, 1e-05
    %v1277 = vrsqrt.pop %v1275
    %v1278 = vmul.f32 %v1277, %v1275
    %v1279 = vmul.f32 %v1278, %v1277
    %v1280 = vmul.f32 0.5, %v1279
    %v1281 = vsub.f32 1.5, %v1280
    %v1282 = vmul.f32 %v1277, %v1281
    %vm1283 = vweird.f32 %v1275
    %vm1284 = vweird.f32 %v1277
    %vm1285 = vmor %vm1283, %vm1284
    %v1286 = vsel %vm1285, %v1277, %v1282
    %v1287 = vrsqrt.pop %v1276
    %v1288 = vmul.f32 %v1287, %v1276
    %v1289 = vmul.f32 %v1288, %v1287
    %v1290 = vmul.f32 0.5, %v1289
    %v1291 = vsub.f32 1.5, %v1290
    %v1292 = vmul.f32 %v1287, %v1291
    %vm1293 = vweird.f32 %v1276
    %vm1294 = vweird.f32 %v1287
    %vm1295 = vmor %vm1293, %vm1294
    %v1296 = vsel %vm1295, %v1287, %v1292
    %v1297 = vmul.f32 %v1263, %v1286
    %v1298 = vmul.f32 %v1264, %v1296
    %v1299 = vld [vmem:[%s12] sm:$0x1]
    %v1301 = vperm.slane %v1299, 0
    %v1303 = vmul.f32 %v1297, %v1301
    %v1304 = vmul.f32 %v1298, %v1301
    %v1305 = vld [vmem:[%s13] sm:$0x1]
    %v1307 = vperm.slane %v1305, 0
    %v1309 = vadd.f32 %v1303, %v1307
    %v1310 = vadd.f32 %v1304, %v1307
    %v1311 = vld [vmem:[%s14] sm:$0xff]
    %v1312 = vld [vmem:[%s14 + $0x8] sm:$0xff]
    %v1313 = vld [vmem:[%s14 + $0x10] sm:$0xff]
    %v1314 = vld [vmem:[%s14 + $0x18] sm:$0xff]
    %v1316 = vsel %vm89, %v1309, 0
    %v1319 = vsel %vm89, %v1310, 0
    %1321 = vmatpush.msra.mxu0 0.0
    %1322 = vmatpush.msra.mxu0 0.0
    %1323 = vmatpush.msra.mxu0 0.0
    %1324 = vmatpush.msra.mxu0 0.0
    %1325 = vmatpush.msra.mxu0 0.0
    %1326 = vmatpush.msra.mxu0 0.0
    %1327 = vmatpush.msra.mxu0 0.0
    %1328 = vmatpush.msra.mxu0 0.0
    %1329 = vmatpush.msra.mxu0 0.0
    %1330 = vmatpush.msra.mxu0 0.0
    %1331 = vmatpush.msra.mxu0 0.0
    %1332 = vmatpush.msra.mxu0 0.0
    %1333 = vmatpush.msra.mxu0 %v1314
    %1334 = vmatpush.msra.mxu0 %v1313
    %1335 = vmatpush.msra.mxu0 %v1312
    %1336 = vmatpush.msra.mxu0 %v1311
    %1337 = vmatmul.f32.gmra.mxu0 %v1316
    %v1338 = vpop.f32.mrf.mxu0
    %v1339 = vadd.f32 0.0, %v1338
    %1340 = vmatmul.f32.gmra.mxu0 %v1319
    %v1341 = vpop.f32.mrf.mxu0
    %v1342 = vadd.f32 0.0, %v1341
    %1343 = vdwg.mxu0
    %1344 = vst.msk [vmem:[#allocation2 + $0x3] sm:$0xff] %vm81, %v1339
    %1345 = vst.msk [vmem:[#allocation2 + $0x13] sm:$0xff] %vm81, %v1342
    %v1346 = vld [vmem:[%s15] sm:$0xf]
    %v1347 = vld [vmem:[#allocation2] sm:$0xff]
    %v1348 = vld [vmem:[#allocation2 + $0x10] sm:$0xff]
    %v1349 = vperm.slane %v1346, 0
    %v1350 = vmul.f32 %v1347, %v1349
    %v1351 = vmul.f32 %v1348, %v1349
    %v1352 = vadd.f32 %v1350, 0.0
    %v1353 = vadd.f32 %v1351, 0.0
    %v1354 = vld [vmem:[#allocation2 + $0x1] sm:$0xff]
    %v1355 = vld [vmem:[#allocation2 + $0x11] sm:$0xff]
    %v1356 = vperm.slane %v1346, 1
    %v1357 = vmul.f32 %v1354, %v1356
    %v1358 = vmul.f32 %v1355, %v1356
    %v1359 = vadd.f32 %v1352, %v1357
    %v1360 = vadd.f32 %v1353, %v1358
    %v1361 = vld [vmem:[#allocation2 + $0x2] sm:$0xff]
    %v1362 = vld [vmem:[#allocation2 + $0x12] sm:$0xff]
    %v1363 = vperm.slane %v1346, 2
    %v1364 = vmul.f32 %v1361, %v1363
    %v1365 = vmul.f32 %v1362, %v1363
    %v1366 = vadd.f32 %v1359, %v1364
    %v1367 = vadd.f32 %v1360, %v1365
    %v1368 = vld [vmem:[#allocation2 + $0x3] sm:$0xff]
    %v1369 = vld [vmem:[#allocation2 + $0x13] sm:$0xff]
    %v1370 = vperm.slane %v1346, 3
    %v1371 = vmul.f32 %v1368, %v1370
    %v1372 = vmul.f32 %v1369, %v1370
    %v1373 = vadd.f32 %v1366, %v1371
    %v1374 = vadd.f32 %v1367, %v1372
    %v1375 = vld [vmem:[%s16] sm:$0x1]
    %v1377 = vperm.slane %v1375, 0
    %v1379 = vadd.f32 %v1373, %v1377
    %v1380 = vadd.f32 %v1374, %v1377
    %v1381 = vsub.f32 0.0, %v1379
    %v1382 = vsub.f32 0.0, %v1380
    %v1383 = vmul.f32 %v1381, 1.442695
    %v1384 = vpow.pop %v1383
    %v1385 = vmul.f32 %v1382, 1.442695
    %v1386 = vpow.pop %v1385
    %v1387 = vadd.f32 %v1384, 1.0
    %v1388 = vadd.f32 %v1386, 1.0
    %v1389 = vrcp.pop %v1387
    %v1390 = vmul.f32 %v1387, %v1389
    %v1391 = vsub.f32 1.0, %v1390
    %v1392 = vmul.f32 %v1389, %v1391
    %v1393 = vadd.f32 %v1389, %v1392
    %vm1394 = vweird.f32 %v1387
    %vm1395 = vweird.f32 %v1389
    %vm1396 = vmor %vm1394, %vm1395
    %v1397 = vsel %vm1396, %v1389, %v1393
    %v1398 = vand.u32 2147483647, %v1387
    %vm1399 = vcmp.eq.f32.partialorder %v1398, 8.507059e+37
    %v1400 = vand.u32 %v1387, 2147483648
    %v1401 = vor.u32 1.1754944e-38, %v1400
    %v1402 = vsel %vm1399, %v1401, %v1397
    %v1403 = vmul.f32 1.0, %v1402
    %v1404 = vrcp.pop %v1388
    %v1405 = vmul.f32 %v1388, %v1404
    %v1406 = vsub.f32 1.0, %v1405
    %v1407 = vmul.f32 %v1404, %v1406
    %v1408 = vadd.f32 %v1404, %v1407
    %vm1409 = vweird.f32 %v1388
    %vm1410 = vweird.f32 %v1404
    %vm1411 = vmor %vm1409, %vm1410
    %v1412 = vsel %vm1411, %v1404, %v1408
    %v1413 = vand.u32 2147483647, %v1388
    %vm1414 = vcmp.eq.f32.partialorder %v1413, 8.507059e+37
    %v1415 = vand.u32 %v1388, 2147483648
    %v1416 = vor.u32 1.1754944e-38, %v1415
    %v1417 = vsel %vm1414, %v1416, %v1412
    %v1418 = vmul.f32 1.0, %v1417
    %v1419 = vmul.f32 %v1379, %v1403
    %v1420 = vmul.f32 %v1380, %v1418
    %v1421 = vld [vmem:[%s17] sm:$0xff]
    %v1422 = vld [vmem:[%s17 + $0x8] sm:$0xff]
    %v1423 = vld [vmem:[%s17 + $0x10] sm:$0xff]
    %v1424 = vld [vmem:[%s17 + $0x18] sm:$0xff]
    %v1425 = vld [vmem:[%s17 + $0x20] sm:$0xff]
    %v1426 = vld [vmem:[%s17 + $0x28] sm:$0xff]
    %v1427 = vld [vmem:[%s17 + $0x30] sm:$0xff]
    %v1428 = vld [vmem:[%s17 + $0x38] sm:$0xff]
    %v1430 = vsel %vm81, %v1419, 0
    %v1433 = vsel %vm81, %v1420, 0
    %1435 = vmatpush.msra.mxu0 0.0
    %1436 = vmatpush.msra.mxu0 0.0
    %1437 = vmatpush.msra.mxu0 0.0
    %1438 = vmatpush.msra.mxu0 0.0
    %1439 = vmatpush.msra.mxu0 0.0
    %1440 = vmatpush.msra.mxu0 0.0
    %1441 = vmatpush.msra.mxu0 0.0
    %1442 = vmatpush.msra.mxu0 0.0
    %1443 = vmatpush.msra.mxu0 %v1428
    %1444 = vmatpush.msra.mxu0 %v1427
    %1445 = vmatpush.msra.mxu0 %v1426
    %1446 = vmatpush.msra.mxu0 %v1425
    %1447 = vmatpush.msra.mxu0 %v1424
    %1448 = vmatpush.msra.mxu0 %v1423
    %1449 = vmatpush.msra.mxu0 %v1422
    %1450 = vmatpush.msra.mxu0 %v1421
    %1451 = vmatmul.f32.gmra.mxu0 %v1430
    %v1452 = vpop.f32.mrf.mxu0
    %v1453 = vadd.f32 0.0, %v1452
    %1454 = vmatmul.f32.gmra.mxu0 %v1433
    %v1455 = vpop.f32.mrf.mxu0
    %v1456 = vadd.f32 0.0, %v1455
    %1457 = vdwg.mxu0
    %v1458 = vld [vmem:[%s18] sm:$0x3]
    %v1459 = vld [vmem:[%s19] sm:$0x1]
    %v1461 = vperm.slane %v1459, 0
    %v1464 = vsel %vm305, %v1453, 0
    %v1467 = vsel %vm305, %v1456, 0
    %v1470 = vsel %vm312, %v1458, 0
    %1472 = vmatpush.msra.mxu0 0.0
    %1473 = vmatpush.msra.mxu0 0.0
    %1474 = vmatpush.msra.mxu0 0.0
    %1475 = vmatpush.msra.mxu0 0.0
    %1476 = vmatpush.msra.mxu0 0.0
    %1477 = vmatpush.msra.mxu0 0.0
    %1478 = vmatpush.msra.mxu0 0.0
    %1479 = vmatpush.msra.mxu0 0.0
    %1480 = vmatpush.msra.mxu0 0.0
    %1481 = vmatpush.msra.mxu0 0.0
    %1482 = vmatpush.msra.mxu0 0.0
    %1483 = vmatpush.msra.mxu0 0.0
    %1484 = vmatpush.msra.mxu0 0.0
    %1485 = vmatpush.msra.mxu0 0.0
    %1486 = vmatpush.msra.mxu0 0.0
    %1487 = vmatpush.msra.mxu0 %v1470
    %1488 = vmatmul.f32.gmra.mxu0 %v1464
    %v1489 = vpop.f32.mrf.mxu0
    %v1490 = vadd.f32 %v1461, %v1489
    %1491 = vmatmul.f32.gmra.mxu0 %v1467
    %v1492 = vpop.f32.mrf.mxu0
    %v1493 = vadd.f32 %v1461, %v1492
    %1494 = vdwg.mxu0
    %v1495 = vmax.f32 %v1490, 0.0
    %v1496 = vmax.f32 %v1493, 0.0
    %v1497 = vand.u32 2147483647, %v1490
    %v1498 = vand.u32 2147483647, %v1493
    %v1499 = vsub.f32 0.0, %v1497
    %v1500 = vsub.f32 0.0, %v1498
    %v1501 = vmul.f32 %v1499, 1.442695
    %v1502 = vpow.pop %v1501
    %v1503 = vmul.f32 %v1500, 1.442695
    %v1504 = vpow.pop %v1503
    %v1505 = vadd.f32 %v1502, 1.0
    %v1506 = vlog2.pop %v1505
    %v1507 = vmul.f32 %v1506, 0.6931472
    %v1508 = vmul.f32 -0.5, %v1502
    %v1509 = vadd.f32 %v1508, 1.0
    %v1510 = vmul.f32 %v1509, %v1502
    %v1511 = vand.u32 2147483647, %v1502
    %vm1512 = vcmp.lt.f32.partialorder %v1511, 0.0004427343
    %v1513 = vsel %vm1512, %v1510, %v1507
    %v1514 = vadd.f32 %v1504, 1.0
    %v1515 = vlog2.pop %v1514
    %v1516 = vmul.f32 %v1515, 0.6931472
    %v1517 = vmul.f32 -0.5, %v1504
    %v1518 = vadd.f32 %v1517, 1.0
    %v1519 = vmul.f32 %v1518, %v1504
    %v1520 = vand.u32 2147483647, %v1504
    %vm1521 = vcmp.lt.f32.partialorder %v1520, 0.0004427343
    %v1522 = vsel %vm1521, %v1519, %v1516
    %v1523 = vadd.f32 %v1495, %v1513
    %v1524 = vadd.f32 %v1496, %v1522
    %v1525 = vld [vmem:[%s20] sm:$0xff]
    %v1526 = vld [vmem:[%s20 + $0x8] sm:$0xff]
    %v1529 = vrot.slane %v1523, 1
    %v1530 = vrot.slane %v1523, 2
    %v1531 = vrot.slane %v1523, 3
    %v1532 = vrot.slane %v1523, 4
    %v1533 = vrot.slane %v1523, 5
    %v1534 = vrot.slane %v1523, 6
    %v1535 = vrot.slane %v1523, 7
    %v1536 = vrot.slane %v1524, 1
    %v1537 = vrot.slane %v1524, 2
    %v1538 = vrot.slane %v1524, 3
    %v1539 = vrot.slane %v1524, 4
    %v1540 = vrot.slane %v1524, 5
    %v1541 = vrot.slane %v1524, 6
    %v1542 = vrot.slane %v1524, 7
    %v1543 = vperm.slane %v1523, 0
    %v1544 = vperm.slane %v1529, 0
    %v1545 = vperm.slane %v1530, 0
    %v1546 = vperm.slane %v1531, 0
    %v1547 = vperm.slane %v1532, 0
    %v1548 = vperm.slane %v1533, 0
    %v1549 = vperm.slane %v1534, 0
    %v1550 = vperm.slane %v1535, 0
    %v1551 = vperm.slane %v1524, 0
    %v1552 = vperm.slane %v1536, 0
    %v1553 = vperm.slane %v1537, 0
    %v1554 = vperm.slane %v1538, 0
    %v1555 = vperm.slane %v1539, 0
    %v1556 = vperm.slane %v1540, 0
    %v1557 = vperm.slane %v1541, 0
    %v1558 = vperm.slane %v1542, 0
    %v1575 = vmul.f32 %v1543, %v1525
    %v1576 = vmul.f32 %v1543, %v1526
    %v1577 = vmul.f32 %v1544, %v1525
    %v1578 = vmul.f32 %v1544, %v1526
    %v1579 = vmul.f32 %v1545, %v1525
    %v1580 = vmul.f32 %v1545, %v1526
    %v1581 = vmul.f32 %v1546, %v1525
    %v1582 = vmul.f32 %v1546, %v1526
    %v1583 = vmul.f32 %v1547, %v1525
    %v1584 = vmul.f32 %v1547, %v1526
    %v1585 = vmul.f32 %v1548, %v1525
    %v1586 = vmul.f32 %v1548, %v1526
    %v1587 = vmul.f32 %v1549, %v1525
    %v1588 = vmul.f32 %v1549, %v1526
    %v1589 = vmul.f32 %v1550, %v1525
    %v1590 = vmul.f32 %v1550, %v1526
    %v1591 = vmul.f32 %v1551, %v1525
    %v1592 = vmul.f32 %v1551, %v1526
    %v1593 = vmul.f32 %v1552, %v1525
    %v1594 = vmul.f32 %v1552, %v1526
    %v1595 = vmul.f32 %v1553, %v1525
    %v1596 = vmul.f32 %v1553, %v1526
    %v1597 = vmul.f32 %v1554, %v1525
    %v1598 = vmul.f32 %v1554, %v1526
    %v1599 = vmul.f32 %v1555, %v1525
    %v1600 = vmul.f32 %v1555, %v1526
    %v1601 = vmul.f32 %v1556, %v1525
    %v1602 = vmul.f32 %v1556, %v1526
    %v1603 = vmul.f32 %v1557, %v1525
    %v1604 = vmul.f32 %v1557, %v1526
    %v1605 = vmul.f32 %v1558, %v1525
    %v1606 = vmul.f32 %v1558, %v1526
    %v1607 = vmul.f32 %v1575, 1.442695
    %v1608 = vpow.pop %v1607
    %v1609 = vmul.f32 %v1576, 1.442695
    %v1610 = vpow.pop %v1609
    %v1611 = vmul.f32 %v1577, 1.442695
    %v1612 = vpow.pop %v1611
    %v1613 = vmul.f32 %v1578, 1.442695
    %v1614 = vpow.pop %v1613
    %v1615 = vmul.f32 %v1579, 1.442695
    %v1616 = vpow.pop %v1615
    %v1617 = vmul.f32 %v1580, 1.442695
    %v1618 = vpow.pop %v1617
    %v1619 = vmul.f32 %v1581, 1.442695
    %v1620 = vpow.pop %v1619
    %v1621 = vmul.f32 %v1582, 1.442695
    %v1622 = vpow.pop %v1621
    %v1623 = vmul.f32 %v1583, 1.442695
    %v1624 = vpow.pop %v1623
    %v1625 = vmul.f32 %v1584, 1.442695
    %v1626 = vpow.pop %v1625
    %v1627 = vmul.f32 %v1585, 1.442695
    %v1628 = vpow.pop %v1627
    %v1629 = vmul.f32 %v1586, 1.442695
    %v1630 = vpow.pop %v1629
    %v1631 = vmul.f32 %v1587, 1.442695
    %v1632 = vpow.pop %v1631
    %v1633 = vmul.f32 %v1588, 1.442695
    %v1634 = vpow.pop %v1633
    %v1635 = vmul.f32 %v1589, 1.442695
    %v1636 = vpow.pop %v1635
    %v1637 = vmul.f32 %v1590, 1.442695
    %v1638 = vpow.pop %v1637
    %v1639 = vmul.f32 %v1591, 1.442695
    %v1640 = vpow.pop %v1639
    %v1641 = vmul.f32 %v1592, 1.442695
    %v1642 = vpow.pop %v1641
    %v1643 = vmul.f32 %v1593, 1.442695
    %v1644 = vpow.pop %v1643
    %v1645 = vmul.f32 %v1594, 1.442695
    %v1646 = vpow.pop %v1645
    %v1647 = vmul.f32 %v1595, 1.442695
    %v1648 = vpow.pop %v1647
    %v1649 = vmul.f32 %v1596, 1.442695
    %v1650 = vpow.pop %v1649
    %v1651 = vmul.f32 %v1597, 1.442695
    %v1652 = vpow.pop %v1651
    %v1653 = vmul.f32 %v1598, 1.442695
    %v1654 = vpow.pop %v1653
    %v1655 = vmul.f32 %v1599, 1.442695
    %v1656 = vpow.pop %v1655
    %v1657 = vmul.f32 %v1600, 1.442695
    %v1658 = vpow.pop %v1657
    %v1659 = vmul.f32 %v1601, 1.442695
    %v1660 = vpow.pop %v1659
    %v1661 = vmul.f32 %v1602, 1.442695
    %v1662 = vpow.pop %v1661
    %v1663 = vmul.f32 %v1603, 1.442695
    %v1664 = vpow.pop %v1663
    %v1665 = vmul.f32 %v1604, 1.442695
    %v1666 = vpow.pop %v1665
    %v1667 = vmul.f32 %v1605, 1.442695
    %v1668 = vpow.pop %v1667
    %v1669 = vmul.f32 %v1606, 1.442695
    %v1670 = vpow.pop %v1669
    %v1671 = vmul.f32 %v1523, %v1419
    %v1672 = vmul.f32 %v1524, %v1420
    %1673 = vrot.lane.b32.xlu0 %v1453, 126
    %v1674 = vpop.permute.xlu0 %1673
    %1675 = vrot.lane.b32.xlu0 %v1456, 126
    %v1676 = vpop.permute.xlu0 %1675
    %1679 = vxpose.xlu0.b32.start [1/16] %v1674, 128
    %1680 = vxpose.xlu0.b32.cont [2/16] %v1676, 128
    %1681 = vxpose.xlu0.b32.cont [3/16] 0.0, 128
    %1682 = vxpose.xlu0.b32.cont [4/16] 0.0, 128
    %1683 = vxpose.xlu0.b32.cont [5/16] 0.0, 128
    %1684 = vxpose.xlu0.b32.cont [6/16] 0.0, 128
    %1685 = vxpose.xlu0.b32.cont [7/16] 0.0, 128
    %1686 = vxpose.xlu0.b32.cont [8/16] 0.0, 128
    %1687 = vxpose.xlu0.b32.cont [9/16] 0.0, 128
    %1688 = vxpose.xlu0.b32.cont [10/16] 0.0, 128
    %1689 = vxpose.xlu0.b32.cont [11/16] 0.0, 128
    %1690 = vxpose.xlu0.b32.cont [12/16] 0.0, 128
    %1691 = vxpose.xlu0.b32.cont [13/16] 0.0, 128
    %1692 = vxpose.xlu0.b32.cont [14/16] 0.0, 128
    %1693 = vxpose.xlu0.b32.cont [15/16] 0.0, 128
    %1694 = vxpose.xlu0.b32.end [16/16] 0.0, 128
    %v1695 = vpop.trf.xlu0
    %v1696 = vpop.trf.xlu0
    %v1697 = vpop.trf.xlu0
    %v1698 = vpop.trf.xlu0
    %v1699 = vpop.trf.xlu0
    %v1700 = vpop.trf.xlu0
    %v1701 = vpop.trf.xlu0
    %v1702 = vpop.trf.xlu0
    %v1703 = vpop.trf.xlu0
    %v1704 = vpop.trf.xlu0
    %v1705 = vpop.trf.xlu0
    %v1706 = vpop.trf.xlu0
    %v1707 = vpop.trf.xlu0
    %v1708 = vpop.trf.xlu0
    %v1709 = vpop.trf.xlu0
    %v1710 = vpop.trf.xlu0
    %1711 = vrot.lane.b32.xlu0 %v1453, 110
    %v1712 = vpop.permute.xlu0 %1711
    %1713 = vrot.lane.b32.xlu0 %v1456, 110
    %v1714 = vpop.permute.xlu0 %1713
    %1717 = vxpose.xlu0.b32.start [1/16] %v1712, 128
    %1718 = vxpose.xlu0.b32.cont [2/16] %v1714, 128
    %1719 = vxpose.xlu0.b32.cont [3/16] 0.0, 128
    %1720 = vxpose.xlu0.b32.cont [4/16] 0.0, 128
    %1721 = vxpose.xlu0.b32.cont [5/16] 0.0, 128
    %1722 = vxpose.xlu0.b32.cont [6/16] 0.0, 128
    %1723 = vxpose.xlu0.b32.cont [7/16] 0.0, 128
    %1724 = vxpose.xlu0.b32.cont [8/16] 0.0, 128
    %1725 = vxpose.xlu0.b32.cont [9/16] 0.0, 128
    %1726 = vxpose.xlu0.b32.cont [10/16] 0.0, 128
    %1727 = vxpose.xlu0.b32.cont [11/16] 0.0, 128
    %1728 = vxpose.xlu0.b32.cont [12/16] 0.0, 128
    %1729 = vxpose.xlu0.b32.cont [13/16] 0.0, 128
    %1730 = vxpose.xlu0.b32.cont [14/16] 0.0, 128
    %1731 = vxpose.xlu0.b32.cont [15/16] 0.0, 128
    %1732 = vxpose.xlu0.b32.end [16/16] 0.0, 128
    %v1733 = vpop.trf.xlu0
    %v1734 = vpop.trf.xlu0
    %v1735 = vpop.trf.xlu0
    %v1736 = vpop.trf.xlu0
    %v1737 = vpop.trf.xlu0
    %v1738 = vpop.trf.xlu0
    %v1739 = vpop.trf.xlu0
    %v1740 = vpop.trf.xlu0
    %v1741 = vpop.trf.xlu0
    %v1742 = vpop.trf.xlu0
    %v1743 = vpop.trf.xlu0
    %v1744 = vpop.trf.xlu0
    %v1745 = vpop.trf.xlu0
    %v1746 = vpop.trf.xlu0
    %v1747 = vpop.trf.xlu0
    %v1748 = vpop.trf.xlu0
    %1750 = vset.pattern.permute.xlu0 0
    %1751 = vperm.xlu0 %1750, %v1695
    %v1752 = vpop.permute.xlu0 %1751
    %1755 = vset.pattern.permute.xlu0 0
    %1756 = vperm.xlu0 %1755, %v1696
    %v1757 = vpop.permute.xlu0 %1756
    %v1759 = vperm.slane %v1671, 0
    %v1760 = vmul.f32 %v1752, %v1759
    %v1761 = vmul.f32 %v1757, %v1759
    %v1762 = vmul.f32 %v1608, 0.0
    %v1763 = vmul.f32 %v1610, 0.0
    %v1764 = vadd.f32 %v1762, %v1760
    %v1765 = vadd.f32 %v1763, %v1761
    %1767 = vset.pattern.permute.xlu0 0
    %1768 = vperm.xlu0 %1767, %v1733
    %v1769 = vpop.permute.xlu0 %1768
    %1772 = vset.pattern.permute.xlu0 0
    %1773 = vperm.xlu0 %1772, %v1734
    %v1774 = vpop.permute.xlu0 %1773
    %v1776 = vmul.f32 %v1769, %v1764
    %v1777 = vmul.f32 %v1774, %v1765
    %v1778 = vsel %vm81, %v1776, 0.0
    %v1779 = vsel %vm81, %v1777, 0.0
    %v1780 = vadd.f32 %v1778, %v1779
    %v1781 = vrot.slane %v1780, 4
    %v1782 = vadd.f32 %v1780, %v1781
    %v1783 = vrot.slane %v1782, 2
    %v1784 = vadd.f32 %v1782, %v1783
    %v1785 = vrot.slane %v1784, 1
    %v1786 = vadd.f32 %v1784, %v1785
    %1787 = vst.msk [vmem:[#allocation3] sm:$0x1] %vm631, %v1786
    %1788 = vset.pattern.permute.xlu0 1
    %1789 = vperm.xlu0 %1788, %v1695
    %v1790 = vpop.permute.xlu0 %1789
    %1792 = vset.pattern.permute.xlu0 1
    %1793 = vperm.xlu0 %1792, %v1696
    %v1794 = vpop.permute.xlu0 %1793
    %v1796 = vperm.slane %v1671, 1
    %v1797 = vmul.f32 %v1790, %v1796
    %v1798 = vmul.f32 %v1794, %v1796
    %v1799 = vmul.f32 %v1612, %v1764
    %v1800 = vmul.f32 %v1614, %v1765
    %v1801 = vadd.f32 %v1799, %v1797
    %v1802 = vadd.f32 %v1800, %v1798
    %1803 = vset.pattern.permute.xlu0 1
    %1804 = vperm.xlu0 %1803, %v1733
    %v1805 = vpop.permute.xlu0 %1804
    %1807 = vset.pattern.permute.xlu0 1
    %1808 = vperm.xlu0 %1807, %v1734
    %v1809 = vpop.permute.xlu0 %1808
    %v1811 = vmul.f32 %v1805, %v1801
    %v1812 = vmul.f32 %v1809, %v1802
    %v1813 = vsel %vm81, %v1811, 0.0
    %v1814 = vsel %vm81, %v1812, 0.0
    %v1815 = vadd.f32 %v1813, %v1814
    %v1816 = vrot.slane %v1815, 4
    %v1817 = vadd.f32 %v1815, %v1816
    %v1818 = vrot.slane %v1817, 2
    %v1819 = vadd.f32 %v1817, %v1818
    %v1820 = vrot.slane %v1819, 1
    %v1821 = vadd.f32 %v1819, %v1820
    %1822 = vst.msk [vmem:[#allocation3 + $0x1] sm:$0x1] %vm631, %v1821
    %1823 = vset.pattern.permute.xlu0 2
    %1824 = vperm.xlu0 %1823, %v1695
    %v1825 = vpop.permute.xlu0 %1824
    %1827 = vset.pattern.permute.xlu0 2
    %1828 = vperm.xlu0 %1827, %v1696
    %v1829 = vpop.permute.xlu0 %1828
    %v1831 = vperm.slane %v1671, 2
    %v1832 = vmul.f32 %v1825, %v1831
    %v1833 = vmul.f32 %v1829, %v1831
    %v1834 = vmul.f32 %v1616, %v1801
    %v1835 = vmul.f32 %v1618, %v1802
    %v1836 = vadd.f32 %v1834, %v1832
    %v1837 = vadd.f32 %v1835, %v1833
    %1838 = vset.pattern.permute.xlu0 2
    %1839 = vperm.xlu0 %1838, %v1733
    %v1840 = vpop.permute.xlu0 %1839
    %1842 = vset.pattern.permute.xlu0 2
    %1843 = vperm.xlu0 %1842, %v1734
    %v1844 = vpop.permute.xlu0 %1843
    %v1846 = vmul.f32 %v1840, %v1836
    %v1847 = vmul.f32 %v1844, %v1837
    %v1848 = vsel %vm81, %v1846, 0.0
    %v1849 = vsel %vm81, %v1847, 0.0
    %v1850 = vadd.f32 %v1848, %v1849
    %v1851 = vrot.slane %v1850, 4
    %v1852 = vadd.f32 %v1850, %v1851
    %v1853 = vrot.slane %v1852, 2
    %v1854 = vadd.f32 %v1852, %v1853
    %v1855 = vrot.slane %v1854, 1
    %v1856 = vadd.f32 %v1854, %v1855
    %1857 = vst.msk [vmem:[#allocation3 + $0x2] sm:$0x1] %vm631, %v1856
    %1858 = vset.pattern.permute.xlu0 3
    %1859 = vperm.xlu0 %1858, %v1695
    %v1860 = vpop.permute.xlu0 %1859
    %1862 = vset.pattern.permute.xlu0 3
    %1863 = vperm.xlu0 %1862, %v1696
    %v1864 = vpop.permute.xlu0 %1863
    %v1866 = vperm.slane %v1671, 3
    %v1867 = vmul.f32 %v1860, %v1866
    %v1868 = vmul.f32 %v1864, %v1866
    %v1869 = vmul.f32 %v1620, %v1836
    %v1870 = vmul.f32 %v1622, %v1837
    %v1871 = vadd.f32 %v1869, %v1867
    %v1872 = vadd.f32 %v1870, %v1868
    %1873 = vset.pattern.permute.xlu0 3
    %1874 = vperm.xlu0 %1873, %v1733
    %v1875 = vpop.permute.xlu0 %1874
    %1877 = vset.pattern.permute.xlu0 3
    %1878 = vperm.xlu0 %1877, %v1734
    %v1879 = vpop.permute.xlu0 %1878
    %v1881 = vmul.f32 %v1875, %v1871
    %v1882 = vmul.f32 %v1879, %v1872
    %v1883 = vsel %vm81, %v1881, 0.0
    %v1884 = vsel %vm81, %v1882, 0.0
    %v1885 = vadd.f32 %v1883, %v1884
    %v1886 = vrot.slane %v1885, 4
    %v1887 = vadd.f32 %v1885, %v1886
    %v1888 = vrot.slane %v1887, 2
    %v1889 = vadd.f32 %v1887, %v1888
    %v1890 = vrot.slane %v1889, 1
    %v1891 = vadd.f32 %v1889, %v1890
    %1892 = vst.msk [vmem:[#allocation3 + $0x3] sm:$0x1] %vm631, %v1891
    %1893 = vset.pattern.permute.xlu0 4
    %1894 = vperm.xlu0 %1893, %v1695
    %v1895 = vpop.permute.xlu0 %1894
    %1897 = vset.pattern.permute.xlu0 4
    %1898 = vperm.xlu0 %1897, %v1696
    %v1899 = vpop.permute.xlu0 %1898
    %v1901 = vperm.slane %v1671, 4
    %v1902 = vmul.f32 %v1895, %v1901
    %v1903 = vmul.f32 %v1899, %v1901
    %v1904 = vmul.f32 %v1624, %v1871
    %v1905 = vmul.f32 %v1626, %v1872
    %v1906 = vadd.f32 %v1904, %v1902
    %v1907 = vadd.f32 %v1905, %v1903
    %1908 = vset.pattern.permute.xlu0 4
    %1909 = vperm.xlu0 %1908, %v1733
    %v1910 = vpop.permute.xlu0 %1909
    %1912 = vset.pattern.permute.xlu0 4
    %1913 = vperm.xlu0 %1912, %v1734
    %v1914 = vpop.permute.xlu0 %1913
    %v1916 = vmul.f32 %v1910, %v1906
    %v1917 = vmul.f32 %v1914, %v1907
    %v1918 = vsel %vm81, %v1916, 0.0
    %v1919 = vsel %vm81, %v1917, 0.0
    %v1920 = vadd.f32 %v1918, %v1919
    %v1921 = vrot.slane %v1920, 4
    %v1922 = vadd.f32 %v1920, %v1921
    %v1923 = vrot.slane %v1922, 2
    %v1924 = vadd.f32 %v1922, %v1923
    %v1925 = vrot.slane %v1924, 1
    %v1926 = vadd.f32 %v1924, %v1925
    %1927 = vst.msk [vmem:[#allocation3 + $0x4] sm:$0x1] %vm631, %v1926
    %1928 = vset.pattern.permute.xlu0 5
    %1929 = vperm.xlu0 %1928, %v1695
    %v1930 = vpop.permute.xlu0 %1929
    %1932 = vset.pattern.permute.xlu0 5
    %1933 = vperm.xlu0 %1932, %v1696
    %v1934 = vpop.permute.xlu0 %1933
    %v1936 = vperm.slane %v1671, 5
    %v1937 = vmul.f32 %v1930, %v1936
    %v1938 = vmul.f32 %v1934, %v1936
    %v1939 = vmul.f32 %v1628, %v1906
    %v1940 = vmul.f32 %v1630, %v1907
    %v1941 = vadd.f32 %v1939, %v1937
    %v1942 = vadd.f32 %v1940, %v1938
    %1943 = vset.pattern.permute.xlu0 5
    %1944 = vperm.xlu0 %1943, %v1733
    %v1945 = vpop.permute.xlu0 %1944
    %1947 = vset.pattern.permute.xlu0 5
    %1948 = vperm.xlu0 %1947, %v1734
    %v1949 = vpop.permute.xlu0 %1948
    %v1951 = vmul.f32 %v1945, %v1941
    %v1952 = vmul.f32 %v1949, %v1942
    %v1953 = vsel %vm81, %v1951, 0.0
    %v1954 = vsel %vm81, %v1952, 0.0
    %v1955 = vadd.f32 %v1953, %v1954
    %v1956 = vrot.slane %v1955, 4
    %v1957 = vadd.f32 %v1955, %v1956
    %v1958 = vrot.slane %v1957, 2
    %v1959 = vadd.f32 %v1957, %v1958
    %v1960 = vrot.slane %v1959, 1
    %v1961 = vadd.f32 %v1959, %v1960
    %1962 = vst.msk [vmem:[#allocation3 + $0x5] sm:$0x1] %vm631, %v1961
    %1963 = vset.pattern.permute.xlu0 6
    %1964 = vperm.xlu0 %1963, %v1695
    %v1965 = vpop.permute.xlu0 %1964
    %1967 = vset.pattern.permute.xlu0 6
    %1968 = vperm.xlu0 %1967, %v1696
    %v1969 = vpop.permute.xlu0 %1968
    %v1971 = vperm.slane %v1671, 6
    %v1972 = vmul.f32 %v1965, %v1971
    %v1973 = vmul.f32 %v1969, %v1971
    %v1974 = vmul.f32 %v1632, %v1941
    %v1975 = vmul.f32 %v1634, %v1942
    %v1976 = vadd.f32 %v1974, %v1972
    %v1977 = vadd.f32 %v1975, %v1973
    %1978 = vset.pattern.permute.xlu0 6
    %1979 = vperm.xlu0 %1978, %v1733
    %v1980 = vpop.permute.xlu0 %1979
    %1982 = vset.pattern.permute.xlu0 6
    %1983 = vperm.xlu0 %1982, %v1734
    %v1984 = vpop.permute.xlu0 %1983
    %v1986 = vmul.f32 %v1980, %v1976
    %v1987 = vmul.f32 %v1984, %v1977
    %v1988 = vsel %vm81, %v1986, 0.0
    %v1989 = vsel %vm81, %v1987, 0.0
    %v1990 = vadd.f32 %v1988, %v1989
    %v1991 = vrot.slane %v1990, 4
    %v1992 = vadd.f32 %v1990, %v1991
    %v1993 = vrot.slane %v1992, 2
    %v1994 = vadd.f32 %v1992, %v1993
    %v1995 = vrot.slane %v1994, 1
    %v1996 = vadd.f32 %v1994, %v1995
    %1997 = vst.msk [vmem:[#allocation3 + $0x6] sm:$0x1] %vm631, %v1996
    %1998 = vset.pattern.permute.xlu0 7
    %1999 = vperm.xlu0 %1998, %v1695
    %v2000 = vpop.permute.xlu0 %1999
    %2002 = vset.pattern.permute.xlu0 7
    %2003 = vperm.xlu0 %2002, %v1696
    %v2004 = vpop.permute.xlu0 %2003
    %v2006 = vperm.slane %v1671, 7
    %v2007 = vmul.f32 %v2000, %v2006
    %v2008 = vmul.f32 %v2004, %v2006
    %v2009 = vmul.f32 %v1636, %v1976
    %v2010 = vmul.f32 %v1638, %v1977
    %v2011 = vadd.f32 %v2009, %v2007
    %v2012 = vadd.f32 %v2010, %v2008
    %2013 = vset.pattern.permute.xlu0 7
    %2014 = vperm.xlu0 %2013, %v1733
    %v2015 = vpop.permute.xlu0 %2014
    %2017 = vset.pattern.permute.xlu0 7
    %2018 = vperm.xlu0 %2017, %v1734
    %v2019 = vpop.permute.xlu0 %2018
    %v2021 = vmul.f32 %v2015, %v2011
    %v2022 = vmul.f32 %v2019, %v2012
    %v2023 = vsel %vm81, %v2021, 0.0
    %v2024 = vsel %vm81, %v2022, 0.0
    %v2025 = vadd.f32 %v2023, %v2024
    %v2026 = vrot.slane %v2025, 4
    %v2027 = vadd.f32 %v2025, %v2026
    %v2028 = vrot.slane %v2027, 2
    %v2029 = vadd.f32 %v2027, %v2028
    %v2030 = vrot.slane %v2029, 1
    %v2031 = vadd.f32 %v2029, %v2030
    %2032 = vst.msk [vmem:[#allocation3 + $0x7] sm:$0x1] %vm631, %v2031
    %2033 = vset.pattern.permute.xlu0 8
    %2034 = vperm.xlu0 %2033, %v1695
    %v2035 = vpop.permute.xlu0 %2034
    %2037 = vset.pattern.permute.xlu0 8
    %2038 = vperm.xlu0 %2037, %v1696
    %v2039 = vpop.permute.xlu0 %2038
    %v2041 = vperm.slane %v1672, 0
    %v2042 = vmul.f32 %v2035, %v2041
    %v2043 = vmul.f32 %v2039, %v2041
    %v2044 = vmul.f32 %v1640, 0.0
    %v2045 = vmul.f32 %v1642, 0.0
    %v2046 = vadd.f32 %v2044, %v2042
    %v2047 = vadd.f32 %v2045, %v2043
    %2048 = vset.pattern.permute.xlu0 8
    %2049 = vperm.xlu0 %2048, %v1733
    %v2050 = vpop.permute.xlu0 %2049
    %2052 = vset.pattern.permute.xlu0 8
    %2053 = vperm.xlu0 %2052, %v1734
    %v2054 = vpop.permute.xlu0 %2053
    %v2056 = vmul.f32 %v2050, %v2046
    %v2057 = vmul.f32 %v2054, %v2047
    %v2058 = vsel %vm81, %v2056, 0.0
    %v2059 = vsel %vm81, %v2057, 0.0
    %v2060 = vadd.f32 %v2058, %v2059
    %v2061 = vrot.slane %v2060, 4
    %v2062 = vadd.f32 %v2060, %v2061
    %v2063 = vrot.slane %v2062, 2
    %v2064 = vadd.f32 %v2062, %v2063
    %v2065 = vrot.slane %v2064, 1
    %v2066 = vadd.f32 %v2064, %v2065
    %2067 = vst.msk [vmem:[#allocation3 + $0x8] sm:$0x1] %vm631, %v2066
    %2068 = vset.pattern.permute.xlu0 9
    %2069 = vperm.xlu0 %2068, %v1695
    %v2070 = vpop.permute.xlu0 %2069
    %2072 = vset.pattern.permute.xlu0 9
    %2073 = vperm.xlu0 %2072, %v1696
    %v2074 = vpop.permute.xlu0 %2073
    %v2076 = vperm.slane %v1672, 1
    %v2077 = vmul.f32 %v2070, %v2076
    %v2078 = vmul.f32 %v2074, %v2076
    %v2079 = vmul.f32 %v1644, %v2046
    %v2080 = vmul.f32 %v1646, %v2047
    %v2081 = vadd.f32 %v2079, %v2077
    %v2082 = vadd.f32 %v2080, %v2078
    %2083 = vset.pattern.permute.xlu0 9
    %2084 = vperm.xlu0 %2083, %v1733
    %v2085 = vpop.permute.xlu0 %2084
    %2087 = vset.pattern.permute.xlu0 9
    %2088 = vperm.xlu0 %2087, %v1734
    %v2089 = vpop.permute.xlu0 %2088
    %v2091 = vmul.f32 %v2085, %v2081
    %v2092 = vmul.f32 %v2089, %v2082
    %v2093 = vsel %vm81, %v2091, 0.0
    %v2094 = vsel %vm81, %v2092, 0.0
    %v2095 = vadd.f32 %v2093, %v2094
    %v2096 = vrot.slane %v2095, 4
    %v2097 = vadd.f32 %v2095, %v2096
    %v2098 = vrot.slane %v2097, 2
    %v2099 = vadd.f32 %v2097, %v2098
    %v2100 = vrot.slane %v2099, 1
    %v2101 = vadd.f32 %v2099, %v2100
    %2102 = vst.msk [vmem:[#allocation3 + $0x9] sm:$0x1] %vm631, %v2101
    %2103 = vset.pattern.permute.xlu0 10
    %2104 = vperm.xlu0 %2103, %v1695
    %v2105 = vpop.permute.xlu0 %2104
    %2107 = vset.pattern.permute.xlu0 10
    %2108 = vperm.xlu0 %2107, %v1696
    %v2109 = vpop.permute.xlu0 %2108
    %v2111 = vperm.slane %v1672, 2
    %v2112 = vmul.f32 %v2105, %v2111
    %v2113 = vmul.f32 %v2109, %v2111
    %v2114 = vmul.f32 %v1648, %v2081
    %v2115 = vmul.f32 %v1650, %v2082
    %v2116 = vadd.f32 %v2114, %v2112
    %v2117 = vadd.f32 %v2115, %v2113
    %2118 = vset.pattern.permute.xlu0 10
    %2119 = vperm.xlu0 %2118, %v1733
    %v2120 = vpop.permute.xlu0 %2119
    %2122 = vset.pattern.permute.xlu0 10
    %2123 = vperm.xlu0 %2122, %v1734
    %v2124 = vpop.permute.xlu0 %2123
    %v2126 = vmul.f32 %v2120, %v2116
    %v2127 = vmul.f32 %v2124, %v2117
    %v2128 = vsel %vm81, %v2126, 0.0
    %v2129 = vsel %vm81, %v2127, 0.0
    %v2130 = vadd.f32 %v2128, %v2129
    %v2131 = vrot.slane %v2130, 4
    %v2132 = vadd.f32 %v2130, %v2131
    %v2133 = vrot.slane %v2132, 2
    %v2134 = vadd.f32 %v2132, %v2133
    %v2135 = vrot.slane %v2134, 1
    %v2136 = vadd.f32 %v2134, %v2135
    %2137 = vst.msk [vmem:[#allocation3 + $0xa] sm:$0x1] %vm631, %v2136
    %2138 = vset.pattern.permute.xlu0 11
    %2139 = vperm.xlu0 %2138, %v1695
    %v2140 = vpop.permute.xlu0 %2139
    %2142 = vset.pattern.permute.xlu0 11
    %2143 = vperm.xlu0 %2142, %v1696
    %v2144 = vpop.permute.xlu0 %2143
    %v2146 = vperm.slane %v1672, 3
    %v2147 = vmul.f32 %v2140, %v2146
    %v2148 = vmul.f32 %v2144, %v2146
    %v2149 = vmul.f32 %v1652, %v2116
    %v2150 = vmul.f32 %v1654, %v2117
    %v2151 = vadd.f32 %v2149, %v2147
    %v2152 = vadd.f32 %v2150, %v2148
    %2153 = vset.pattern.permute.xlu0 11
    %2154 = vperm.xlu0 %2153, %v1733
    %v2155 = vpop.permute.xlu0 %2154
    %2157 = vset.pattern.permute.xlu0 11
    %2158 = vperm.xlu0 %2157, %v1734
    %v2159 = vpop.permute.xlu0 %2158
    %v2161 = vmul.f32 %v2155, %v2151
    %v2162 = vmul.f32 %v2159, %v2152
    %v2163 = vsel %vm81, %v2161, 0.0
    %v2164 = vsel %vm81, %v2162, 0.0
    %v2165 = vadd.f32 %v2163, %v2164
    %v2166 = vrot.slane %v2165, 4
    %v2167 = vadd.f32 %v2165, %v2166
    %v2168 = vrot.slane %v2167, 2
    %v2169 = vadd.f32 %v2167, %v2168
    %v2170 = vrot.slane %v2169, 1
    %v2171 = vadd.f32 %v2169, %v2170
    %2172 = vst.msk [vmem:[#allocation3 + $0xb] sm:$0x1] %vm631, %v2171
    %2173 = vset.pattern.permute.xlu0 12
    %2174 = vperm.xlu0 %2173, %v1695
    %v2175 = vpop.permute.xlu0 %2174
    %2177 = vset.pattern.permute.xlu0 12
    %2178 = vperm.xlu0 %2177, %v1696
    %v2179 = vpop.permute.xlu0 %2178
    %v2181 = vperm.slane %v1672, 4
    %v2182 = vmul.f32 %v2175, %v2181
    %v2183 = vmul.f32 %v2179, %v2181
    %v2184 = vmul.f32 %v1656, %v2151
    %v2185 = vmul.f32 %v1658, %v2152
    %v2186 = vadd.f32 %v2184, %v2182
    %v2187 = vadd.f32 %v2185, %v2183
    %2188 = vset.pattern.permute.xlu0 12
    %2189 = vperm.xlu0 %2188, %v1733
    %v2190 = vpop.permute.xlu0 %2189
    %2192 = vset.pattern.permute.xlu0 12
    %2193 = vperm.xlu0 %2192, %v1734
    %v2194 = vpop.permute.xlu0 %2193
    %v2196 = vmul.f32 %v2190, %v2186
    %v2197 = vmul.f32 %v2194, %v2187
    %v2198 = vsel %vm81, %v2196, 0.0
    %v2199 = vsel %vm81, %v2197, 0.0
    %v2200 = vadd.f32 %v2198, %v2199
    %v2201 = vrot.slane %v2200, 4
    %v2202 = vadd.f32 %v2200, %v2201
    %v2203 = vrot.slane %v2202, 2
    %v2204 = vadd.f32 %v2202, %v2203
    %v2205 = vrot.slane %v2204, 1
    %v2206 = vadd.f32 %v2204, %v2205
    %2207 = vst.msk [vmem:[#allocation3 + $0xc] sm:$0x1] %vm631, %v2206
    %2208 = vset.pattern.permute.xlu0 13
    %2209 = vperm.xlu0 %2208, %v1695
    %v2210 = vpop.permute.xlu0 %2209
    %2212 = vset.pattern.permute.xlu0 13
    %2213 = vperm.xlu0 %2212, %v1696
    %v2214 = vpop.permute.xlu0 %2213
    %v2216 = vperm.slane %v1672, 5
    %v2217 = vmul.f32 %v2210, %v2216
    %v2218 = vmul.f32 %v2214, %v2216
    %v2219 = vmul.f32 %v1660, %v2186
    %v2220 = vmul.f32 %v1662, %v2187
    %v2221 = vadd.f32 %v2219, %v2217
    %v2222 = vadd.f32 %v2220, %v2218
    %2223 = vset.pattern.permute.xlu0 13
    %2224 = vperm.xlu0 %2223, %v1733
    %v2225 = vpop.permute.xlu0 %2224
    %2227 = vset.pattern.permute.xlu0 13
    %2228 = vperm.xlu0 %2227, %v1734
    %v2229 = vpop.permute.xlu0 %2228
    %v2231 = vmul.f32 %v2225, %v2221
    %v2232 = vmul.f32 %v2229, %v2222
    %v2233 = vsel %vm81, %v2231, 0.0
    %v2234 = vsel %vm81, %v2232, 0.0
    %v2235 = vadd.f32 %v2233, %v2234
    %v2236 = vrot.slane %v2235, 4
    %v2237 = vadd.f32 %v2235, %v2236
    %v2238 = vrot.slane %v2237, 2
    %v2239 = vadd.f32 %v2237, %v2238
    %v2240 = vrot.slane %v2239, 1
    %v2241 = vadd.f32 %v2239, %v2240
    %2242 = vst.msk [vmem:[#allocation3 + $0xd] sm:$0x1] %vm631, %v2241
    %2243 = vset.pattern.permute.xlu0 14
    %2244 = vperm.xlu0 %2243, %v1695
    %v2245 = vpop.permute.xlu0 %2244
    %2247 = vset.pattern.permute.xlu0 14
    %2248 = vperm.xlu0 %2247, %v1696
    %v2249 = vpop.permute.xlu0 %2248
    %v2251 = vperm.slane %v1672, 6
    %v2252 = vmul.f32 %v2245, %v2251
    %v2253 = vmul.f32 %v2249, %v2251
    %v2254 = vmul.f32 %v1664, %v2221
    %v2255 = vmul.f32 %v1666, %v2222
    %v2256 = vadd.f32 %v2254, %v2252
    %v2257 = vadd.f32 %v2255, %v2253
    %2258 = vset.pattern.permute.xlu0 14
    %2259 = vperm.xlu0 %2258, %v1733
    %v2260 = vpop.permute.xlu0 %2259
    %2262 = vset.pattern.permute.xlu0 14
    %2263 = vperm.xlu0 %2262, %v1734
    %v2264 = vpop.permute.xlu0 %2263
    %v2266 = vmul.f32 %v2260, %v2256
    %v2267 = vmul.f32 %v2264, %v2257
    %v2268 = vsel %vm81, %v2266, 0.0
    %v2269 = vsel %vm81, %v2267, 0.0
    %v2270 = vadd.f32 %v2268, %v2269
    %v2271 = vrot.slane %v2270, 4
    %v2272 = vadd.f32 %v2270, %v2271
    %v2273 = vrot.slane %v2272, 2
    %v2274 = vadd.f32 %v2272, %v2273
    %v2275 = vrot.slane %v2274, 1
    %v2276 = vadd.f32 %v2274, %v2275
    %2277 = vst.msk [vmem:[#allocation3 + $0xe] sm:$0x1] %vm631, %v2276
    %2278 = vset.pattern.permute.xlu0 15
    %2279 = vperm.xlu0 %2278, %v1695
    %v2280 = vpop.permute.xlu0 %2279
    %2282 = vset.pattern.permute.xlu0 15
    %2283 = vperm.xlu0 %2282, %v1696
    %v2284 = vpop.permute.xlu0 %2283
    %v2286 = vperm.slane %v1672, 7
    %v2287 = vmul.f32 %v2280, %v2286
    %v2288 = vmul.f32 %v2284, %v2286
    %v2289 = vmul.f32 %v1668, %v2256
    %v2290 = vmul.f32 %v1670, %v2257
    %v2291 = vadd.f32 %v2289, %v2287
    %v2292 = vadd.f32 %v2290, %v2288
    %2293 = vset.pattern.permute.xlu0 15
    %2294 = vperm.xlu0 %2293, %v1733
    %v2295 = vpop.permute.xlu0 %2294
    %2297 = vset.pattern.permute.xlu0 15
    %2298 = vperm.xlu0 %2297, %v1734
    %v2299 = vpop.permute.xlu0 %2298
    %v2301 = vmul.f32 %v2295, %v2291
    %v2302 = vmul.f32 %v2299, %v2292
    %v2303 = vsel %vm81, %v2301, 0.0
    %v2304 = vsel %vm81, %v2302, 0.0
    %v2305 = vadd.f32 %v2303, %v2304
    %v2306 = vrot.slane %v2305, 4
    %v2307 = vadd.f32 %v2305, %v2306
    %v2308 = vrot.slane %v2307, 2
    %v2309 = vadd.f32 %v2307, %v2308
    %v2310 = vrot.slane %v2309, 1
    %v2311 = vadd.f32 %v2309, %v2310
    %2312 = vst.msk [vmem:[#allocation3 + $0xf] sm:$0x1] %vm631, %v2311
    %v2313 = vld [vmem:[#allocation3] sm:$0xff]
    %v2314 = vld [vmem:[#allocation3 + $0x8] sm:$0xff]
    %v2315 = vld [vmem:[%s21] sm:$0x1]
    %v2317 = vperm.slane %v2315, 0
    %v2319 = vmul.f32 %v1419, %v2317
    %v2320 = vmul.f32 %v1420, %v2317
    %v2321 = vadd.f32 %v2313, %v2319
    %v2322 = vadd.f32 %v2314, %v2320
    %v2323 = vsub.f32 0.0, %v1339
    %v2324 = vsub.f32 0.0, %v1342
    %v2325 = vmul.f32 %v2323, 1.442695
    %v2326 = vpow.pop %v2325
    %v2327 = vmul.f32 %v2324, 1.442695
    %v2328 = vpow.pop %v2327
    %v2329 = vadd.f32 %v2326, 1.0
    %v2330 = vadd.f32 %v2328, 1.0
    %v2331 = vrcp.pop %v2329
    %v2332 = vmul.f32 %v2329, %v2331
    %v2333 = vsub.f32 1.0, %v2332
    %v2334 = vmul.f32 %v2331, %v2333
    %v2335 = vadd.f32 %v2331, %v2334
    %vm2336 = vweird.f32 %v2329
    %vm2337 = vweird.f32 %v2331
    %vm2338 = vmor %vm2336, %vm2337
    %v2339 = vsel %vm2338, %v2331, %v2335
    %v2340 = vand.u32 2147483647, %v2329
    %vm2341 = vcmp.eq.f32.partialorder %v2340, 8.507059e+37
    %v2342 = vand.u32 %v2329, 2147483648
    %v2343 = vor.u32 1.1754944e-38, %v2342
    %v2344 = vsel %vm2341, %v2343, %v2339
    %v2345 = vmul.f32 1.0, %v2344
    %v2346 = vrcp.pop %v2330
    %v2347 = vmul.f32 %v2330, %v2346
    %v2348 = vsub.f32 1.0, %v2347
    %v2349 = vmul.f32 %v2346, %v2348
    %v2350 = vadd.f32 %v2346, %v2349
    %vm2351 = vweird.f32 %v2330
    %vm2352 = vweird.f32 %v2346
    %vm2353 = vmor %vm2351, %vm2352
    %v2354 = vsel %vm2353, %v2346, %v2350
    %v2355 = vand.u32 2147483647, %v2330
    %vm2356 = vcmp.eq.f32.partialorder %v2355, 8.507059e+37
    %v2357 = vand.u32 %v2330, 2147483648
    %v2358 = vor.u32 1.1754944e-38, %v2357
    %v2359 = vsel %vm2356, %v2358, %v2354
    %v2360 = vmul.f32 1.0, %v2359
    %v2361 = vmul.f32 %v1339, %v2345
    %v2362 = vmul.f32 %v1342, %v2360
    %2365 = vrot.lane.b32.xlu0 %v2361, 64
    %v2366 = vpop.permute.xlu0 %2365
    %2367 = vrot.lane.b32.xlu0 %v2362, 64
    %v2368 = vpop.permute.xlu0 %2367
    %v2371 = vmul.f32 %v2321, %v2366
    %v2372 = vmul.f32 %v2322, %v2368
    %v2373 = vld [vmem:[%s22] sm:$0xff]
    %v2374 = vld [vmem:[%s22 + $0x8] sm:$0xff]
    %v2375 = vld [vmem:[%s22 + $0x10] sm:$0xff]
    %v2376 = vld [vmem:[%s22 + $0x18] sm:$0xff]
    %v2377 = vld [vmem:[%s22 + $0x20] sm:$0xff]
    %v2378 = vld [vmem:[%s22 + $0x28] sm:$0xff]
    %v2379 = vld [vmem:[%s22 + $0x30] sm:$0xff]
    %v2380 = vld [vmem:[%s22 + $0x38] sm:$0xff]
    %v2382 = vsel %vm81, %v2371, 0
    %v2385 = vsel %vm81, %v2372, 0
    %2387 = vmatpush.msra.mxu0 0.0
    %2388 = vmatpush.msra.mxu0 0.0
    %2389 = vmatpush.msra.mxu0 0.0
    %2390 = vmatpush.msra.mxu0 0.0
    %2391 = vmatpush.msra.mxu0 0.0
    %2392 = vmatpush.msra.mxu0 0.0
    %2393 = vmatpush.msra.mxu0 0.0
    %2394 = vmatpush.msra.mxu0 0.0
    %2395 = vmatpush.msra.mxu0 %v2380
    %2396 = vmatpush.msra.mxu0 %v2379
    %2397 = vmatpush.msra.mxu0 %v2378
    %2398 = vmatpush.msra.mxu0 %v2377
    %2399 = vmatpush.msra.mxu0 %v2376
    %2400 = vmatpush.msra.mxu0 %v2375
    %2401 = vmatpush.msra.mxu0 %v2374
    %2402 = vmatpush.msra.mxu0 %v2373
    %2403 = vmatmul.f32.gmra.mxu0 %v2382
    %v2404 = vpop.f32.mrf.mxu0
    %v2405 = vadd.f32 %v1250, %v2404
    %2406 = vmatmul.f32.gmra.mxu0 %v2385
    %v2407 = vpop.f32.mrf.mxu0
    %v2408 = vadd.f32 %v1253, %v2407
    %2409 = vdwg.mxu0
    %v2410 = vsel %vm89, %v2405, 0.0
    %2411 = vadd.xlane.f32.xlu0 %v2410
    %v2412 = vpop.xlane.xlu0 %2411
    %v2413 = vsel %vm89, %v2408, 0.0
    %2414 = vadd.xlane.f32.xlu0 %v2413
    %v2415 = vpop.xlane.xlu0 %2414
    %v2416 = vmul.f32 %v2412, %v102
    %v2417 = vmul.f32 %v2415, %v102
    %v2418 = vsub.f32 %v2405, %v2416
    %v2419 = vsub.f32 %v2408, %v2417
    %v2420 = vmul.f32 %v2418, %v2418
    %v2421 = vmul.f32 %v2419, %v2419
    %v2422 = vsel %vm89, %v2420, 0.0
    %2423 = vadd.xlane.f32.xlu0 %v2422
    %v2424 = vpop.xlane.xlu0 %2423
    %v2425 = vsel %vm89, %v2421, 0.0
    %2426 = vadd.xlane.f32.xlu0 %v2425
    %v2427 = vpop.xlane.xlu0 %2426
    %v2428 = vmul.f32 %v2424, %v102
    %v2429 = vmul.f32 %v2427, %v102
    %v2430 = vadd.f32 %v2428, 1e-05
    %v2431 = vadd.f32 %v2429, 1e-05
    %v2432 = vrsqrt.pop %v2430
    %v2433 = vmul.f32 %v2432, %v2430
    %v2434 = vmul.f32 %v2433, %v2432
    %v2435 = vmul.f32 0.5, %v2434
    %v2436 = vsub.f32 1.5, %v2435
    %v2437 = vmul.f32 %v2432, %v2436
    %vm2438 = vweird.f32 %v2430
    %vm2439 = vweird.f32 %v2432
    %vm2440 = vmor %vm2438, %vm2439
    %v2441 = vsel %vm2440, %v2432, %v2437
    %v2442 = vrsqrt.pop %v2431
    %v2443 = vmul.f32 %v2442, %v2431
    %v2444 = vmul.f32 %v2443, %v2442
    %v2445 = vmul.f32 0.5, %v2444
    %v2446 = vsub.f32 1.5, %v2445
    %v2447 = vmul.f32 %v2442, %v2446
    %vm2448 = vweird.f32 %v2431
    %vm2449 = vweird.f32 %v2442
    %vm2450 = vmor %vm2448, %vm2449
    %v2451 = vsel %vm2450, %v2442, %v2447
    %v2452 = vmul.f32 %v2418, %v2441
    %v2453 = vmul.f32 %v2419, %v2451
    %v2454 = vld [vmem:[%s23] sm:$0x1]
    %v2456 = vperm.slane %v2454, 0
    %v2458 = vmul.f32 %v2452, %v2456
    %v2459 = vmul.f32 %v2453, %v2456
    %v2460 = vld [vmem:[%s24] sm:$0x1]
    %v2462 = vperm.slane %v2460, 0
    %v2464 = vadd.f32 %v2458, %v2462
    %v2465 = vadd.f32 %v2459, %v2462
    %2466 = vst.msk [vmem:[#allocation4] sm:$0xff] %vm89, %v2464
    %2467 = vst.msk [vmem:[#allocation4 + $0x8] sm:$0xff] %vm89, %v2465
    // Predicated region
    $region102: #{tpu_custom_call.1} parent=1 // pred_check
      _
    $region103: #{tpu_custom_call.1} parent=1 // pred_check_branch
      %2469 = sbr.rel (0) target = $region105
    $region104: #{tpu_custom_call.1} parent=1 // pred_region
      %2471 = vsyncadd [#allocation5], 0
      %s2472 = sshll.u32 [#allocation4], 4
      %s2473 = int_to_ptr.vmem [resolvable:$true] %s2472
      %s2474 = sshll.u32 %s25, 4
      %s2475 = int_to_ptr.hbm [resolvable:$true] %s2474
      %2480 = dma.vmem_to_hbm [thread:$0]  %s2473, 256, %s2475, [#allocation5], 128, 128, 8
    $region105: #{tpu_custom_call.1} parent=1 // pred_fallthru
      _
    // Predicated region
    $region106: #{tpu_custom_call.1} parent=1 // pred_check
      _
    $region107: #{tpu_custom_call.1} parent=1 // pred_check_branch
      %2482 = sbr.rel (0) target = $region109
    $region108: #{tpu_custom_call.1} parent=1 // pred_region
      %2484 = dma.done [#allocation5], 256
    $region109: #{tpu_custom_call.1} parent=1 // pred_fallthru
      _
    %2485 = vsyncpa [#allocation5], 1

</llo_original>
